<compile_context>
chip_gen: v7x
topology: tpu7x:2x2x1
jax: 0.10.0
libtpu: 0.0.40
codegen_flags: <defaults>
</compile_context>

<pallas_src>
import functools

import jax
import jax.numpy as jnp
from jax import lax
from jax.experimental import pallas as pl
from jax.experimental.pallas import tpu as pltpu


# ------------------------------ Pallas kernel ------------------------------- #

def _fused_dwsep_kernel(xp_ref, w9_ref, b1_ref, wp_ref, b2_ref, o_ref, *,
                        stride, nb, th, wo):
    """One grid step = (batch tile n of nb images, output-row tile t of th rows).

    xp_ref : (nb, Hp, Wp, Cin)      zero-padded NHWC input, bf16 (resident across t)
    w9_ref : (9, 1, 1, Cin)         depthwise 3x3 taps, BN scale folded, bf16
    b1_ref : (1, 1, Cin)            depthwise folded BN bias, f32
    wp_ref : (Cin, CoutP)           pointwise weights, BN scale folded, bf16
    b2_ref : (1, CoutP)             pointwise folded BN bias, f32
    o_ref  : (nb, th*wo, CoutP)     final output rows (spatial flattened)
    """
    t = pl.program_id(1)
    cin = xp_ref.shape[3]
    row0 = pl.multiple_of(t * th * stride, th * stride)   # first padded input row

    # ---- depthwise 3x3 (+ folded BN bias + ReLU6) on the VPU ---------------- #
    # Accumulator starts at the bias (saves one full-tile add).
    acc = jnp.broadcast_to(b1_ref[...].astype(jnp.float32), (nb, th, wo, cin))
    for kh in range(3):                         # static unroll over the 9 taps
        for kw in range(3):
            if stride == 1:
                patch = xp_ref[:, pl.ds(row0 + kh, th), pl.ds(kw, wo), :]
            else:
                # TODO(synk): stride-2 width slice is sublane-strided; a dense
                # width load + XLU de-interleave would offload the load slots.
                patch = xp_ref[:, pl.ds(row0 + kh, th, stride),
                               pl.ds(kw, wo, stride), :]
            tap = w9_ref[kh * 3 + kw]                       # (1, 1, Cin) bf16
            # bf16 * bf16 products are exact in f32; accumulate in f32.
            # TODO(synk): on v6e/v7x the multiply itself could stay bf16.
            acc = acc + patch.astype(jnp.float32) * tap.astype(jnp.float32)
    dw = jnp.clip(acc, 0.0, 6.0)                                       # ReLU6

    # ---- pointwise 1x1 (+ folded BN bias + ReLU6) on the MXU ---------------- #
    y = jnp.dot(dw.reshape(nb * th * wo, cin).astype(jnp.bfloat16),    # bf16 MXU
                wp_ref[...], preferred_element_type=jnp.float32)
    y = jnp.clip(y + b2_ref[...].astype(jnp.float32), 0.0, 6.0)        # ReLU6
    o_ref[...] = y.reshape(nb, th * wo, y.shape[-1]).astype(o_ref.dtype)


# ------------------------------ glue / wrapper ------------------------------ #

def _fold_bn(gamma, beta, mean, var, eps=1e-5):
    scale = gamma / jnp.sqrt(var + eps)
    bias = beta - mean * scale
    return scale.astype(jnp.float32), bias.astype(jnp.float32)


def _fold_params(params, cin, cout):
    """Fold eval-mode BN into the conv weights; weights delivered in bf16."""
    (w_dw, g1, be1, m1, v1, w_pw, g2, be2, m2, v2) = params
    s1, bias1 = _fold_bn(g1, be1, m1, v1)
    w9 = jnp.transpose(w_dw[:, 0, :, :], (1, 2, 0)).reshape(9, cin)     # (9, Cin)
    w9 = (w9.astype(jnp.float32) * s1[None, :]).reshape(9, 1, 1, cin)
    w9 = w9.astype(jnp.bfloat16)
    bias1 = bias1.reshape(1, 1, cin)

    s2, bias2 = _fold_bn(g2, be2, m2, v2)
    wp = jnp.transpose(w_pw[:, :, 0, 0], (1, 0)).astype(jnp.float32)    # (Cin, Cout)
    wp = (wp * s2[None, :]).astype(jnp.bfloat16)
    bias2 = bias2.reshape(1, cout)
    return w9, bias1, wp, bias2


def _pick_tiles(n, ho, wo, hp, wpad, cin, cout, budget_bytes=16 << 20):
    """Choose (nb, th): batch tile and output-row tile per grid step.

    Prefers M = nb*th*wo >= 512 (fills the MXU M dim), keeps th*wo 8-aligned
    (free reshape / dense stores) and the per-step VMEM working set under budget
    (safe on v7x's 64 MiB VMEM as well).
    """
    def cost(nb, th):
        img = 2 * nb * hp * wpad * cin * 2          # double-buffered bf16 input
        mid = nb * th * wo * (cin + cout) * 4       # f32 dw + f32 matmul result
        out = 2 * nb * th * wo * cout * 4           # double-buffered output
        return img + mid + out

    divisors = [d for d in range(ho, 0, -1) if ho % d == 0]
    th = next((d for d in divisors
               if (d * wo) % 8 == 0 and cost(1, d) <= budget_bytes), None)
    if th is None:
        # TODO(synk): pad Wo to an 8-aligned width instead of accepting the
        # relayout / masked-store cost of a misaligned tile.
        th = next((d for d in divisors if cost(1, d) <= budget_bytes), 1)

    nb = 1
    if th == ho:                                    # whole image per step
        while (nb < n and n % (nb * 2) == 0
               and nb * th * wo < 512
               and cost(nb * 2, th) <= budget_bytes):
            nb *= 2
    return nb, th


def depthwise_separable_conv(x_nchw, params, stride=1):
    (w_dw, *_rest, w_pw, g2, be2, m2, v2) = (params[0], *params[1:6], *params[6:])
    N, Cin, H, W = x_nchw.shape
    Cout = params[5].shape[0]

    Ho = (H + 2 - 3) // stride + 1
    Wo = (W + 2 - 3) // stride + 1
    Hp, Wp = H + 2, W + 2

    # NCHW -> NHWC, zero-pad the 1-pixel halo, cast to bf16 in the same pass
    # (halves HBM traffic + the resident image's VMEM footprint).
    x = jnp.transpose(x_nchw, (0, 2, 3, 1)).astype(jnp.bfloat16)
    xp = jnp.pad(x, ((0, 0), (1, 1), (1, 1), (0, 0)))

    w9, bias1, wp, bias2 = _fold_params(params, Cin, Cout)

    # Lane-dense output: pad Cout to a multiple of 128 only when that does not
    # inflate the output bytes excessively (interior MobileNet layers already
    # have Cout % 128 == 0).
    cout_p = Cout
    if Cout % 128 != 0 and Cout >= 64:
        cout_p = ((Cout + 127) // 128) * 128
        wp = jnp.pad(wp, ((0, 0), (0, cout_p - Cout)))
        bias2 = jnp.pad(bias2, ((0, 0), (0, cout_p - Cout)))

    nb, th = _pick_tiles(N, Ho, Wo, Hp, Wp, Cin, cout_p)
    grid = (N // nb, Ho // th)

    out_flat = pl.pallas_call(
        functools.partial(_fused_dwsep_kernel, stride=stride, nb=nb, th=th, wo=Wo),
        out_shape=jax.ShapeDtypeStruct((N, Ho * Wo, cout_p), x_nchw.dtype),
        grid=grid,
        in_specs=[
            # Padded image tile per batch group; block index constant in t, so it
            # is DMA'd once per batch group and reused across all row tiles.
            pl.BlockSpec((nb, Hp, Wp, Cin), lambda n, t: (n, 0, 0, 0)),
            pl.BlockSpec((9, 1, 1, Cin), lambda n, t: (0, 0, 0, 0)),
            pl.BlockSpec((1, 1, Cin), lambda n, t: (0, 0, 0)),
            pl.BlockSpec((Cin, cout_p), lambda n, t: (0, 0)),
            pl.BlockSpec((1, cout_p), lambda n, t: (0, 0)),
        ],
        out_specs=pl.BlockSpec((nb, th * Wo, cout_p), lambda n, t: (n, t, 0)),
        compiler_params=pltpu.CompilerParams(
            # t is "arbitrary": megacore shards the batch axis only, so the
            # resident image is never DMA'd twice (once per TensorCore).
            dimension_semantics=("parallel", "arbitrary"),
            vmem_limit_bytes=64 * 1024 * 1024),
    )(xp, w9, bias1, wp, bias2)

    out = out_flat[..., :Cout].reshape(N, Ho, Wo, Cout)
    return jnp.transpose(out, (0, 3, 1, 2))   # back to NCHW


# --------------------------- references (for tests) ------------------------- #

def reference_f32(x, params, stride=1):
    """Pure-f32 module semantics (Conv->BN->ReLU6, Conv->BN->ReLU6)."""
    (w_dw, g1, be1, m1, v1, w_pw, g2, be2, m2, v2) = params
    Cin = x.shape[1]
    dw = lax.conv_general_dilated(
        x, w_dw, window_strides=(stride, stride), padding=((1, 1), (1, 1)),
        dimension_numbers=("NCHW", "OIHW", "NCHW"), feature_group_count=Cin)
    s1, bb1 = _fold_bn(g1, be1, m1, v1)
    dw = jnp.clip(dw * s1[None, :, None, None] + bb1[None, :, None, None], 0.0, 6.0)
    pw = lax.conv_general_dilated(
        dw, w_pw, (1, 1), "VALID", dimension_numbers=("NCHW", "OIHW", "NCHW"))
    s2, bb2 = _fold_bn(g2, be2, m2, v2)
    return jnp.clip(pw * s2[None, :, None, None] + bb2[None, :, None, None], 0.0, 6.0)


def reference_matched(x_nchw, params, stride=1):
    """Pure-JAX reference that mirrors the kernel's bf16 quantization points
    (validates the Pallas indexing/tiling at tight tolerance)."""
    N, Cin, H, W = x_nchw.shape
    Cout = params[5].shape[0]
    Ho = (H + 2 - 3) // stride + 1
    Wo = (W + 2 - 3) // stride + 1
    w9, bias1, wp, bias2 = _fold_params(params, Cin, Cout)

    x = jnp.transpose(x_nchw, (0, 2, 3, 1)).astype(jnp.bfloat16)
    xp = jnp.pad(x, ((0, 0), (1, 1), (1, 1), (0, 0)))

    acc = jnp.broadcast_to(bias1.astype(jnp.float32), (N, Ho, Wo, Cin))
    for kh in range(3):
        for kw in range(3):
            patch = xp[:, kh:kh + stride * (Ho - 1) + 1:stride,
                       kw:kw + stride * (Wo - 1) + 1:stride, :]
            acc = acc + patch.astype(jnp.float32) * w9[kh * 3 + kw, 0, 0].astype(jnp.float32)
    dw = jnp.clip(acc, 0.0, 6.0).astype(jnp.bfloat16)
    y = jnp.einsum("nhwc,cd->nhwd", dw, wp, preferred_element_type=jnp.float32)
    y = jnp.clip(y + bias2.reshape(-1).astype(jnp.float32), 0.0, 6.0)
    return jnp.transpose(y, (0, 3, 1, 2)).astype(x_nchw.dtype)


# ---------------------------------- main ------------------------------------ #

if __name__ == "__main__":
    N, Cin, Cout, H, W = 2, 4, 8, 16, 16
    stride = 1

    key = jax.random.PRNGKey(0)
    ks = jax.random.split(key, 11)

    x = jax.random.normal(ks[0], (N, Cin, H, W), jnp.float32)

    # deterministic synthetic parameters (shapes follow the nn.Module __init__)
    w_dw = jax.random.normal(ks[1], (Cin, 1, 3, 3), jnp.float32) * 0.5     # depthwise conv
    g1 = 1.0 + 0.1 * jax.random.normal(ks[2], (Cin,), jnp.float32)          # BN1 gamma
    b1 = 0.1 * jax.random.normal(ks[3], (Cin,), jnp.float32)                # BN1 beta
    m1 = 0.1 * jax.random.normal(ks[4], (Cin,), jnp.float32)                # BN1 running_mean
    v1 = jnp.abs(jax.random.normal(ks[5], (Cin,), jnp.float32)) + 0.5       # BN1 running_var

    w_pw = jax.random.normal(ks[6], (Cout, Cin, 1, 1), jnp.float32) * 0.5   # pointwise conv
    g2 = 1.0 + 0.1 * jax.random.normal(ks[7], (Cout,), jnp.float32)
    b2 = 0.1 * jax.random.normal(ks[8], (Cout,), jnp.float32)
    m2 = 0.1 * jax.random.normal(ks[9], (Cout,), jnp.float32)
    v2 = jnp.abs(jax.random.normal(ks[10], (Cout,), jnp.float32)) + 0.5

    params = (w_dw, g1, b1, m1, v1, w_pw, g2, b2, m2, v2)

    out = depthwise_separable_conv(x, params, stride=stride)
    out = jax.block_until_ready(out)
    assert out.shape == (N, Cout, H // stride, W // stride), out.shape

    # Tight check: identical quantization points (validates kernel structure).
    ref_m = reference_matched(x, params, stride=stride)
    assert jnp.allclose(out, ref_m, atol=2e-2, rtol=2e-2), \
        float(jnp.max(jnp.abs(out - ref_m)))

    # Loose check vs. pure-f32 module semantics (bf16 data path drift is benign,
    # values are ReLU6-bounded).
    ref_f = reference_f32(x, params, stride=stride)
    assert jnp.allclose(out, ref_f, atol=2e-1, rtol=5e-2), \
        float(jnp.max(jnp.abs(out - ref_f)))

    print("KERNEL_OK")
</pallas_src>

<mosaic_0001>
module attributes {stable_mosaic.version = 11 : i64} {
  func.func @_fused_dwsep_kernel(%arg0: i32, %arg1: i32, %arg2: memref<2x18x18x4xbf16, #tpu.memory_space<vmem>>, %arg3: memref<9x1x1x4xbf16, #tpu.memory_space<vmem>>, %arg4: memref<1x1x4xf32, #tpu.memory_space<vmem>>, %arg5: memref<4x8xbf16, #tpu.memory_space<vmem>>, %arg6: memref<1x8xf32, #tpu.memory_space<vmem>>, %arg7: memref<2x256x8xf32, #tpu.memory_space<vmem>>) attributes {dimension_semantics = [#tpu.dimension_semantics<parallel>, #tpu.dimension_semantics<arbitrary>], iteration_bounds = array<i64: 1, 1>, scalar_prefetch = 0 : i64, scratch_operands = 0 : i64, tpu.core_type = #tpu.core_type<tc>, window_params = [{transform_indices = @transform_0, window_bounds = array<i64: 2, 18, 18, 4>}, {pipeline_mode = #tpu.pipeline_mode<synchronous>, transform_indices = @transform_1, window_bounds = array<i64: 9, 1, 1, 4>}, {pipeline_mode = #tpu.pipeline_mode<synchronous>, transform_indices = @transform_2, window_bounds = array<i64: 1, 1, 4>}, {pipeline_mode = #tpu.pipeline_mode<synchronous>, transform_indices = @transform_3, window_bounds = array<i64: 4, 8>}, {pipeline_mode = #tpu.pipeline_mode<synchronous>, transform_indices = @transform_4, window_bounds = array<i64: 1, 8>}, {transform_indices = @transform_5, window_bounds = array<i64: 2, 256, 8>}]} {
    %c16_i32 = arith.constant 16 : i32
    %0 = arith.muli %arg1, %c16_i32 : i32
    %c1_i32 = arith.constant 1 : i32
    %1 = arith.muli %0, %c1_i32 : i32
    %2 = tpu.assume_multiple %1, 16 : i32
    %c0 = arith.constant 0 : index
    %c0_0 = arith.constant 0 : index
    %c0_1 = arith.constant 0 : index
    %3 = vector.load %arg4[%c0, %c0_0, %c0_1] : memref<1x1x4xf32, #tpu.memory_space<vmem>>, vector<1x1x4xf32>
    %4 = vector.shape_cast %3 : vector<1x1x4xf32> to vector<1x1x1x4xf32>
    %5 = vector.broadcast %4 : vector<1x1x1x4xf32> to vector<2x16x16x4xf32>
    %c0_i32 = arith.constant 0 : i32
    %6 = arith.addi %2, %c0_i32 : i32
    %c0_2 = arith.constant 0 : index
    %7 = arith.index_cast %6 : i32 to index
    %c0_3 = arith.constant 0 : index
    %c0_4 = arith.constant 0 : index
    %8 = vector.load %arg2[%c0_2, %7, %c0_3, %c0_4] : memref<2x18x18x4xbf16, #tpu.memory_space<vmem>>, vector<2x16x16x4xbf16>
    %c0_5 = arith.constant 0 : index
    %c0_6 = arith.constant 0 : index
    %c0_7 = arith.constant 0 : index
    %c0_8 = arith.constant 0 : index
    %9 = vector.load %arg3[%c0_5, %c0_6, %c0_7, %c0_8] : memref<9x1x1x4xbf16, #tpu.memory_space<vmem>>, vector<1x1x1x4xbf16>
    %10 = vector.shape_cast %9 : vector<1x1x1x4xbf16> to vector<1x1x4xbf16>
    %11 = arith.extf %8 : vector<2x16x16x4xbf16> to vector<2x16x16x4xf32>
    %12 = arith.extf %10 : vector<1x1x4xbf16> to vector<1x1x4xf32>
    %13 = vector.shape_cast %12 : vector<1x1x4xf32> to vector<1x1x1x4xf32>
    %14 = vector.broadcast %13 : vector<1x1x1x4xf32> to vector<2x16x16x4xf32>
    %15 = arith.mulf %11, %14 : vector<2x16x16x4xf32>
    %16 = arith.addf %5, %15 : vector<2x16x16x4xf32>
    %c0_i32_9 = arith.constant 0 : i32
    %17 = arith.addi %2, %c0_i32_9 : i32
    %c0_10 = arith.constant 0 : index
    %18 = arith.index_cast %17 : i32 to index
    %c1 = arith.constant 1 : index
    %c0_11 = arith.constant 0 : index
    %19 = vector.load %arg2[%c0_10, %18, %c1, %c0_11] : memref<2x18x18x4xbf16, #tpu.memory_space<vmem>>, vector<2x16x16x4xbf16>
    %c1_12 = arith.constant 1 : index
    %c0_13 = arith.constant 0 : index
    %c0_14 = arith.constant 0 : index
    %c0_15 = arith.constant 0 : index
    %20 = vector.load %arg3[%c1_12, %c0_13, %c0_14, %c0_15] : memref<9x1x1x4xbf16, #tpu.memory_space<vmem>>, vector<1x1x1x4xbf16>
    %21 = vector.shape_cast %20 : vector<1x1x1x4xbf16> to vector<1x1x4xbf16>
    %22 = arith.extf %19 : vector<2x16x16x4xbf16> to vector<2x16x16x4xf32>
    %23 = arith.extf %21 : vector<1x1x4xbf16> to vector<1x1x4xf32>
    %24 = vector.shape_cast %23 : vector<1x1x4xf32> to vector<1x1x1x4xf32>
    %25 = vector.broadcast %24 : vector<1x1x1x4xf32> to vector<2x16x16x4xf32>
    %26 = arith.mulf %22, %25 : vector<2x16x16x4xf32>
    %27 = arith.addf %16, %26 : vector<2x16x16x4xf32>
    %c0_i32_16 = arith.constant 0 : i32
    %28 = arith.addi %2, %c0_i32_16 : i32
    %c0_17 = arith.constant 0 : index
    %29 = arith.index_cast %28 : i32 to index
    %c2 = arith.constant 2 : index
    %c0_18 = arith.constant 0 : index
    %30 = vector.load %arg2[%c0_17, %29, %c2, %c0_18] : memref<2x18x18x4xbf16, #tpu.memory_space<vmem>>, vector<2x16x16x4xbf16>
    %c2_19 = arith.constant 2 : index
    %c0_20 = arith.constant 0 : index
    %c0_21 = arith.constant 0 : index
    %c0_22 = arith.constant 0 : index
    %31 = vector.load %arg3[%c2_19, %c0_20, %c0_21, %c0_22] : memref<9x1x1x4xbf16, #tpu.memory_space<vmem>>, vector<1x1x1x4xbf16>
    %32 = vector.shape_cast %31 : vector<1x1x1x4xbf16> to vector<1x1x4xbf16>
    %33 = arith.extf %30 : vector<2x16x16x4xbf16> to vector<2x16x16x4xf32>
    %34 = arith.extf %32 : vector<1x1x4xbf16> to vector<1x1x4xf32>
    %35 = vector.shape_cast %34 : vector<1x1x4xf32> to vector<1x1x1x4xf32>
    %36 = vector.broadcast %35 : vector<1x1x1x4xf32> to vector<2x16x16x4xf32>
    %37 = arith.mulf %33, %36 : vector<2x16x16x4xf32>
    %38 = arith.addf %27, %37 : vector<2x16x16x4xf32>
    %c1_i32_23 = arith.constant 1 : i32
    %39 = arith.addi %2, %c1_i32_23 : i32
    %c0_24 = arith.constant 0 : index
    %40 = arith.index_cast %39 : i32 to index
    %c0_25 = arith.constant 0 : index
    %c0_26 = arith.constant 0 : index
    %41 = vector.load %arg2[%c0_24, %40, %c0_25, %c0_26] : memref<2x18x18x4xbf16, #tpu.memory_space<vmem>>, vector<2x16x16x4xbf16>
    %c3 = arith.constant 3 : index
    %c0_27 = arith.constant 0 : index
    %c0_28 = arith.constant 0 : index
    %c0_29 = arith.constant 0 : index
    %42 = vector.load %arg3[%c3, %c0_27, %c0_28, %c0_29] : memref<9x1x1x4xbf16, #tpu.memory_space<vmem>>, vector<1x1x1x4xbf16>
    %43 = vector.shape_cast %42 : vector<1x1x1x4xbf16> to vector<1x1x4xbf16>
    %44 = arith.extf %41 : vector<2x16x16x4xbf16> to vector<2x16x16x4xf32>
    %45 = arith.extf %43 : vector<1x1x4xbf16> to vector<1x1x4xf32>
    %46 = vector.shape_cast %45 : vector<1x1x4xf32> to vector<1x1x1x4xf32>
    %47 = vector.broadcast %46 : vector<1x1x1x4xf32> to vector<2x16x16x4xf32>
    %48 = arith.mulf %44, %47 : vector<2x16x16x4xf32>
    %49 = arith.addf %38, %48 : vector<2x16x16x4xf32>
    %c1_i32_30 = arith.constant 1 : i32
    %50 = arith.addi %2, %c1_i32_30 : i32
    %c0_31 = arith.constant 0 : index
    %51 = arith.index_cast %50 : i32 to index
    %c1_32 = arith.constant 1 : index
    %c0_33 = arith.constant 0 : index
    %52 = vector.load %arg2[%c0_31, %51, %c1_32, %c0_33] : memref<2x18x18x4xbf16, #tpu.memory_space<vmem>>, vector<2x16x16x4xbf16>
    %c4 = arith.constant 4 : index
    %c0_34 = arith.constant 0 : index
    %c0_35 = arith.constant 0 : index
    %c0_36 = arith.constant 0 : index
    %53 = vector.load %arg3[%c4, %c0_34, %c0_35, %c0_36] : memref<9x1x1x4xbf16, #tpu.memory_space<vmem>>, vector<1x1x1x4xbf16>
    %54 = vector.shape_cast %53 : vector<1x1x1x4xbf16> to vector<1x1x4xbf16>
    %55 = arith.extf %52 : vector<2x16x16x4xbf16> to vector<2x16x16x4xf32>
    %56 = arith.extf %54 : vector<1x1x4xbf16> to vector<1x1x4xf32>
    %57 = vector.shape_cast %56 : vector<1x1x4xf32> to vector<1x1x1x4xf32>
    %58 = vector.broadcast %57 : vector<1x1x1x4xf32> to vector<2x16x16x4xf32>
    %59 = arith.mulf %55, %58 : vector<2x16x16x4xf32>
    %60 = arith.addf %49, %59 : vector<2x16x16x4xf32>
    %c1_i32_37 = arith.constant 1 : i32
    %61 = arith.addi %2, %c1_i32_37 : i32
    %c0_38 = arith.constant 0 : index
    %62 = arith.index_cast %61 : i32 to index
    %c2_39 = arith.constant 2 : index
    %c0_40 = arith.constant 0 : index
    %63 = vector.load %arg2[%c0_38, %62, %c2_39, %c0_40] : memref<2x18x18x4xbf16, #tpu.memory_space<vmem>>, vector<2x16x16x4xbf16>
    %c5 = arith.constant 5 : index
    %c0_41 = arith.constant 0 : index
    %c0_42 = arith.constant 0 : index
    %c0_43 = arith.constant 0 : index
    %64 = vector.load %arg3[%c5, %c0_41, %c0_42, %c0_43] : memref<9x1x1x4xbf16, #tpu.memory_space<vmem>>, vector<1x1x1x4xbf16>
    %65 = vector.shape_cast %64 : vector<1x1x1x4xbf16> to vector<1x1x4xbf16>
    %66 = arith.extf %63 : vector<2x16x16x4xbf16> to vector<2x16x16x4xf32>
    %67 = arith.extf %65 : vector<1x1x4xbf16> to vector<1x1x4xf32>
    %68 = vector.shape_cast %67 : vector<1x1x4xf32> to vector<1x1x1x4xf32>
    %69 = vector.broadcast %68 : vector<1x1x1x4xf32> to vector<2x16x16x4xf32>
    %70 = arith.mulf %66, %69 : vector<2x16x16x4xf32>
    %71 = arith.addf %60, %70 : vector<2x16x16x4xf32>
    %c2_i32 = arith.constant 2 : i32
    %72 = arith.addi %2, %c2_i32 : i32
    %c0_44 = arith.constant 0 : index
    %73 = arith.index_cast %72 : i32 to index
    %c0_45 = arith.constant 0 : index
    %c0_46 = arith.constant 0 : index
    %74 = vector.load %arg2[%c0_44, %73, %c0_45, %c0_46] : memref<2x18x18x4xbf16, #tpu.memory_space<vmem>>, vector<2x16x16x4xbf16>
    %c6 = arith.constant 6 : index
    %c0_47 = arith.constant 0 : index
    %c0_48 = arith.constant 0 : index
    %c0_49 = arith.constant 0 : index
    %75 = vector.load %arg3[%c6, %c0_47, %c0_48, %c0_49] : memref<9x1x1x4xbf16, #tpu.memory_space<vmem>>, vector<1x1x1x4xbf16>
    %76 = vector.shape_cast %75 : vector<1x1x1x4xbf16> to vector<1x1x4xbf16>
    %77 = arith.extf %74 : vector<2x16x16x4xbf16> to vector<2x16x16x4xf32>
    %78 = arith.extf %76 : vector<1x1x4xbf16> to vector<1x1x4xf32>
    %79 = vector.shape_cast %78 : vector<1x1x4xf32> to vector<1x1x1x4xf32>
    %80 = vector.broadcast %79 : vector<1x1x1x4xf32> to vector<2x16x16x4xf32>
    %81 = arith.mulf %77, %80 : vector<2x16x16x4xf32>
    %82 = arith.addf %71, %81 : vector<2x16x16x4xf32>
    %c2_i32_50 = arith.constant 2 : i32
    %83 = arith.addi %2, %c2_i32_50 : i32
    %c0_51 = arith.constant 0 : index
    %84 = arith.index_cast %83 : i32 to index
    %c1_52 = arith.constant 1 : index
    %c0_53 = arith.constant 0 : index
    %85 = vector.load %arg2[%c0_51, %84, %c1_52, %c0_53] : memref<2x18x18x4xbf16, #tpu.memory_space<vmem>>, vector<2x16x16x4xbf16>
    %c7 = arith.constant 7 : index
    %c0_54 = arith.constant 0 : index
    %c0_55 = arith.constant 0 : index
    %c0_56 = arith.constant 0 : index
    %86 = vector.load %arg3[%c7, %c0_54, %c0_55, %c0_56] : memref<9x1x1x4xbf16, #tpu.memory_space<vmem>>, vector<1x1x1x4xbf16>
    %87 = vector.shape_cast %86 : vector<1x1x1x4xbf16> to vector<1x1x4xbf16>
    %88 = arith.extf %85 : vector<2x16x16x4xbf16> to vector<2x16x16x4xf32>
    %89 = arith.extf %87 : vector<1x1x4xbf16> to vector<1x1x4xf32>
    %90 = vector.shape_cast %89 : vector<1x1x4xf32> to vector<1x1x1x4xf32>
    %91 = vector.broadcast %90 : vector<1x1x1x4xf32> to vector<2x16x16x4xf32>
    %92 = arith.mulf %88, %91 : vector<2x16x16x4xf32>
    %93 = arith.addf %82, %92 : vector<2x16x16x4xf32>
    %c2_i32_57 = arith.constant 2 : i32
    %94 = arith.addi %2, %c2_i32_57 : i32
    %c0_58 = arith.constant 0 : index
    %95 = arith.index_cast %94 : i32 to index
    %c2_59 = arith.constant 2 : index
    %c0_60 = arith.constant 0 : index
    %96 = vector.load %arg2[%c0_58, %95, %c2_59, %c0_60] : memref<2x18x18x4xbf16, #tpu.memory_space<vmem>>, vector<2x16x16x4xbf16>
    %c8 = arith.constant 8 : index
    %c0_61 = arith.constant 0 : index
    %c0_62 = arith.constant 0 : index
    %c0_63 = arith.constant 0 : index
    %97 = vector.load %arg3[%c8, %c0_61, %c0_62, %c0_63] : memref<9x1x1x4xbf16, #tpu.memory_space<vmem>>, vector<1x1x1x4xbf16>
    %98 = vector.shape_cast %97 : vector<1x1x1x4xbf16> to vector<1x1x4xbf16>
    %99 = arith.extf %96 : vector<2x16x16x4xbf16> to vector<2x16x16x4xf32>
    %100 = arith.extf %98 : vector<1x1x4xbf16> to vector<1x1x4xf32>
    %101 = vector.shape_cast %100 : vector<1x1x4xf32> to vector<1x1x1x4xf32>
    %102 = vector.broadcast %101 : vector<1x1x1x4xf32> to vector<2x16x16x4xf32>
    %103 = arith.mulf %99, %102 : vector<2x16x16x4xf32>
    %104 = arith.addf %93, %103 : vector<2x16x16x4xf32>
    %cst = arith.constant 0.000000e+00 : f32
    %cst_64 = arith.constant 6.000000e+00 : f32
    %105 = vector.broadcast %cst : f32 to vector<2x16x16x4xf32>
    %106 = arith.maximumf %105, %104 : vector<2x16x16x4xf32>
    %107 = vector.broadcast %cst_64 : f32 to vector<2x16x16x4xf32>
    %108 = arith.minimumf %107, %106 : vector<2x16x16x4xf32>
    %109 = vector.shape_cast %108 : vector<2x16x16x4xf32> to vector<512x4xf32>
    %110 = arith.truncf %109 : vector<512x4xf32> to vector<512x4xbf16>
    %c0_65 = arith.constant 0 : index
    %c0_66 = arith.constant 0 : index
    %111 = vector.load %arg5[%c0_65, %c0_66] : memref<4x8xbf16, #tpu.memory_space<vmem>>, vector<4x8xbf16>
    %cst_67 = arith.constant dense<0.000000e+00> : vector<512x8xf32>
    %112 = tpu.matmul %110, %111, %cst_67 {dimension_numbers = #tpu.dot_dimension_numbers<[1], [0], [0], [1], [0, 0, 1, 1], [], []>} : vector<512x4xbf16>, vector<4x8xbf16>, vector<512x8xf32> -> vector<512x8xf32>
    %c0_68 = arith.constant 0 : index
    %c0_69 = arith.constant 0 : index
    %113 = vector.load %arg6[%c0_68, %c0_69] : memref<1x8xf32, #tpu.memory_space<vmem>>, vector<1x8xf32>
    %114 = vector.broadcast %113 : vector<1x8xf32> to vector<512x8xf32>
    %115 = arith.addf %112, %114 : vector<512x8xf32>
    %cst_70 = arith.constant 0.000000e+00 : f32
    %cst_71 = arith.constant 6.000000e+00 : f32
    %116 = vector.broadcast %cst_70 : f32 to vector<512x8xf32>
    %117 = arith.maximumf %116, %115 : vector<512x8xf32>
    %118 = vector.broadcast %cst_71 : f32 to vector<512x8xf32>
    %119 = arith.minimumf %118, %117 : vector<512x8xf32>
    %120 = vector.shape_cast %119 : vector<512x8xf32> to vector<2x256x8xf32>
    %c0_72 = arith.constant 0 : index
    %c0_73 = arith.constant 0 : index
    %c0_74 = arith.constant 0 : index
    %121 = vector.load %arg7[%c0_72, %c0_73, %c0_74] : memref<2x256x8xf32, #tpu.memory_space<vmem>>, vector<2x256x8xf32>
    tpu.vector_store %arg7[%c0_72, %c0_73, %c0_74], %120 {strides = array<i32>} : memref<2x256x8xf32, #tpu.memory_space<vmem>>, vector<2x256x8xf32>,
    return
  }
  func.func @transform_0(%arg0: i32, %arg1: i32) -> (i32, i32, i32, i32) {
    %c0_i32 = arith.constant 0 : i32
    %c0_i32_0 = arith.constant 0 : i32
    %c0_i32_1 = arith.constant 0 : i32
    %c0_i32_2 = arith.constant 0 : i32
    return %arg0, %c0_i32, %c0_i32_0, %c0_i32_1 : i32, i32, i32, i32
  }
  func.func @transform_1(%arg0: i32, %arg1: i32) -> (i32, i32, i32, i32) {
    %c0_i32 = arith.constant 0 : i32
    %c0_i32_0 = arith.constant 0 : i32
    %c0_i32_1 = arith.constant 0 : i32
    %c0_i32_2 = arith.constant 0 : i32
    %c0_i32_3 = arith.constant 0 : i32
    return %c0_i32, %c0_i32_0, %c0_i32_1, %c0_i32_2 : i32, i32, i32, i32
  }
  func.func @transform_2(%arg0: i32, %arg1: i32) -> (i32, i32, i32) {
    %c0_i32 = arith.constant 0 : i32
    %c0_i32_0 = arith.constant 0 : i32
    %c0_i32_1 = arith.constant 0 : i32
    %c0_i32_2 = arith.constant 0 : i32
    return %c0_i32, %c0_i32_0, %c0_i32_1 : i32, i32, i32
  }
  func.func @transform_3(%arg0: i32, %arg1: i32) -> (i32, i32) {
    %c0_i32 = arith.constant 0 : i32
    %c0_i32_0 = arith.constant 0 : i32
    %c0_i32_1 = arith.constant 0 : i32
    return %c0_i32, %c0_i32_0 : i32, i32
  }
  func.func @transform_4(%arg0: i32, %arg1: i32) -> (i32, i32) {
    %c0_i32 = arith.constant 0 : i32
    %c0_i32_0 = arith.constant 0 : i32
    %c0_i32_1 = arith.constant 0 : i32
    return %c0_i32, %c0_i32_0 : i32, i32
  }
  func.func @transform_5(%arg0: i32, %arg1: i32) -> (i32, i32, i32) {
    %c0_i32 = arith.constant 0 : i32
    %c0_i32_0 = arith.constant 0 : i32
    return %arg0, %arg1, %c0_i32 : i32, i32, i32
  }
}

</mosaic_0001>

<llo_original>
// kernel: tpu_custom_call.1
$region0: #{tpu_custom_call.1}
  #allocation0 [shape = 'u32[]', space=smem, size = 0x4, offset = 0x4, fixed_abs, tag = 'smem constant byte address 0x4 - core index']
  #allocation1 [shape = 'u32[144,128]{1,0:T(1,128)}', space=vmem, size = 0x12000, scoped, tag = 'internal scratch']
  %s0 = inlined_call_operand.hbm [shape: bf16[2,18,18,4], index: 0, kind: input, shape index: {}]
  %s1 = inlined_call_operand.hbm [shape: bf16[9,1,1,4], index: 1, kind: input, shape index: {}]
  %s2 = inlined_call_operand.hbm [shape: f32[1,1,4], index: 2, kind: input, shape index: {}]
  %s3 = inlined_call_operand.hbm [shape: bf16[4,8], index: 3, kind: input, shape index: {}]
  %s4 = inlined_call_operand.hbm [shape: f32[1,8], index: 4, kind: input, shape index: {}]
  %s5 = inlined_call_operand.hbm [shape: f32[2,256,8], index: 5, kind: output, shape index: {}]
  %s6 = sld [smem:[#allocation0]]
  $region50: #{tpu_custom_call.1} parent=0
    _
  %s8 = ssub.s32 1, %s6
  %s9 = scalar_select 0, %s8, %s6
  $region1: #{tpu_custom_call.1} parent=0
    #allocation2 [shape = 'u8[221184]{0}', space=vmem, size = 0x36000, scoped, tag = 'input window, operand 0, single buffered']
    #allocation3 [shape = 's32[1]{0}', space=sflag, size = 0x4, scoped, tag = 'scoped memory for tpu_custom_call.1']
    #allocation4 [shape = 's32[1]{0}', space=sflag, size = 0x4, scoped, tag = 'scoped memory for tpu_custom_call.1']
    #allocation5 [shape = 'u8[4608]{0}', space=vmem, size = 0x1400, scoped, tag = 'input window, operand 1, single buffered']
    #allocation6 [shape = 's32[1]{0}', space=sflag, size = 0x4, scoped, tag = 'scoped memory for tpu_custom_call.1']
    #allocation7 [shape = 'u8[512]{0}', space=vmem, size = 0x400, scoped, tag = 'input window, operand 2, single buffered']
    #allocation8 [shape = 'u8[1024]{0}', space=vmem, size = 0x400, scoped, tag = 'input window, operand 3, single buffered']
    #allocation9 [shape = 's32[1]{0}', space=sflag, size = 0x4, scoped, tag = 'scoped memory for tpu_custom_call.1']
    #allocation10 [shape = 'u8[512]{0}', space=vmem, size = 0x400, scoped, tag = 'input window, operand 4, single buffered']
    #allocation11 [shape = 'u8[262144]{0}', space=vmem, size = 0x40000, scoped, tag = 'output window, operand 0, single buffered']
    %10 = vsyncpa [#allocation3], 0
    %11 = vsyncpa [#allocation6], 0
    %12 = vsyncpa [#allocation9], 0
    %13 = vsyncpa [#allocation4], 0
    // Predicated region
    $region2: #{tpu_custom_call.1} parent=1 // pred_check
      _
    $region3: #{tpu_custom_call.1} parent=1 // pred_check_branch
      %15 = sbr.rel (0) target = $region5
    $region4: #{tpu_custom_call.1} parent=1 // pred_region
      %s17 = ssub.s32 6912, 6912
      %18 = vsyncadd [#allocation3], %s17
      %s19 = sshll.u32 [#allocation2], 4
      %s20 = int_to_ptr.vmem [resolvable:$true] %s19
      %25 = dma.hbm_to_vmem [thread:$0]  %s0, 6912, %s20, [#allocation3], 64, 64, 4
    $region5: #{tpu_custom_call.1} parent=1 // pred_fallthru
      _
    // Predicated region
    $region6: #{tpu_custom_call.1} parent=1 // pred_check
      _
    $region7: #{tpu_custom_call.1} parent=1 // pred_check_branch
      %27 = sbr.rel (0) target = $region9
    $region8: #{tpu_custom_call.1} parent=1 // pred_region
      %s29 = ssub.s32 144, 144
      %30 = vsyncadd [#allocation6], %s29
      %s31 = sshll.u32 [#allocation5], 4
      %s32 = int_to_ptr.vmem [resolvable:$true] %s31
      %37 = dma.hbm_to_vmem [thread:$0]  %s1, 144, %s32, [#allocation6], 16, 16, 1
    $region9: #{tpu_custom_call.1} parent=1 // pred_fallthru
      _
    // Predicated region
    $region10: #{tpu_custom_call.1} parent=1 // pred_check
      _
    $region11: #{tpu_custom_call.1} parent=1 // pred_check_branch
      %39 = sbr.rel (0) target = $region13
    $region12: #{tpu_custom_call.1} parent=1 // pred_region
      %s41 = ssub.s32 16, 16
      %42 = vsyncadd [#allocation6], %s41
      %s44 = sshll.u32 [#allocation7], 4
      %s45 = int_to_ptr.vmem [resolvable:$true] %s44
      %47 = dma.hbm_to_vmem [thread:$0]  %s2, 16, %s45, [#allocation6]
    $region13: #{tpu_custom_call.1} parent=1 // pred_fallthru
      _
    // Predicated region
    $region14: #{tpu_custom_call.1} parent=1 // pred_check
      _
    $region15: #{tpu_custom_call.1} parent=1 // pred_check_branch
      %49 = sbr.rel (0) target = $region17
    $region16: #{tpu_custom_call.1} parent=1 // pred_region
      %s51 = ssub.s32 32, 32
      %52 = vsyncadd [#allocation9], %s51
      %s54 = sshll.u32 [#allocation8], 4
      %s55 = int_to_ptr.vmem [resolvable:$true] %s54
      %57 = dma.hbm_to_vmem [thread:$0]  %s3, 32, %s55, [#allocation9]
    $region17: #{tpu_custom_call.1} parent=1 // pred_fallthru
      _
    // Predicated region
    $region18: #{tpu_custom_call.1} parent=1 // pred_check
      _
    $region19: #{tpu_custom_call.1} parent=1 // pred_check_branch
      %59 = sbr.rel (0) target = $region21
    $region20: #{tpu_custom_call.1} parent=1 // pred_region
      %s61 = ssub.s32 16, 16
      %62 = vsyncadd [#allocation9], %s61
      %s64 = sshll.u32 [#allocation10], 4
      %s65 = int_to_ptr.vmem [resolvable:$true] %s64
      %67 = dma.hbm_to_vmem [thread:$0]  %s4, 16, %s65, [#allocation9]
    $region21: #{tpu_custom_call.1} parent=1 // pred_fallthru
      _
    // Predicated region
    $region22: #{tpu_custom_call.1} parent=1 // pred_check
      _
    $region23: #{tpu_custom_call.1} parent=1 // pred_check_branch
      %69 = sbr.rel (0) target = $region25
    $region24: #{tpu_custom_call.1} parent=1 // pred_region
      %70 = dma.done [#allocation3], 6912
    $region25: #{tpu_custom_call.1} parent=1 // pred_fallthru
      _
    // Predicated region
    $region26: #{tpu_custom_call.1} parent=1 // pred_check
      _
    $region27: #{tpu_custom_call.1} parent=1 // pred_check_branch
      %72 = sbr.rel (0) target = $region29
    $region28: #{tpu_custom_call.1} parent=1 // pred_region
      %73 = dma.done [#allocation6], 144
    $region29: #{tpu_custom_call.1} parent=1 // pred_fallthru
      _
    // Predicated region
    $region30: #{tpu_custom_call.1} parent=1 // pred_check
      _
    $region31: #{tpu_custom_call.1} parent=1 // pred_check_branch
      %75 = sbr.rel (0) target = $region33
    $region32: #{tpu_custom_call.1} parent=1 // pred_region
      %76 = dma.done [#allocation6], 16
    $region33: #{tpu_custom_call.1} parent=1 // pred_fallthru
      _
    // Predicated region
    $region34: #{tpu_custom_call.1} parent=1 // pred_check
      _
    $region35: #{tpu_custom_call.1} parent=1 // pred_check_branch
      %78 = sbr.rel (0) target = $region37
    $region36: #{tpu_custom_call.1} parent=1 // pred_region
      %79 = dma.done [#allocation9], 32
    $region37: #{tpu_custom_call.1} parent=1 // pred_fallthru
      _
    // Predicated region
    $region38: #{tpu_custom_call.1} parent=1 // pred_check
      _
    $region39: #{tpu_custom_call.1} parent=1 // pred_check_branch
      %81 = sbr.rel (0) target = $region41
    $region40: #{tpu_custom_call.1} parent=1 // pred_region
      %82 = dma.done [#allocation9], 16
    $region41: #{tpu_custom_call.1} parent=1 // pred_fallthru
      _
    %s84 = smul.u32 0, 16
    %v85 = vld [vmem:[#allocation7] sm:$0x1]
    %v87 = vlaneseq
    %v88 = vshrl.u32 %v87, 7
    %v89 = vsub.s32 0, %v88
    %v90 = vrot.slane %v85, %v89
    %s92 = smul.u32 %s84, 3
    %s93 = smul.addr %s92, 4
    %s94 = scalar_lea.vmem [#allocation2], %s93
    %v95 = vld [vmem:[%s94] sm:$0xf]
    %v96 = vld [vmem:[%s94 + $0x4] sm:$0xf]
    %v97 = vld [vmem:[%s94 + $0xc] sm:$0xf]
    %v98 = vld [vmem:[%s94 + $0x10] sm:$0xf]
    %v99 = vld [vmem:[%s94 + $0x18] sm:$0xf]
    %v100 = vld [vmem:[%s94 + $0x1c] sm:$0xf]
    %v101 = vld [vmem:[%s94 + $0x24] sm:$0xf]
    %v102 = vld [vmem:[%s94 + $0x28] sm:$0xf]
    %v103 = vld [vmem:[%s94 + $0x30] sm:$0xf]
    %v104 = vld [vmem:[%s94 + $0x34] sm:$0xf]
    %v105 = vld [vmem:[%s94 + $0x3c] sm:$0xf]
    %v106 = vld [vmem:[%s94 + $0x40] sm:$0xf]
    %v107 = vld [vmem:[%s94 + $0x48] sm:$0xf]
    %v108 = vld [vmem:[%s94 + $0x4c] sm:$0xf]
    %v109 = vld [vmem:[%s94 + $0x54] sm:$0xf]
    %v110 = vld [vmem:[%s94 + $0x58] sm:$0xf]
    %v111 = vld [vmem:[%s94 + $0x60] sm:$0xf]
    %v112 = vld [vmem:[%s94 + $0x64] sm:$0xf]
    %v113 = vld [vmem:[%s94 + $0x6c] sm:$0xf]
    %v114 = vld [vmem:[%s94 + $0x70] sm:$0xf]
    %v115 = vld [vmem:[%s94 + $0x78] sm:$0xf]
    %v116 = vld [vmem:[%s94 + $0x7c] sm:$0xf]
    %v117 = vld [vmem:[%s94 + $0x84] sm:$0xf]
    %v118 = vld [vmem:[%s94 + $0x88] sm:$0xf]
    %v119 = vld [vmem:[%s94 + $0x90] sm:$0xf]
    %v120 = vld [vmem:[%s94 + $0x94] sm:$0xf]
    %v121 = vld [vmem:[%s94 + $0x9c] sm:$0xf]
    %v122 = vld [vmem:[%s94 + $0xa0] sm:$0xf]
    %v123 = vld [vmem:[%s94 + $0xa8] sm:$0xf]
    %v124 = vld [vmem:[%s94 + $0xac] sm:$0xf]
    %v125 = vld [vmem:[%s94 + $0xb4] sm:$0xf]
    %v126 = vld [vmem:[%s94 + $0xb8] sm:$0xf]
    %v127 = vld [vmem:[%s94 + $0xd8] sm:$0xf]
    %v128 = vld [vmem:[%s94 + $0xdc] sm:$0xf]
    %v129 = vld [vmem:[%s94 + $0xe4] sm:$0xf]
    %v130 = vld [vmem:[%s94 + $0xe8] sm:$0xf]
    %v131 = vld [vmem:[%s94 + $0xf0] sm:$0xf]
    %v132 = vld [vmem:[%s94 + $0xf4] sm:$0xf]
    %v133 = vld [vmem:[%s94 + $0xfc] sm:$0xf]
    %v134 = vld [vmem:[%s94 + $0x100] sm:$0xf]
    %v135 = vld [vmem:[%s94 + $0x108] sm:$0xf]
    %v136 = vld [vmem:[%s94 + $0x10c] sm:$0xf]
    %v137 = vld [vmem:[%s94 + $0x114] sm:$0xf]
    %v138 = vld [vmem:[%s94 + $0x118] sm:$0xf]
    %v139 = vld [vmem:[%s94 + $0x120] sm:$0xf]
    %v140 = vld [vmem:[%s94 + $0x124] sm:$0xf]
    %v141 = vld [vmem:[%s94 + $0x12c] sm:$0xf]
    %v142 = vld [vmem:[%s94 + $0x130] sm:$0xf]
    %v143 = vld [vmem:[%s94 + $0x138] sm:$0xf]
    %v144 = vld [vmem:[%s94 + $0x13c] sm:$0xf]
    %v145 = vld [vmem:[%s94 + $0x144] sm:$0xf]
    %v146 = vld [vmem:[%s94 + $0x148] sm:$0xf]
    %v147 = vld [vmem:[%s94 + $0x150] sm:$0xf]
    %v148 = vld [vmem:[%s94 + $0x154] sm:$0xf]
    %v149 = vld [vmem:[%s94 + $0x15c] sm:$0xf]
    %v150 = vld [vmem:[%s94 + $0x160] sm:$0xf]
    %v151 = vld [vmem:[%s94 + $0x168] sm:$0xf]
    %v152 = vld [vmem:[%s94 + $0x16c] sm:$0xf]
    %v153 = vld [vmem:[%s94 + $0x174] sm:$0xf]
    %v154 = vld [vmem:[%s94 + $0x178] sm:$0xf]
    %v155 = vld [vmem:[%s94 + $0x180] sm:$0xf]
    %v156 = vld [vmem:[%s94 + $0x184] sm:$0xf]
    %v157 = vld [vmem:[%s94 + $0x18c] sm:$0xf]
    %v158 = vld [vmem:[%s94 + $0x190] sm:$0xf]
    %v159 = vld [vmem:[#allocation5] sm:$0x1]
    %v160 = vunpack.c.l.bf16 %v95
    %v161 = vunpack.c.l.bf16 %v96
    %v162 = vunpack.c.l.bf16 %v97
    %v163 = vunpack.c.l.bf16 %v98
    %v164 = vunpack.c.l.bf16 %v99
    %v165 = vunpack.c.l.bf16 %v100
    %v166 = vunpack.c.l.bf16 %v101
    %v167 = vunpack.c.l.bf16 %v102
    %v168 = vunpack.c.l.bf16 %v103
    %v169 = vunpack.c.l.bf16 %v104
    %v170 = vunpack.c.l.bf16 %v105
    %v171 = vunpack.c.l.bf16 %v106
    %v172 = vunpack.c.l.bf16 %v107
    %v173 = vunpack.c.l.bf16 %v108
    %v174 = vunpack.c.l.bf16 %v109
    %v175 = vunpack.c.l.bf16 %v110
    %v176 = vunpack.c.l.bf16 %v111
    %v177 = vunpack.c.l.bf16 %v112
    %v178 = vunpack.c.l.bf16 %v113
    %v179 = vunpack.c.l.bf16 %v114
    %v180 = vunpack.c.l.bf16 %v115
    %v181 = vunpack.c.l.bf16 %v116
    %v182 = vunpack.c.l.bf16 %v117
    %v183 = vunpack.c.l.bf16 %v118
    %v184 = vunpack.c.l.bf16 %v119
    %v185 = vunpack.c.l.bf16 %v120
    %v186 = vunpack.c.l.bf16 %v121
    %v187 = vunpack.c.l.bf16 %v122
    %v188 = vunpack.c.l.bf16 %v123
    %v189 = vunpack.c.l.bf16 %v124
    %v190 = vunpack.c.l.bf16 %v125
    %v191 = vunpack.c.l.bf16 %v126
    %v192 = vunpack.c.l.bf16 %v127
    %v193 = vunpack.c.l.bf16 %v128
    %v194 = vunpack.c.l.bf16 %v129
    %v195 = vunpack.c.l.bf16 %v130
    %v196 = vunpack.c.l.bf16 %v131
    %v197 = vunpack.c.l.bf16 %v132
    %v198 = vunpack.c.l.bf16 %v133
    %v199 = vunpack.c.l.bf16 %v134
    %v200 = vunpack.c.l.bf16 %v135
    %v201 = vunpack.c.l.bf16 %v136
    %v202 = vunpack.c.l.bf16 %v137
    %v203 = vunpack.c.l.bf16 %v138
    %v204 = vunpack.c.l.bf16 %v139
    %v205 = vunpack.c.l.bf16 %v140
    %v206 = vunpack.c.l.bf16 %v141
    %v207 = vunpack.c.l.bf16 %v142
    %v208 = vunpack.c.l.bf16 %v143
    %v209 = vunpack.c.l.bf16 %v144
    %v210 = vunpack.c.l.bf16 %v145
    %v211 = vunpack.c.l.bf16 %v146
    %v212 = vunpack.c.l.bf16 %v147
    %v213 = vunpack.c.l.bf16 %v148
    %v214 = vunpack.c.l.bf16 %v149
    %v215 = vunpack.c.l.bf16 %v150
    %v216 = vunpack.c.l.bf16 %v151
    %v217 = vunpack.c.l.bf16 %v152
    %v218 = vunpack.c.l.bf16 %v153
    %v219 = vunpack.c.l.bf16 %v154
    %v220 = vunpack.c.l.bf16 %v155
    %v221 = vunpack.c.l.bf16 %v156
    %v222 = vunpack.c.l.bf16 %v157
    %v223 = vunpack.c.l.bf16 %v158
    %v224 = vunpack.c.l.bf16 %v159
    %v225 = vlaneseq
    %v226 = vshrl.u32 %v225, 7
    %v227 = vsub.s32 0, %v226
    %v228 = vrot.slane %v224, %v227
    %v229 = vmul.f32 %v160, %v228
    %v230 = vmul.f32 %v161, %v228
    %v231 = vmul.f32 %v162, %v228
    %v232 = vmul.f32 %v163, %v228
    %v233 = vmul.f32 %v164, %v228
    %v234 = vmul.f32 %v165, %v228
    %v235 = vmul.f32 %v166, %v228
    %v236 = vmul.f32 %v167, %v228
    %v237 = vmul.f32 %v168, %v228
    %v238 = vmul.f32 %v169, %v228
    %v239 = vmul.f32 %v170, %v228
    %v240 = vmul.f32 %v171, %v228
    %v241 = vmul.f32 %v172, %v228
    %v242 = vmul.f32 %v173, %v228
    %v243 = vmul.f32 %v174, %v228
    %v244 = vmul.f32 %v175, %v228
    %v245 = vmul.f32 %v176, %v228
    %v246 = vmul.f32 %v177, %v228
    %v247 = vmul.f32 %v178, %v228
    %v248 = vmul.f32 %v179, %v228
    %v249 = vmul.f32 %v180, %v228
    %v250 = vmul.f32 %v181, %v228
    %v251 = vmul.f32 %v182, %v228
    %v252 = vmul.f32 %v183, %v228
    %v253 = vmul.f32 %v184, %v228
    %v254 = vmul.f32 %v185, %v228
    %v255 = vmul.f32 %v186, %v228
    %v256 = vmul.f32 %v187, %v228
    %v257 = vmul.f32 %v188, %v228
    %v258 = vmul.f32 %v189, %v228
    %v259 = vmul.f32 %v190, %v228
    %v260 = vmul.f32 %v191, %v228
    %v261 = vmul.f32 %v192, %v228
    %v262 = vmul.f32 %v193, %v228
    %v263 = vmul.f32 %v194, %v228
    %v264 = vmul.f32 %v195, %v228
    %v265 = vmul.f32 %v196, %v228
    %v266 = vmul.f32 %v197, %v228
    %v267 = vmul.f32 %v198, %v228
    %v268 = vmul.f32 %v199, %v228
    %v269 = vmul.f32 %v200, %v228
    %v270 = vmul.f32 %v201, %v228
    %v271 = vmul.f32 %v202, %v228
    %v272 = vmul.f32 %v203, %v228
    %v273 = vmul.f32 %v204, %v228
    %v274 = vmul.f32 %v205, %v228
    %v275 = vmul.f32 %v206, %v228
    %v276 = vmul.f32 %v207, %v228
    %v277 = vmul.f32 %v208, %v228
    %v278 = vmul.f32 %v209, %v228
    %v279 = vmul.f32 %v210, %v228
    %v280 = vmul.f32 %v211, %v228
    %v281 = vmul.f32 %v212, %v228
    %v282 = vmul.f32 %v213, %v228
    %v283 = vmul.f32 %v214, %v228
    %v284 = vmul.f32 %v215, %v228
    %v285 = vmul.f32 %v216, %v228
    %v286 = vmul.f32 %v217, %v228
    %v287 = vmul.f32 %v218, %v228
    %v288 = vmul.f32 %v219, %v228
    %v289 = vmul.f32 %v220, %v228
    %v290 = vmul.f32 %v221, %v228
    %v291 = vmul.f32 %v222, %v228
    %v292 = vmul.f32 %v223, %v228
    %v293 = vadd.f32 %v90, %v229
    %v294 = vadd.f32 %v90, %v230
    %v295 = vadd.f32 %v90, %v231
    %v296 = vadd.f32 %v90, %v232
    %v297 = vadd.f32 %v90, %v233
    %v298 = vadd.f32 %v90, %v234
    %v299 = vadd.f32 %v90, %v235
    %v300 = vadd.f32 %v90, %v236
    %v301 = vadd.f32 %v90, %v237
    %v302 = vadd.f32 %v90, %v238
    %v303 = vadd.f32 %v90, %v239
    %v304 = vadd.f32 %v90, %v240
    %v305 = vadd.f32 %v90, %v241
    %v306 = vadd.f32 %v90, %v242
    %v307 = vadd.f32 %v90, %v243
    %v308 = vadd.f32 %v90, %v244
    %v309 = vadd.f32 %v90, %v245
    %v310 = vadd.f32 %v90, %v246
    %v311 = vadd.f32 %v90, %v247
    %v312 = vadd.f32 %v90, %v248
    %v313 = vadd.f32 %v90, %v249
    %v314 = vadd.f32 %v90, %v250
    %v315 = vadd.f32 %v90, %v251
    %v316 = vadd.f32 %v90, %v252
    %v317 = vadd.f32 %v90, %v253
    %v318 = vadd.f32 %v90, %v254
    %v319 = vadd.f32 %v90, %v255
    %v320 = vadd.f32 %v90, %v256
    %v321 = vadd.f32 %v90, %v257
    %v322 = vadd.f32 %v90, %v258
    %v323 = vadd.f32 %v90, %v259
    %v324 = vadd.f32 %v90, %v260
    %v325 = vadd.f32 %v90, %v261
    %v326 = vadd.f32 %v90, %v262
    %v327 = vadd.f32 %v90, %v263
    %v328 = vadd.f32 %v90, %v264
    %v329 = vadd.f32 %v90, %v265
    %v330 = vadd.f32 %v90, %v266
    %v331 = vadd.f32 %v90, %v267
    %v332 = vadd.f32 %v90, %v268
    %v333 = vadd.f32 %v90, %v269
    %v334 = vadd.f32 %v90, %v270
    %v335 = vadd.f32 %v90, %v271
    %v336 = vadd.f32 %v90, %v272
    %v337 = vadd.f32 %v90, %v273
    %v338 = vadd.f32 %v90, %v274
    %v339 = vadd.f32 %v90, %v275
    %v340 = vadd.f32 %v90, %v276
    %v341 = vadd.f32 %v90, %v277
    %v342 = vadd.f32 %v90, %v278
    %v343 = vadd.f32 %v90, %v279
    %v344 = vadd.f32 %v90, %v280
    %v345 = vadd.f32 %v90, %v281
    %v346 = vadd.f32 %v90, %v282
    %v347 = vadd.f32 %v90, %v283
    %v348 = vadd.f32 %v90, %v284
    %v349 = vadd.f32 %v90, %v285
    %v350 = vadd.f32 %v90, %v286
    %v351 = vadd.f32 %v90, %v287
    %v352 = vadd.f32 %v90, %v288
    %v353 = vadd.f32 %v90, %v289
    %v354 = vadd.f32 %v90, %v290
    %v355 = vadd.f32 %v90, %v291
    %v356 = vadd.f32 %v90, %v292
    %v357 = vld [vmem:[%s94 + $0x8] sm:$0x1]
    %v358 = vld [vmem:[%s94 + $0x14] sm:$0x1]
    %v359 = vld [vmem:[%s94 + $0x20] sm:$0x1]
    %v360 = vld [vmem:[%s94 + $0x2c] sm:$0x1]
    %v361 = vld [vmem:[%s94 + $0x38] sm:$0x1]
    %v362 = vld [vmem:[%s94 + $0x44] sm:$0x1]
    %v363 = vld [vmem:[%s94 + $0x50] sm:$0x1]
    %v364 = vld [vmem:[%s94 + $0x5c] sm:$0x1]
    %v365 = vld [vmem:[%s94 + $0x68] sm:$0x1]
    %v366 = vld [vmem:[%s94 + $0x74] sm:$0x1]
    %v367 = vld [vmem:[%s94 + $0x80] sm:$0x1]
    %v368 = vld [vmem:[%s94 + $0x8c] sm:$0x1]
    %v369 = vld [vmem:[%s94 + $0x98] sm:$0x1]
    %v370 = vld [vmem:[%s94 + $0xa4] sm:$0x1]
    %v371 = vld [vmem:[%s94 + $0xb0] sm:$0x1]
    %v372 = vld [vmem:[%s94 + $0xbc] sm:$0x1]
    %v373 = vld [vmem:[%s94 + $0xe0] sm:$0x1]
    %v374 = vld [vmem:[%s94 + $0xec] sm:$0x1]
    %v375 = vld [vmem:[%s94 + $0xf8] sm:$0x1]
    %v376 = vld [vmem:[%s94 + $0x104] sm:$0x1]
    %v377 = vld [vmem:[%s94 + $0x110] sm:$0x1]
    %v378 = vld [vmem:[%s94 + $0x11c] sm:$0x1]
    %v379 = vld [vmem:[%s94 + $0x128] sm:$0x1]
    %v380 = vld [vmem:[%s94 + $0x134] sm:$0x1]
    %v381 = vld [vmem:[%s94 + $0x140] sm:$0x1]
    %v382 = vld [vmem:[%s94 + $0x14c] sm:$0x1]
    %v383 = vld [vmem:[%s94 + $0x158] sm:$0x1]
    %v384 = vld [vmem:[%s94 + $0x164] sm:$0x1]
    %v385 = vld [vmem:[%s94 + $0x170] sm:$0x1]
    %v386 = vld [vmem:[%s94 + $0x17c] sm:$0x1]
    %v387 = vld [vmem:[%s94 + $0x188] sm:$0x1]
    %v388 = vld [vmem:[%s94 + $0x194] sm:$0x1]
    %s389 = scalar_lea.vmem [#allocation5], 1
    %v390 = vld [vmem:[%s389] sm:$0x1]
    %v391 = vunpack.c.l.bf16 %v357
    %v392 = vunpack.c.l.bf16 %v358
    %v393 = vunpack.c.l.bf16 %v359
    %v394 = vunpack.c.l.bf16 %v360
    %v395 = vunpack.c.l.bf16 %v361
    %v396 = vunpack.c.l.bf16 %v362
    %v397 = vunpack.c.l.bf16 %v363
    %v398 = vunpack.c.l.bf16 %v364
    %v399 = vunpack.c.l.bf16 %v365
    %v400 = vunpack.c.l.bf16 %v366
    %v401 = vunpack.c.l.bf16 %v367
    %v402 = vunpack.c.l.bf16 %v368
    %v403 = vunpack.c.l.bf16 %v369
    %v404 = vunpack.c.l.bf16 %v370
    %v405 = vunpack.c.l.bf16 %v371
    %v406 = vunpack.c.l.bf16 %v372
    %v407 = vunpack.c.l.bf16 %v373
    %v408 = vunpack.c.l.bf16 %v374
    %v409 = vunpack.c.l.bf16 %v375
    %v410 = vunpack.c.l.bf16 %v376
    %v411 = vunpack.c.l.bf16 %v377
    %v412 = vunpack.c.l.bf16 %v378
    %v413 = vunpack.c.l.bf16 %v379
    %v414 = vunpack.c.l.bf16 %v380
    %v415 = vunpack.c.l.bf16 %v381
    %v416 = vunpack.c.l.bf16 %v382
    %v417 = vunpack.c.l.bf16 %v383
    %v418 = vunpack.c.l.bf16 %v384
    %v419 = vunpack.c.l.bf16 %v385
    %v420 = vunpack.c.l.bf16 %v386
    %v421 = vunpack.c.l.bf16 %v387
    %v422 = vunpack.c.l.bf16 %v388
    %v423 = vunpack.c.l.bf16 %v390
    %v424 = vlaneseq
    %v425 = vshrl.u32 %v424, 7
    %v426 = vsub.s32 0, %v425
    %v427 = vrot.slane %v423, %v426
    %v428 = vmul.f32 %v160, %v427
    %v429 = vmul.f32 %v161, %v427
    %v430 = vmul.f32 %v391, %v427
    %v431 = vmul.f32 %v162, %v427
    %v432 = vmul.f32 %v163, %v427
    %v433 = vmul.f32 %v392, %v427
    %v434 = vmul.f32 %v164, %v427
    %v435 = vmul.f32 %v165, %v427
    %v436 = vmul.f32 %v393, %v427
    %v437 = vmul.f32 %v166, %v427
    %v438 = vmul.f32 %v167, %v427
    %v439 = vmul.f32 %v394, %v427
    %v440 = vmul.f32 %v168, %v427
    %v441 = vmul.f32 %v169, %v427
    %v442 = vmul.f32 %v395, %v427
    %v443 = vmul.f32 %v170, %v427
    %v444 = vmul.f32 %v171, %v427
    %v445 = vmul.f32 %v396, %v427
    %v446 = vmul.f32 %v172, %v427
    %v447 = vmul.f32 %v173, %v427
    %v448 = vmul.f32 %v397, %v427
    %v449 = vmul.f32 %v174, %v427
    %v450 = vmul.f32 %v175, %v427
    %v451 = vmul.f32 %v398, %v427
    %v452 = vmul.f32 %v176, %v427
    %v453 = vmul.f32 %v177, %v427
    %v454 = vmul.f32 %v399, %v427
    %v455 = vmul.f32 %v178, %v427
    %v456 = vmul.f32 %v179, %v427
    %v457 = vmul.f32 %v400, %v427
    %v458 = vmul.f32 %v180, %v427
    %v459 = vmul.f32 %v181, %v427
    %v460 = vmul.f32 %v401, %v427
    %v461 = vmul.f32 %v182, %v427
    %v462 = vmul.f32 %v183, %v427
    %v463 = vmul.f32 %v402, %v427
    %v464 = vmul.f32 %v184, %v427
    %v465 = vmul.f32 %v185, %v427
    %v466 = vmul.f32 %v403, %v427
    %v467 = vmul.f32 %v186, %v427
    %v468 = vmul.f32 %v187, %v427
    %v469 = vmul.f32 %v404, %v427
    %v470 = vmul.f32 %v188, %v427
    %v471 = vmul.f32 %v189, %v427
    %v472 = vmul.f32 %v405, %v427
    %v473 = vmul.f32 %v190, %v427
    %v474 = vmul.f32 %v191, %v427
    %v475 = vmul.f32 %v406, %v427
    %v476 = vmul.f32 %v192, %v427
    %v477 = vmul.f32 %v193, %v427
    %v478 = vmul.f32 %v407, %v427
    %v479 = vmul.f32 %v194, %v427
    %v480 = vmul.f32 %v195, %v427
    %v481 = vmul.f32 %v408, %v427
    %v482 = vmul.f32 %v196, %v427
    %v483 = vmul.f32 %v197, %v427
    %v484 = vmul.f32 %v409, %v427
    %v485 = vmul.f32 %v198, %v427
    %v486 = vmul.f32 %v199, %v427
    %v487 = vmul.f32 %v410, %v427
    %v488 = vmul.f32 %v200, %v427
    %v489 = vmul.f32 %v201, %v427
    %v490 = vmul.f32 %v411, %v427
    %v491 = vmul.f32 %v202, %v427
    %v492 = vmul.f32 %v203, %v427
    %v493 = vmul.f32 %v412, %v427
    %v494 = vmul.f32 %v204, %v427
    %v495 = vmul.f32 %v205, %v427
    %v496 = vmul.f32 %v413, %v427
    %v497 = vmul.f32 %v206, %v427
    %v498 = vmul.f32 %v207, %v427
    %v499 = vmul.f32 %v414, %v427
    %v500 = vmul.f32 %v208, %v427
    %v501 = vmul.f32 %v209, %v427
    %v502 = vmul.f32 %v415, %v427
    %v503 = vmul.f32 %v210, %v427
    %v504 = vmul.f32 %v211, %v427
    %v505 = vmul.f32 %v416, %v427
    %v506 = vmul.f32 %v212, %v427
    %v507 = vmul.f32 %v213, %v427
    %v508 = vmul.f32 %v417, %v427
    %v509 = vmul.f32 %v214, %v427
    %v510 = vmul.f32 %v215, %v427
    %v511 = vmul.f32 %v418, %v427
    %v512 = vmul.f32 %v216, %v427
    %v513 = vmul.f32 %v217, %v427
    %v514 = vmul.f32 %v419, %v427
    %v515 = vmul.f32 %v218, %v427
    %v516 = vmul.f32 %v219, %v427
    %v517 = vmul.f32 %v420, %v427
    %v518 = vmul.f32 %v220, %v427
    %v519 = vmul.f32 %v221, %v427
    %v520 = vmul.f32 %v421, %v427
    %v521 = vmul.f32 %v222, %v427
    %v522 = vmul.f32 %v223, %v427
    %v523 = vmul.f32 %v422, %v427
    %vm620 = vcmask 1046528
    %v621 = vrot.slane %v428, 1
    %v622 = vrot.slane %v429, 1
    %v623 = vsel %vm620, %v621, %v622
    %v624 = vrot.slane %v430, 1
    %v625 = vsel %vm620, %v622, %v624
    %v626 = vrot.slane %v431, 1
    %v627 = vrot.slane %v432, 1
    %v628 = vsel %vm620, %v626, %v627
    %v629 = vrot.slane %v433, 1
    %v630 = vsel %vm620, %v627, %v629
    %v631 = vrot.slane %v434, 1
    %v632 = vrot.slane %v435, 1
    %v633 = vsel %vm620, %v631, %v632
    %v634 = vrot.slane %v436, 1
    %v635 = vsel %vm620, %v632, %v634
    %v636 = vrot.slane %v437, 1
    %v637 = vrot.slane %v438, 1
    %v638 = vsel %vm620, %v636, %v637
    %v639 = vrot.slane %v439, 1
    %v640 = vsel %vm620, %v637, %v639
    %v641 = vrot.slane %v440, 1
    %v642 = vrot.slane %v441, 1
    %v643 = vsel %vm620, %v641, %v642
    %v644 = vrot.slane %v442, 1
    %v645 = vsel %vm620, %v642, %v644
    %v646 = vrot.slane %v443, 1
    %v647 = vrot.slane %v444, 1
    %v648 = vsel %vm620, %v646, %v647
    %v649 = vrot.slane %v445, 1
    %v650 = vsel %vm620, %v647, %v649
    %v651 = vrot.slane %v446, 1
    %v652 = vrot.slane %v447, 1
    %v653 = vsel %vm620, %v651, %v652
    %v654 = vrot.slane %v448, 1
    %v655 = vsel %vm620, %v652, %v654
    %v656 = vrot.slane %v449, 1
    %v657 = vrot.slane %v450, 1
    %v658 = vsel %vm620, %v656, %v657
    %v659 = vrot.slane %v451, 1
    %v660 = vsel %vm620, %v657, %v659
    %v661 = vrot.slane %v452, 1
    %v662 = vrot.slane %v453, 1
    %v663 = vsel %vm620, %v661, %v662
    %v664 = vrot.slane %v454, 1
    %v665 = vsel %vm620, %v662, %v664
    %v666 = vrot.slane %v455, 1
    %v667 = vrot.slane %v456, 1
    %v668 = vsel %vm620, %v666, %v667
    %v669 = vrot.slane %v457, 1
    %v670 = vsel %vm620, %v667, %v669
    %v671 = vrot.slane %v458, 1
    %v672 = vrot.slane %v459, 1
    %v673 = vsel %vm620, %v671, %v672
    %v674 = vrot.slane %v460, 1
    %v675 = vsel %vm620, %v672, %v674
    %v676 = vrot.slane %v461, 1
    %v677 = vrot.slane %v462, 1
    %v678 = vsel %vm620, %v676, %v677
    %v679 = vrot.slane %v463, 1
    %v680 = vsel %vm620, %v677, %v679
    %v681 = vrot.slane %v464, 1
    %v682 = vrot.slane %v465, 1
    %v683 = vsel %vm620, %v681, %v682
    %v684 = vrot.slane %v466, 1
    %v685 = vsel %vm620, %v682, %v684
    %v686 = vrot.slane %v467, 1
    %v687 = vrot.slane %v468, 1
    %v688 = vsel %vm620, %v686, %v687
    %v689 = vrot.slane %v469, 1
    %v690 = vsel %vm620, %v687, %v689
    %v691 = vrot.slane %v470, 1
    %v692 = vrot.slane %v471, 1
    %v693 = vsel %vm620, %v691, %v692
    %v694 = vrot.slane %v472, 1
    %v695 = vsel %vm620, %v692, %v694
    %v696 = vrot.slane %v473, 1
    %v697 = vrot.slane %v474, 1
    %v698 = vsel %vm620, %v696, %v697
    %v699 = vrot.slane %v475, 1
    %v700 = vsel %vm620, %v697, %v699
    %v701 = vrot.slane %v476, 1
    %v702 = vrot.slane %v477, 1
    %v703 = vsel %vm620, %v701, %v702
    %v704 = vrot.slane %v478, 1
    %v705 = vsel %vm620, %v702, %v704
    %v706 = vrot.slane %v479, 1
    %v707 = vrot.slane %v480, 1
    %v708 = vsel %vm620, %v706, %v707
    %v709 = vrot.slane %v481, 1
    %v710 = vsel %vm620, %v707, %v709
    %v711 = vrot.slane %v482, 1
    %v712 = vrot.slane %v483, 1
    %v713 = vsel %vm620, %v711, %v712
    %v714 = vrot.slane %v484, 1
    %v715 = vsel %vm620, %v712, %v714
    %v716 = vrot.slane %v485, 1
    %v717 = vrot.slane %v486, 1
    %v718 = vsel %vm620, %v716, %v717
    %v719 = vrot.slane %v487, 1
    %v720 = vsel %vm620, %v717, %v719
    %v721 = vrot.slane %v488, 1
    %v722 = vrot.slane %v489, 1
    %v723 = vsel %vm620, %v721, %v722
    %v724 = vrot.slane %v490, 1
    %v725 = vsel %vm620, %v722, %v724
    %v726 = vrot.slane %v491, 1
    %v727 = vrot.slane %v492, 1
    %v728 = vsel %vm620, %v726, %v727
    %v729 = vrot.slane %v493, 1
    %v730 = vsel %vm620, %v727, %v729
    %v731 = vrot.slane %v494, 1
    %v732 = vrot.slane %v495, 1
    %v733 = vsel %vm620, %v731, %v732
    %v734 = vrot.slane %v496, 1
    %v735 = vsel %vm620, %v732, %v734
    %v736 = vrot.slane %v497, 1
    %v737 = vrot.slane %v498, 1
    %v738 = vsel %vm620, %v736, %v737
    %v739 = vrot.slane %v499, 1
    %v740 = vsel %vm620, %v737, %v739
    %v741 = vrot.slane %v500, 1
    %v742 = vrot.slane %v501, 1
    %v743 = vsel %vm620, %v741, %v742
    %v744 = vrot.slane %v502, 1
    %v745 = vsel %vm620, %v742, %v744
    %v746 = vrot.slane %v503, 1
    %v747 = vrot.slane %v504, 1
    %v748 = vsel %vm620, %v746, %v747
    %v749 = vrot.slane %v505, 1
    %v750 = vsel %vm620, %v747, %v749
    %v751 = vrot.slane %v506, 1
    %v752 = vrot.slane %v507, 1
    %v753 = vsel %vm620, %v751, %v752
    %v754 = vrot.slane %v508, 1
    %v755 = vsel %vm620, %v752, %v754
    %v756 = vrot.slane %v509, 1
    %v757 = vrot.slane %v510, 1
    %v758 = vsel %vm620, %v756, %v757
    %v759 = vrot.slane %v511, 1
    %v760 = vsel %vm620, %v757, %v759
    %v761 = vrot.slane %v512, 1
    %v762 = vrot.slane %v513, 1
    %v763 = vsel %vm620, %v761, %v762
    %v764 = vrot.slane %v514, 1
    %v765 = vsel %vm620, %v762, %v764
    %v766 = vrot.slane %v515, 1
    %v767 = vrot.slane %v516, 1
    %v768 = vsel %vm620, %v766, %v767
    %v769 = vrot.slane %v517, 1
    %v770 = vsel %vm620, %v767, %v769
    %v771 = vrot.slane %v518, 1
    %v772 = vrot.slane %v519, 1
    %v773 = vsel %vm620, %v771, %v772
    %v774 = vrot.slane %v520, 1
    %v775 = vsel %vm620, %v772, %v774
    %v776 = vrot.slane %v521, 1
    %v777 = vrot.slane %v522, 1
    %v778 = vsel %vm620, %v776, %v777
    %v779 = vrot.slane %v523, 1
    %v780 = vsel %vm620, %v777, %v779
    %v845 = vadd.f32 %v293, %v623
    %v846 = vadd.f32 %v294, %v625
    %v847 = vadd.f32 %v295, %v628
    %v848 = vadd.f32 %v296, %v630
    %v849 = vadd.f32 %v297, %v633
    %v850 = vadd.f32 %v298, %v635
    %v851 = vadd.f32 %v299, %v638
    %v852 = vadd.f32 %v300, %v640
    %v853 = vadd.f32 %v301, %v643
    %v854 = vadd.f32 %v302, %v645
    %v855 = vadd.f32 %v303, %v648
    %v856 = vadd.f32 %v304, %v650
    %v857 = vadd.f32 %v305, %v653
    %v858 = vadd.f32 %v306, %v655
    %v859 = vadd.f32 %v307, %v658
    %v860 = vadd.f32 %v308, %v660
    %v861 = vadd.f32 %v309, %v663
    %v862 = vadd.f32 %v310, %v665
    %v863 = vadd.f32 %v311, %v668
    %v864 = vadd.f32 %v312, %v670
    %v865 = vadd.f32 %v313, %v673
    %v866 = vadd.f32 %v314, %v675
    %v867 = vadd.f32 %v315, %v678
    %v868 = vadd.f32 %v316, %v680
    %v869 = vadd.f32 %v317, %v683
    %v870 = vadd.f32 %v318, %v685
    %v871 = vadd.f32 %v319, %v688
    %v872 = vadd.f32 %v320, %v690
    %v873 = vadd.f32 %v321, %v693
    %v874 = vadd.f32 %v322, %v695
    %v875 = vadd.f32 %v323, %v698
    %v876 = vadd.f32 %v324, %v700
    %v877 = vadd.f32 %v325, %v703
    %v878 = vadd.f32 %v326, %v705
    %v879 = vadd.f32 %v327, %v708
    %v880 = vadd.f32 %v328, %v710
    %v881 = vadd.f32 %v329, %v713
    %v882 = vadd.f32 %v330, %v715
    %v883 = vadd.f32 %v331, %v718
    %v884 = vadd.f32 %v332, %v720
    %v885 = vadd.f32 %v333, %v723
    %v886 = vadd.f32 %v334, %v725
    %v887 = vadd.f32 %v335, %v728
    %v888 = vadd.f32 %v336, %v730
    %v889 = vadd.f32 %v337, %v733
    %v890 = vadd.f32 %v338, %v735
    %v891 = vadd.f32 %v339, %v738
    %v892 = vadd.f32 %v340, %v740
    %v893 = vadd.f32 %v341, %v743
    %v894 = vadd.f32 %v342, %v745
    %v895 = vadd.f32 %v343, %v748
    %v896 = vadd.f32 %v344, %v750
    %v897 = vadd.f32 %v345, %v753
    %v898 = vadd.f32 %v346, %v755
    %v899 = vadd.f32 %v347, %v758
    %v900 = vadd.f32 %v348, %v760
    %v901 = vadd.f32 %v349, %v763
    %v902 = vadd.f32 %v350, %v765
    %v903 = vadd.f32 %v351, %v768
    %v904 = vadd.f32 %v352, %v770
    %v905 = vadd.f32 %v353, %v773
    %v906 = vadd.f32 %v354, %v775
    %v907 = vadd.f32 %v355, %v778
    %v908 = vadd.f32 %v356, %v780
    %v909 = vld [vmem:[%s94] sm:$0xe]
    %v910 = vld [vmem:[%s94 + $0xc] sm:$0xe]
    %v911 = vld [vmem:[%s94 + $0x18] sm:$0xe]
    %v912 = vld [vmem:[%s94 + $0x24] sm:$0xe]
    %v913 = vld [vmem:[%s94 + $0x30] sm:$0xe]
    %v914 = vld [vmem:[%s94 + $0x3c] sm:$0xe]
    %v915 = vld [vmem:[%s94 + $0x48] sm:$0xe]
    %v916 = vld [vmem:[%s94 + $0x54] sm:$0xe]
    %v917 = vld [vmem:[%s94 + $0x60] sm:$0xe]
    %v918 = vld [vmem:[%s94 + $0x6c] sm:$0xe]
    %v919 = vld [vmem:[%s94 + $0x78] sm:$0xe]
    %v920 = vld [vmem:[%s94 + $0x84] sm:$0xe]
    %v921 = vld [vmem:[%s94 + $0x90] sm:$0xe]
    %v922 = vld [vmem:[%s94 + $0x9c] sm:$0xe]
    %v923 = vld [vmem:[%s94 + $0xa8] sm:$0xe]
    %v924 = vld [vmem:[%s94 + $0xb4] sm:$0xe]
    %v925 = vld [vmem:[%s94 + $0xd8] sm:$0xe]
    %v926 = vld [vmem:[%s94 + $0xe4] sm:$0xe]
    %v927 = vld [vmem:[%s94 + $0xf0] sm:$0xe]
    %v928 = vld [vmem:[%s94 + $0xfc] sm:$0xe]
    %v929 = vld [vmem:[%s94 + $0x108] sm:$0xe]
    %v930 = vld [vmem:[%s94 + $0x114] sm:$0xe]
    %v931 = vld [vmem:[%s94 + $0x120] sm:$0xe]
    %v932 = vld [vmem:[%s94 + $0x12c] sm:$0xe]
    %v933 = vld [vmem:[%s94 + $0x138] sm:$0xe]
    %v934 = vld [vmem:[%s94 + $0x144] sm:$0xe]
    %v935 = vld [vmem:[%s94 + $0x150] sm:$0xe]
    %v936 = vld [vmem:[%s94 + $0x15c] sm:$0xe]
    %v937 = vld [vmem:[%s94 + $0x168] sm:$0xe]
    %v938 = vld [vmem:[%s94 + $0x174] sm:$0xe]
    %v939 = vld [vmem:[%s94 + $0x180] sm:$0xe]
    %v940 = vld [vmem:[%s94 + $0x18c] sm:$0xe]
    %s941 = scalar_lea.vmem [#allocation5], 2
    %v942 = vld [vmem:[%s941] sm:$0x1]
    %v943 = vunpack.c.l.bf16 %v909
    %v944 = vunpack.c.l.bf16 %v910
    %v945 = vunpack.c.l.bf16 %v911
    %v946 = vunpack.c.l.bf16 %v912
    %v947 = vunpack.c.l.bf16 %v913
    %v948 = vunpack.c.l.bf16 %v914
    %v949 = vunpack.c.l.bf16 %v915
    %v950 = vunpack.c.l.bf16 %v916
    %v951 = vunpack.c.l.bf16 %v917
    %v952 = vunpack.c.l.bf16 %v918
    %v953 = vunpack.c.l.bf16 %v919
    %v954 = vunpack.c.l.bf16 %v920
    %v955 = vunpack.c.l.bf16 %v921
    %v956 = vunpack.c.l.bf16 %v922
    %v957 = vunpack.c.l.bf16 %v923
    %v958 = vunpack.c.l.bf16 %v924
    %v959 = vunpack.c.l.bf16 %v925
    %v960 = vunpack.c.l.bf16 %v926
    %v961 = vunpack.c.l.bf16 %v927
    %v962 = vunpack.c.l.bf16 %v928
    %v963 = vunpack.c.l.bf16 %v929
    %v964 = vunpack.c.l.bf16 %v930
    %v965 = vunpack.c.l.bf16 %v931
    %v966 = vunpack.c.l.bf16 %v932
    %v967 = vunpack.c.l.bf16 %v933
    %v968 = vunpack.c.l.bf16 %v934
    %v969 = vunpack.c.l.bf16 %v935
    %v970 = vunpack.c.l.bf16 %v936
    %v971 = vunpack.c.l.bf16 %v937
    %v972 = vunpack.c.l.bf16 %v938
    %v973 = vunpack.c.l.bf16 %v939
    %v974 = vunpack.c.l.bf16 %v940
    %v975 = vunpack.c.l.bf16 %v942
    %v976 = vlaneseq
    %v977 = vshrl.u32 %v976, 7
    %v978 = vsub.s32 0, %v977
    %v979 = vrot.slane %v975, %v978
    %v980 = vmul.f32 %v943, %v979
    %v981 = vmul.f32 %v161, %v979
    %v982 = vmul.f32 %v391, %v979
    %v983 = vmul.f32 %v944, %v979
    %v984 = vmul.f32 %v163, %v979
    %v985 = vmul.f32 %v392, %v979
    %v986 = vmul.f32 %v945, %v979
    %v987 = vmul.f32 %v165, %v979
    %v988 = vmul.f32 %v393, %v979
    %v989 = vmul.f32 %v946, %v979
    %v990 = vmul.f32 %v167, %v979
    %v991 = vmul.f32 %v394, %v979
    %v992 = vmul.f32 %v947, %v979
    %v993 = vmul.f32 %v169, %v979
    %v994 = vmul.f32 %v395, %v979
    %v995 = vmul.f32 %v948, %v979
    %v996 = vmul.f32 %v171, %v979
    %v997 = vmul.f32 %v396, %v979
    %v998 = vmul.f32 %v949, %v979
    %v999 = vmul.f32 %v173, %v979
    %v1000 = vmul.f32 %v397, %v979
    %v1001 = vmul.f32 %v950, %v979
    %v1002 = vmul.f32 %v175, %v979
    %v1003 = vmul.f32 %v398, %v979
    %v1004 = vmul.f32 %v951, %v979
    %v1005 = vmul.f32 %v177, %v979
    %v1006 = vmul.f32 %v399, %v979
    %v1007 = vmul.f32 %v952, %v979
    %v1008 = vmul.f32 %v179, %v979
    %v1009 = vmul.f32 %v400, %v979
    %v1010 = vmul.f32 %v953, %v979
    %v1011 = vmul.f32 %v181, %v979
    %v1012 = vmul.f32 %v401, %v979
    %v1013 = vmul.f32 %v954, %v979
    %v1014 = vmul.f32 %v183, %v979
    %v1015 = vmul.f32 %v402, %v979
    %v1016 = vmul.f32 %v955, %v979
    %v1017 = vmul.f32 %v185, %v979
    %v1018 = vmul.f32 %v403, %v979
    %v1019 = vmul.f32 %v956, %v979
    %v1020 = vmul.f32 %v187, %v979
    %v1021 = vmul.f32 %v404, %v979
    %v1022 = vmul.f32 %v957, %v979
    %v1023 = vmul.f32 %v189, %v979
    %v1024 = vmul.f32 %v405, %v979
    %v1025 = vmul.f32 %v958, %v979
    %v1026 = vmul.f32 %v191, %v979
    %v1027 = vmul.f32 %v406, %v979
    %v1028 = vmul.f32 %v959, %v979
    %v1029 = vmul.f32 %v193, %v979
    %v1030 = vmul.f32 %v407, %v979
    %v1031 = vmul.f32 %v960, %v979
    %v1032 = vmul.f32 %v195, %v979
    %v1033 = vmul.f32 %v408, %v979
    %v1034 = vmul.f32 %v961, %v979
    %v1035 = vmul.f32 %v197, %v979
    %v1036 = vmul.f32 %v409, %v979
    %v1037 = vmul.f32 %v962, %v979
    %v1038 = vmul.f32 %v199, %v979
    %v1039 = vmul.f32 %v410, %v979
    %v1040 = vmul.f32 %v963, %v979
    %v1041 = vmul.f32 %v201, %v979
    %v1042 = vmul.f32 %v411, %v979
    %v1043 = vmul.f32 %v964, %v979
    %v1044 = vmul.f32 %v203, %v979
    %v1045 = vmul.f32 %v412, %v979
    %v1046 = vmul.f32 %v965, %v979
    %v1047 = vmul.f32 %v205, %v979
    %v1048 = vmul.f32 %v413, %v979
    %v1049 = vmul.f32 %v966, %v979
    %v1050 = vmul.f32 %v207, %v979
    %v1051 = vmul.f32 %v414, %v979
    %v1052 = vmul.f32 %v967, %v979
    %v1053 = vmul.f32 %v209, %v979
    %v1054 = vmul.f32 %v415, %v979
    %v1055 = vmul.f32 %v968, %v979
    %v1056 = vmul.f32 %v211, %v979
    %v1057 = vmul.f32 %v416, %v979
    %v1058 = vmul.f32 %v969, %v979
    %v1059 = vmul.f32 %v213, %v979
    %v1060 = vmul.f32 %v417, %v979
    %v1061 = vmul.f32 %v970, %v979
    %v1062 = vmul.f32 %v215, %v979
    %v1063 = vmul.f32 %v418, %v979
    %v1064 = vmul.f32 %v971, %v979
    %v1065 = vmul.f32 %v217, %v979
    %v1066 = vmul.f32 %v419, %v979
    %v1067 = vmul.f32 %v972, %v979
    %v1068 = vmul.f32 %v219, %v979
    %v1069 = vmul.f32 %v420, %v979
    %v1070 = vmul.f32 %v973, %v979
    %v1071 = vmul.f32 %v221, %v979
    %v1072 = vmul.f32 %v421, %v979
    %v1073 = vmul.f32 %v974, %v979
    %v1074 = vmul.f32 %v223, %v979
    %v1075 = vmul.f32 %v422, %v979
    %vm1172 = vcmask 1045504
    %v1173 = vrot.slane %v980, 2
    %v1174 = vrot.slane %v981, 2
    %v1175 = vsel %vm1172, %v1173, %v1174
    %v1176 = vrot.slane %v982, 2
    %v1177 = vsel %vm1172, %v1174, %v1176
    %v1178 = vrot.slane %v983, 2
    %v1179 = vrot.slane %v984, 2
    %v1180 = vsel %vm1172, %v1178, %v1179
    %v1181 = vrot.slane %v985, 2
    %v1182 = vsel %vm1172, %v1179, %v1181
    %v1183 = vrot.slane %v986, 2
    %v1184 = vrot.slane %v987, 2
    %v1185 = vsel %vm1172, %v1183, %v1184
    %v1186 = vrot.slane %v988, 2
    %v1187 = vsel %vm1172, %v1184, %v1186
    %v1188 = vrot.slane %v989, 2
    %v1189 = vrot.slane %v990, 2
    %v1190 = vsel %vm1172, %v1188, %v1189
    %v1191 = vrot.slane %v991, 2
    %v1192 = vsel %vm1172, %v1189, %v1191
    %v1193 = vrot.slane %v992, 2
    %v1194 = vrot.slane %v993, 2
    %v1195 = vsel %vm1172, %v1193, %v1194
    %v1196 = vrot.slane %v994, 2
    %v1197 = vsel %vm1172, %v1194, %v1196
    %v1198 = vrot.slane %v995, 2
    %v1199 = vrot.slane %v996, 2
    %v1200 = vsel %vm1172, %v1198, %v1199
    %v1201 = vrot.slane %v997, 2
    %v1202 = vsel %vm1172, %v1199, %v1201
    %v1203 = vrot.slane %v998, 2
    %v1204 = vrot.slane %v999, 2
    %v1205 = vsel %vm1172, %v1203, %v1204
    %v1206 = vrot.slane %v1000, 2
    %v1207 = vsel %vm1172, %v1204, %v1206
    %v1208 = vrot.slane %v1001, 2
    %v1209 = vrot.slane %v1002, 2
    %v1210 = vsel %vm1172, %v1208, %v1209
    %v1211 = vrot.slane %v1003, 2
    %v1212 = vsel %vm1172, %v1209, %v1211
    %v1213 = vrot.slane %v1004, 2
    %v1214 = vrot.slane %v1005, 2
    %v1215 = vsel %vm1172, %v1213, %v1214
    %v1216 = vrot.slane %v1006, 2
    %v1217 = vsel %vm1172, %v1214, %v1216
    %v1218 = vrot.slane %v1007, 2
    %v1219 = vrot.slane %v1008, 2
    %v1220 = vsel %vm1172, %v1218, %v1219
    %v1221 = vrot.slane %v1009, 2
    %v1222 = vsel %vm1172, %v1219, %v1221
    %v1223 = vrot.slane %v1010, 2
    %v1224 = vrot.slane %v1011, 2
    %v1225 = vsel %vm1172, %v1223, %v1224
    %v1226 = vrot.slane %v1012, 2
    %v1227 = vsel %vm1172, %v1224, %v1226
    %v1228 = vrot.slane %v1013, 2
    %v1229 = vrot.slane %v1014, 2
    %v1230 = vsel %vm1172, %v1228, %v1229
    %v1231 = vrot.slane %v1015, 2
    %v1232 = vsel %vm1172, %v1229, %v1231
    %v1233 = vrot.slane %v1016, 2
    %v1234 = vrot.slane %v1017, 2
    %v1235 = vsel %vm1172, %v1233, %v1234
    %v1236 = vrot.slane %v1018, 2
    %v1237 = vsel %vm1172, %v1234, %v1236
    %v1238 = vrot.slane %v1019, 2
    %v1239 = vrot.slane %v1020, 2
    %v1240 = vsel %vm1172, %v1238, %v1239
    %v1241 = vrot.slane %v1021, 2
    %v1242 = vsel %vm1172, %v1239, %v1241
    %v1243 = vrot.slane %v1022, 2
    %v1244 = vrot.slane %v1023, 2
    %v1245 = vsel %vm1172, %v1243, %v1244
    %v1246 = vrot.slane %v1024, 2
    %v1247 = vsel %vm1172, %v1244, %v1246
    %v1248 = vrot.slane %v1025, 2
    %v1249 = vrot.slane %v1026, 2
    %v1250 = vsel %vm1172, %v1248, %v1249
    %v1251 = vrot.slane %v1027, 2
    %v1252 = vsel %vm1172, %v1249, %v1251
    %v1253 = vrot.slane %v1028, 2
    %v1254 = vrot.slane %v1029, 2
    %v1255 = vsel %vm1172, %v1253, %v1254
    %v1256 = vrot.slane %v1030, 2
    %v1257 = vsel %vm1172, %v1254, %v1256
    %v1258 = vrot.slane %v1031, 2
    %v1259 = vrot.slane %v1032, 2
    %v1260 = vsel %vm1172, %v1258, %v1259
    %v1261 = vrot.slane %v1033, 2
    %v1262 = vsel %vm1172, %v1259, %v1261
    %v1263 = vrot.slane %v1034, 2
    %v1264 = vrot.slane %v1035, 2
    %v1265 = vsel %vm1172, %v1263, %v1264
    %v1266 = vrot.slane %v1036, 2
    %v1267 = vsel %vm1172, %v1264, %v1266
    %v1268 = vrot.slane %v1037, 2
    %v1269 = vrot.slane %v1038, 2
    %v1270 = vsel %vm1172, %v1268, %v1269
    %v1271 = vrot.slane %v1039, 2
    %v1272 = vsel %vm1172, %v1269, %v1271
    %v1273 = vrot.slane %v1040, 2
    %v1274 = vrot.slane %v1041, 2
    %v1275 = vsel %vm1172, %v1273, %v1274
    %v1276 = vrot.slane %v1042, 2
    %v1277 = vsel %vm1172, %v1274, %v1276
    %v1278 = vrot.slane %v1043, 2
    %v1279 = vrot.slane %v1044, 2
    %v1280 = vsel %vm1172, %v1278, %v1279
    %v1281 = vrot.slane %v1045, 2
    %v1282 = vsel %vm1172, %v1279, %v1281
    %v1283 = vrot.slane %v1046, 2
    %v1284 = vrot.slane %v1047, 2
    %v1285 = vsel %vm1172, %v1283, %v1284
    %v1286 = vrot.slane %v1048, 2
    %v1287 = vsel %vm1172, %v1284, %v1286
    %v1288 = vrot.slane %v1049, 2
    %v1289 = vrot.slane %v1050, 2
    %v1290 = vsel %vm1172, %v1288, %v1289
    %v1291 = vrot.slane %v1051, 2
    %v1292 = vsel %vm1172, %v1289, %v1291
    %v1293 = vrot.slane %v1052, 2
    %v1294 = vrot.slane %v1053, 2
    %v1295 = vsel %vm1172, %v1293, %v1294
    %v1296 = vrot.slane %v1054, 2
    %v1297 = vsel %vm1172, %v1294, %v1296
    %v1298 = vrot.slane %v1055, 2
    %v1299 = vrot.slane %v1056, 2
    %v1300 = vsel %vm1172, %v1298, %v1299
    %v1301 = vrot.slane %v1057, 2
    %v1302 = vsel %vm1172, %v1299, %v1301
    %v1303 = vrot.slane %v1058, 2
    %v1304 = vrot.slane %v1059, 2
    %v1305 = vsel %vm1172, %v1303, %v1304
    %v1306 = vrot.slane %v1060, 2
    %v1307 = vsel %vm1172, %v1304, %v1306
    %v1308 = vrot.slane %v1061, 2
    %v1309 = vrot.slane %v1062, 2
    %v1310 = vsel %vm1172, %v1308, %v1309
    %v1311 = vrot.slane %v1063, 2
    %v1312 = vsel %vm1172, %v1309, %v1311
    %v1313 = vrot.slane %v1064, 2
    %v1314 = vrot.slane %v1065, 2
    %v1315 = vsel %vm1172, %v1313, %v1314
    %v1316 = vrot.slane %v1066, 2
    %v1317 = vsel %vm1172, %v1314, %v1316
    %v1318 = vrot.slane %v1067, 2
    %v1319 = vrot.slane %v1068, 2
    %v1320 = vsel %vm1172, %v1318, %v1319
    %v1321 = vrot.slane %v1069, 2
    %v1322 = vsel %vm1172, %v1319, %v1321
    %v1323 = vrot.slane %v1070, 2
    %v1324 = vrot.slane %v1071, 2
    %v1325 = vsel %vm1172, %v1323, %v1324
    %v1326 = vrot.slane %v1072, 2
    %v1327 = vsel %vm1172, %v1324, %v1326
    %v1328 = vrot.slane %v1073, 2
    %v1329 = vrot.slane %v1074, 2
    %v1330 = vsel %vm1172, %v1328, %v1329
    %v1331 = vrot.slane %v1075, 2
    %v1332 = vsel %vm1172, %v1329, %v1331
    %v1397 = vadd.f32 %v845, %v1175
    %v1398 = vadd.f32 %v846, %v1177
    %v1399 = vadd.f32 %v847, %v1180
    %v1400 = vadd.f32 %v848, %v1182
    %v1401 = vadd.f32 %v849, %v1185
    %v1402 = vadd.f32 %v850, %v1187
    %v1403 = vadd.f32 %v851, %v1190
    %v1404 = vadd.f32 %v852, %v1192
    %v1405 = vadd.f32 %v853, %v1195
    %v1406 = vadd.f32 %v854, %v1197
    %v1407 = vadd.f32 %v855, %v1200
    %v1408 = vadd.f32 %v856, %v1202
    %v1409 = vadd.f32 %v857, %v1205
    %v1410 = vadd.f32 %v858, %v1207
    %v1411 = vadd.f32 %v859, %v1210
    %v1412 = vadd.f32 %v860, %v1212
    %v1413 = vadd.f32 %v861, %v1215
    %v1414 = vadd.f32 %v862, %v1217
    %v1415 = vadd.f32 %v863, %v1220
    %v1416 = vadd.f32 %v864, %v1222
    %v1417 = vadd.f32 %v865, %v1225
    %v1418 = vadd.f32 %v866, %v1227
    %v1419 = vadd.f32 %v867, %v1230
    %v1420 = vadd.f32 %v868, %v1232
    %v1421 = vadd.f32 %v869, %v1235
    %v1422 = vadd.f32 %v870, %v1237
    %v1423 = vadd.f32 %v871, %v1240
    %v1424 = vadd.f32 %v872, %v1242
    %v1425 = vadd.f32 %v873, %v1245
    %v1426 = vadd.f32 %v874, %v1247
    %v1427 = vadd.f32 %v875, %v1250
    %v1428 = vadd.f32 %v876, %v1252
    %v1429 = vadd.f32 %v877, %v1255
    %v1430 = vadd.f32 %v878, %v1257
    %v1431 = vadd.f32 %v879, %v1260
    %v1432 = vadd.f32 %v880, %v1262
    %v1433 = vadd.f32 %v881, %v1265
    %v1434 = vadd.f32 %v882, %v1267
    %v1435 = vadd.f32 %v883, %v1270
    %v1436 = vadd.f32 %v884, %v1272
    %v1437 = vadd.f32 %v885, %v1275
    %v1438 = vadd.f32 %v886, %v1277
    %v1439 = vadd.f32 %v887, %v1280
    %v1440 = vadd.f32 %v888, %v1282
    %v1441 = vadd.f32 %v889, %v1285
    %v1442 = vadd.f32 %v890, %v1287
    %v1443 = vadd.f32 %v891, %v1290
    %v1444 = vadd.f32 %v892, %v1292
    %v1445 = vadd.f32 %v893, %v1295
    %v1446 = vadd.f32 %v894, %v1297
    %v1447 = vadd.f32 %v895, %v1300
    %v1448 = vadd.f32 %v896, %v1302
    %v1449 = vadd.f32 %v897, %v1305
    %v1450 = vadd.f32 %v898, %v1307
    %v1451 = vadd.f32 %v899, %v1310
    %v1452 = vadd.f32 %v900, %v1312
    %v1453 = vadd.f32 %v901, %v1315
    %v1454 = vadd.f32 %v902, %v1317
    %v1455 = vadd.f32 %v903, %v1320
    %v1456 = vadd.f32 %v904, %v1322
    %v1457 = vadd.f32 %v905, %v1325
    %v1458 = vadd.f32 %v906, %v1327
    %v1459 = vadd.f32 %v907, %v1330
    %v1460 = vadd.f32 %v908, %v1332
    %s1461 = sadd.s32 %s84, 1
    %s1462 = smul.u32 %s1461, 3
    %s1463 = smul.addr %s1462, 4
    %s1464 = scalar_lea.vmem [#allocation2], %s1463
    %v1465 = vld [vmem:[%s1464] sm:$0xf]
    %v1466 = vld [vmem:[%s1464 + $0x4] sm:$0xf]
    %v1467 = vld [vmem:[%s1464 + $0xc] sm:$0xf]
    %v1468 = vld [vmem:[%s1464 + $0x10] sm:$0xf]
    %v1469 = vld [vmem:[%s1464 + $0x18] sm:$0xf]
    %v1470 = vld [vmem:[%s1464 + $0x1c] sm:$0xf]
    %v1471 = vld [vmem:[%s1464 + $0x24] sm:$0xf]
    %v1472 = vld [vmem:[%s1464 + $0x28] sm:$0xf]
    %v1473 = vld [vmem:[%s1464 + $0x30] sm:$0xf]
    %v1474 = vld [vmem:[%s1464 + $0x34] sm:$0xf]
    %v1475 = vld [vmem:[%s1464 + $0x3c] sm:$0xf]
    %v1476 = vld [vmem:[%s1464 + $0x40] sm:$0xf]
    %v1477 = vld [vmem:[%s1464 + $0x48] sm:$0xf]
    %v1478 = vld [vmem:[%s1464 + $0x4c] sm:$0xf]
    %v1479 = vld [vmem:[%s1464 + $0x54] sm:$0xf]
    %v1480 = vld [vmem:[%s1464 + $0x58] sm:$0xf]
    %v1481 = vld [vmem:[%s1464 + $0x60] sm:$0xf]
    %v1482 = vld [vmem:[%s1464 + $0x64] sm:$0xf]
    %v1483 = vld [vmem:[%s1464 + $0x6c] sm:$0xf]
    %v1484 = vld [vmem:[%s1464 + $0x70] sm:$0xf]
    %v1485 = vld [vmem:[%s1464 + $0x78] sm:$0xf]
    %v1486 = vld [vmem:[%s1464 + $0x7c] sm:$0xf]
    %v1487 = vld [vmem:[%s1464 + $0x84] sm:$0xf]
    %v1488 = vld [vmem:[%s1464 + $0x88] sm:$0xf]
    %v1489 = vld [vmem:[%s1464 + $0x90] sm:$0xf]
    %v1490 = vld [vmem:[%s1464 + $0x94] sm:$0xf]
    %v1491 = vld [vmem:[%s1464 + $0x9c] sm:$0xf]
    %v1492 = vld [vmem:[%s1464 + $0xa0] sm:$0xf]
    %v1493 = vld [vmem:[%s1464 + $0xa8] sm:$0xf]
    %v1494 = vld [vmem:[%s1464 + $0xac] sm:$0xf]
    %v1495 = vld [vmem:[%s1464 + $0xb4] sm:$0xf]
    %v1496 = vld [vmem:[%s1464 + $0xb8] sm:$0xf]
    %v1497 = vld [vmem:[%s1464 + $0xd8] sm:$0xf]
    %v1498 = vld [vmem:[%s1464 + $0xdc] sm:$0xf]
    %v1499 = vld [vmem:[%s1464 + $0xe4] sm:$0xf]
    %v1500 = vld [vmem:[%s1464 + $0xe8] sm:$0xf]
    %v1501 = vld [vmem:[%s1464 + $0xf0] sm:$0xf]
    %v1502 = vld [vmem:[%s1464 + $0xf4] sm:$0xf]
    %v1503 = vld [vmem:[%s1464 + $0xfc] sm:$0xf]
    %v1504 = vld [vmem:[%s1464 + $0x100] sm:$0xf]
    %v1505 = vld [vmem:[%s1464 + $0x108] sm:$0xf]
    %v1506 = vld [vmem:[%s1464 + $0x10c] sm:$0xf]
    %v1507 = vld [vmem:[%s1464 + $0x114] sm:$0xf]
    %v1508 = vld [vmem:[%s1464 + $0x118] sm:$0xf]
    %v1509 = vld [vmem:[%s1464 + $0x120] sm:$0xf]
    %v1510 = vld [vmem:[%s1464 + $0x124] sm:$0xf]
    %v1511 = vld [vmem:[%s1464 + $0x12c] sm:$0xf]
    %v1512 = vld [vmem:[%s1464 + $0x130] sm:$0xf]
    %v1513 = vld [vmem:[%s1464 + $0x138] sm:$0xf]
    %v1514 = vld [vmem:[%s1464 + $0x13c] sm:$0xf]
    %v1515 = vld [vmem:[%s1464 + $0x144] sm:$0xf]
    %v1516 = vld [vmem:[%s1464 + $0x148] sm:$0xf]
    %v1517 = vld [vmem:[%s1464 + $0x150] sm:$0xf]
    %v1518 = vld [vmem:[%s1464 + $0x154] sm:$0xf]
    %v1519 = vld [vmem:[%s1464 + $0x15c] sm:$0xf]
    %v1520 = vld [vmem:[%s1464 + $0x160] sm:$0xf]
    %v1521 = vld [vmem:[%s1464 + $0x168] sm:$0xf]
    %v1522 = vld [vmem:[%s1464 + $0x16c] sm:$0xf]
    %v1523 = vld [vmem:[%s1464 + $0x174] sm:$0xf]
    %v1524 = vld [vmem:[%s1464 + $0x178] sm:$0xf]
    %v1525 = vld [vmem:[%s1464 + $0x180] sm:$0xf]
    %v1526 = vld [vmem:[%s1464 + $0x184] sm:$0xf]
    %v1527 = vld [vmem:[%s1464 + $0x18c] sm:$0xf]
    %v1528 = vld [vmem:[%s1464 + $0x190] sm:$0xf]
    %s1529 = scalar_lea.vmem [#allocation5], 3
    %v1530 = vld [vmem:[%s1529] sm:$0x1]
    %v1531 = vunpack.c.l.bf16 %v1465
    %v1532 = vunpack.c.l.bf16 %v1466
    %v1533 = vunpack.c.l.bf16 %v1467
    %v1534 = vunpack.c.l.bf16 %v1468
    %v1535 = vunpack.c.l.bf16 %v1469
    %v1536 = vunpack.c.l.bf16 %v1470
    %v1537 = vunpack.c.l.bf16 %v1471
    %v1538 = vunpack.c.l.bf16 %v1472
    %v1539 = vunpack.c.l.bf16 %v1473
    %v1540 = vunpack.c.l.bf16 %v1474
    %v1541 = vunpack.c.l.bf16 %v1475
    %v1542 = vunpack.c.l.bf16 %v1476
    %v1543 = vunpack.c.l.bf16 %v1477
    %v1544 = vunpack.c.l.bf16 %v1478
    %v1545 = vunpack.c.l.bf16 %v1479
    %v1546 = vunpack.c.l.bf16 %v1480
    %v1547 = vunpack.c.l.bf16 %v1481
    %v1548 = vunpack.c.l.bf16 %v1482
    %v1549 = vunpack.c.l.bf16 %v1483
    %v1550 = vunpack.c.l.bf16 %v1484
    %v1551 = vunpack.c.l.bf16 %v1485
    %v1552 = vunpack.c.l.bf16 %v1486
    %v1553 = vunpack.c.l.bf16 %v1487
    %v1554 = vunpack.c.l.bf16 %v1488
    %v1555 = vunpack.c.l.bf16 %v1489
    %v1556 = vunpack.c.l.bf16 %v1490
    %v1557 = vunpack.c.l.bf16 %v1491
    %v1558 = vunpack.c.l.bf16 %v1492
    %v1559 = vunpack.c.l.bf16 %v1493
    %v1560 = vunpack.c.l.bf16 %v1494
    %v1561 = vunpack.c.l.bf16 %v1495
    %v1562 = vunpack.c.l.bf16 %v1496
    %v1563 = vunpack.c.l.bf16 %v1497
    %v1564 = vunpack.c.l.bf16 %v1498
    %v1565 = vunpack.c.l.bf16 %v1499
    %v1566 = vunpack.c.l.bf16 %v1500
    %v1567 = vunpack.c.l.bf16 %v1501
    %v1568 = vunpack.c.l.bf16 %v1502
    %v1569 = vunpack.c.l.bf16 %v1503
    %v1570 = vunpack.c.l.bf16 %v1504
    %v1571 = vunpack.c.l.bf16 %v1505
    %v1572 = vunpack.c.l.bf16 %v1506
    %v1573 = vunpack.c.l.bf16 %v1507
    %v1574 = vunpack.c.l.bf16 %v1508
    %v1575 = vunpack.c.l.bf16 %v1509
    %v1576 = vunpack.c.l.bf16 %v1510
    %v1577 = vunpack.c.l.bf16 %v1511
    %v1578 = vunpack.c.l.bf16 %v1512
    %v1579 = vunpack.c.l.bf16 %v1513
    %v1580 = vunpack.c.l.bf16 %v1514
    %v1581 = vunpack.c.l.bf16 %v1515
    %v1582 = vunpack.c.l.bf16 %v1516
    %v1583 = vunpack.c.l.bf16 %v1517
    %v1584 = vunpack.c.l.bf16 %v1518
    %v1585 = vunpack.c.l.bf16 %v1519
    %v1586 = vunpack.c.l.bf16 %v1520
    %v1587 = vunpack.c.l.bf16 %v1521
    %v1588 = vunpack.c.l.bf16 %v1522
    %v1589 = vunpack.c.l.bf16 %v1523
    %v1590 = vunpack.c.l.bf16 %v1524
    %v1591 = vunpack.c.l.bf16 %v1525
    %v1592 = vunpack.c.l.bf16 %v1526
    %v1593 = vunpack.c.l.bf16 %v1527
    %v1594 = vunpack.c.l.bf16 %v1528
    %v1595 = vunpack.c.l.bf16 %v1530
    %v1596 = vlaneseq
    %v1597 = vshrl.u32 %v1596, 7
    %v1598 = vsub.s32 0, %v1597
    %v1599 = vrot.slane %v1595, %v1598
    %v1600 = vmul.f32 %v1531, %v1599
    %v1601 = vmul.f32 %v1532, %v1599
    %v1602 = vmul.f32 %v1533, %v1599
    %v1603 = vmul.f32 %v1534, %v1599
    %v1604 = vmul.f32 %v1535, %v1599
    %v1605 = vmul.f32 %v1536, %v1599
    %v1606 = vmul.f32 %v1537, %v1599
    %v1607 = vmul.f32 %v1538, %v1599
    %v1608 = vmul.f32 %v1539, %v1599
    %v1609 = vmul.f32 %v1540, %v1599
    %v1610 = vmul.f32 %v1541, %v1599
    %v1611 = vmul.f32 %v1542, %v1599
    %v1612 = vmul.f32 %v1543, %v1599
    %v1613 = vmul.f32 %v1544, %v1599
    %v1614 = vmul.f32 %v1545, %v1599
    %v1615 = vmul.f32 %v1546, %v1599
    %v1616 = vmul.f32 %v1547, %v1599
    %v1617 = vmul.f32 %v1548, %v1599
    %v1618 = vmul.f32 %v1549, %v1599
    %v1619 = vmul.f32 %v1550, %v1599
    %v1620 = vmul.f32 %v1551, %v1599
    %v1621 = vmul.f32 %v1552, %v1599
    %v1622 = vmul.f32 %v1553, %v1599
    %v1623 = vmul.f32 %v1554, %v1599
    %v1624 = vmul.f32 %v1555, %v1599
    %v1625 = vmul.f32 %v1556, %v1599
    %v1626 = vmul.f32 %v1557, %v1599
    %v1627 = vmul.f32 %v1558, %v1599
    %v1628 = vmul.f32 %v1559, %v1599
    %v1629 = vmul.f32 %v1560, %v1599
    %v1630 = vmul.f32 %v1561, %v1599
    %v1631 = vmul.f32 %v1562, %v1599
    %v1632 = vmul.f32 %v1563, %v1599
    %v1633 = vmul.f32 %v1564, %v1599
    %v1634 = vmul.f32 %v1565, %v1599
    %v1635 = vmul.f32 %v1566, %v1599
    %v1636 = vmul.f32 %v1567, %v1599
    %v1637 = vmul.f32 %v1568, %v1599
    %v1638 = vmul.f32 %v1569, %v1599
    %v1639 = vmul.f32 %v1570, %v1599
    %v1640 = vmul.f32 %v1571, %v1599
    %v1641 = vmul.f32 %v1572, %v1599
    %v1642 = vmul.f32 %v1573, %v1599
    %v1643 = vmul.f32 %v1574, %v1599
    %v1644 = vmul.f32 %v1575, %v1599
    %v1645 = vmul.f32 %v1576, %v1599
    %v1646 = vmul.f32 %v1577, %v1599
    %v1647 = vmul.f32 %v1578, %v1599
    %v1648 = vmul.f32 %v1579, %v1599
    %v1649 = vmul.f32 %v1580, %v1599
    %v1650 = vmul.f32 %v1581, %v1599
    %v1651 = vmul.f32 %v1582, %v1599
    %v1652 = vmul.f32 %v1583, %v1599
    %v1653 = vmul.f32 %v1584, %v1599
    %v1654 = vmul.f32 %v1585, %v1599
    %v1655 = vmul.f32 %v1586, %v1599
    %v1656 = vmul.f32 %v1587, %v1599
    %v1657 = vmul.f32 %v1588, %v1599
    %v1658 = vmul.f32 %v1589, %v1599
    %v1659 = vmul.f32 %v1590, %v1599
    %v1660 = vmul.f32 %v1591, %v1599
    %v1661 = vmul.f32 %v1592, %v1599
    %v1662 = vmul.f32 %v1593, %v1599
    %v1663 = vmul.f32 %v1594, %v1599
    %v1664 = vadd.f32 %v1397, %v1600
    %v1665 = vadd.f32 %v1398, %v1601
    %v1666 = vadd.f32 %v1399, %v1602
    %v1667 = vadd.f32 %v1400, %v1603
    %v1668 = vadd.f32 %v1401, %v1604
    %v1669 = vadd.f32 %v1402, %v1605
    %v1670 = vadd.f32 %v1403, %v1606
    %v1671 = vadd.f32 %v1404, %v1607
    %v1672 = vadd.f32 %v1405, %v1608
    %v1673 = vadd.f32 %v1406, %v1609
    %v1674 = vadd.f32 %v1407, %v1610
    %v1675 = vadd.f32 %v1408, %v1611
    %v1676 = vadd.f32 %v1409, %v1612
    %v1677 = vadd.f32 %v1410, %v1613
    %v1678 = vadd.f32 %v1411, %v1614
    %v1679 = vadd.f32 %v1412, %v1615
    %v1680 = vadd.f32 %v1413, %v1616
    %v1681 = vadd.f32 %v1414, %v1617
    %v1682 = vadd.f32 %v1415, %v1618
    %v1683 = vadd.f32 %v1416, %v1619
    %v1684 = vadd.f32 %v1417, %v1620
    %v1685 = vadd.f32 %v1418, %v1621
    %v1686 = vadd.f32 %v1419, %v1622
    %v1687 = vadd.f32 %v1420, %v1623
    %v1688 = vadd.f32 %v1421, %v1624
    %v1689 = vadd.f32 %v1422, %v1625
    %v1690 = vadd.f32 %v1423, %v1626
    %v1691 = vadd.f32 %v1424, %v1627
    %v1692 = vadd.f32 %v1425, %v1628
    %v1693 = vadd.f32 %v1426, %v1629
    %v1694 = vadd.f32 %v1427, %v1630
    %v1695 = vadd.f32 %v1428, %v1631
    %v1696 = vadd.f32 %v1429, %v1632
    %v1697 = vadd.f32 %v1430, %v1633
    %v1698 = vadd.f32 %v1431, %v1634
    %v1699 = vadd.f32 %v1432, %v1635
    %v1700 = vadd.f32 %v1433, %v1636
    %v1701 = vadd.f32 %v1434, %v1637
    %v1702 = vadd.f32 %v1435, %v1638
    %v1703 = vadd.f32 %v1436, %v1639
    %v1704 = vadd.f32 %v1437, %v1640
    %v1705 = vadd.f32 %v1438, %v1641
    %v1706 = vadd.f32 %v1439, %v1642
    %v1707 = vadd.f32 %v1440, %v1643
    %v1708 = vadd.f32 %v1441, %v1644
    %v1709 = vadd.f32 %v1442, %v1645
    %v1710 = vadd.f32 %v1443, %v1646
    %v1711 = vadd.f32 %v1444, %v1647
    %v1712 = vadd.f32 %v1445, %v1648
    %v1713 = vadd.f32 %v1446, %v1649
    %v1714 = vadd.f32 %v1447, %v1650
    %v1715 = vadd.f32 %v1448, %v1651
    %v1716 = vadd.f32 %v1449, %v1652
    %v1717 = vadd.f32 %v1450, %v1653
    %v1718 = vadd.f32 %v1451, %v1654
    %v1719 = vadd.f32 %v1452, %v1655
    %v1720 = vadd.f32 %v1453, %v1656
    %v1721 = vadd.f32 %v1454, %v1657
    %v1722 = vadd.f32 %v1455, %v1658
    %v1723 = vadd.f32 %v1456, %v1659
    %v1724 = vadd.f32 %v1457, %v1660
    %v1725 = vadd.f32 %v1458, %v1661
    %v1726 = vadd.f32 %v1459, %v1662
    %v1727 = vadd.f32 %v1460, %v1663
    %v1728 = vld [vmem:[%s1464 + $0x8] sm:$0x1]
    %v1729 = vld [vmem:[%s1464 + $0x14] sm:$0x1]
    %v1730 = vld [vmem:[%s1464 + $0x20] sm:$0x1]
    %v1731 = vld [vmem:[%s1464 + $0x2c] sm:$0x1]
    %v1732 = vld [vmem:[%s1464 + $0x38] sm:$0x1]
    %v1733 = vld [vmem:[%s1464 + $0x44] sm:$0x1]
    %v1734 = vld [vmem:[%s1464 + $0x50] sm:$0x1]
    %v1735 = vld [vmem:[%s1464 + $0x5c] sm:$0x1]
    %v1736 = vld [vmem:[%s1464 + $0x68] sm:$0x1]
    %v1737 = vld [vmem:[%s1464 + $0x74] sm:$0x1]
    %v1738 = vld [vmem:[%s1464 + $0x80] sm:$0x1]
    %v1739 = vld [vmem:[%s1464 + $0x8c] sm:$0x1]
    %v1740 = vld [vmem:[%s1464 + $0x98] sm:$0x1]
    %v1741 = vld [vmem:[%s1464 + $0xa4] sm:$0x1]
    %v1742 = vld [vmem:[%s1464 + $0xb0] sm:$0x1]
    %v1743 = vld [vmem:[%s1464 + $0xbc] sm:$0x1]
    %v1744 = vld [vmem:[%s1464 + $0xe0] sm:$0x1]
    %v1745 = vld [vmem:[%s1464 + $0xec] sm:$0x1]
    %v1746 = vld [vmem:[%s1464 + $0xf8] sm:$0x1]
    %v1747 = vld [vmem:[%s1464 + $0x104] sm:$0x1]
    %v1748 = vld [vmem:[%s1464 + $0x110] sm:$0x1]
    %v1749 = vld [vmem:[%s1464 + $0x11c] sm:$0x1]
    %v1750 = vld [vmem:[%s1464 + $0x128] sm:$0x1]
    %v1751 = vld [vmem:[%s1464 + $0x134] sm:$0x1]
    %v1752 = vld [vmem:[%s1464 + $0x140] sm:$0x1]
    %v1753 = vld [vmem:[%s1464 + $0x14c] sm:$0x1]
    %v1754 = vld [vmem:[%s1464 + $0x158] sm:$0x1]
    %v1755 = vld [vmem:[%s1464 + $0x164] sm:$0x1]
    %v1756 = vld [vmem:[%s1464 + $0x170] sm:$0x1]
    %v1757 = vld [vmem:[%s1464 + $0x17c] sm:$0x1]
    %v1758 = vld [vmem:[%s1464 + $0x188] sm:$0x1]
    %v1759 = vld [vmem:[%s1464 + $0x194] sm:$0x1]
    %s1760 = scalar_lea.vmem [#allocation5], 4
    %v1761 = vld [vmem:[%s1760] sm:$0x1]
    %v1762 = vunpack.c.l.bf16 %v1728
    %v1763 = vunpack.c.l.bf16 %v1729
    %v1764 = vunpack.c.l.bf16 %v1730
    %v1765 = vunpack.c.l.bf16 %v1731
    %v1766 = vunpack.c.l.bf16 %v1732
    %v1767 = vunpack.c.l.bf16 %v1733
    %v1768 = vunpack.c.l.bf16 %v1734
    %v1769 = vunpack.c.l.bf16 %v1735
    %v1770 = vunpack.c.l.bf16 %v1736
    %v1771 = vunpack.c.l.bf16 %v1737
    %v1772 = vunpack.c.l.bf16 %v1738
    %v1773 = vunpack.c.l.bf16 %v1739
    %v1774 = vunpack.c.l.bf16 %v1740
    %v1775 = vunpack.c.l.bf16 %v1741
    %v1776 = vunpack.c.l.bf16 %v1742
    %v1777 = vunpack.c.l.bf16 %v1743
    %v1778 = vunpack.c.l.bf16 %v1744
    %v1779 = vunpack.c.l.bf16 %v1745
    %v1780 = vunpack.c.l.bf16 %v1746
    %v1781 = vunpack.c.l.bf16 %v1747
    %v1782 = vunpack.c.l.bf16 %v1748
    %v1783 = vunpack.c.l.bf16 %v1749
    %v1784 = vunpack.c.l.bf16 %v1750
    %v1785 = vunpack.c.l.bf16 %v1751
    %v1786 = vunpack.c.l.bf16 %v1752
    %v1787 = vunpack.c.l.bf16 %v1753
    %v1788 = vunpack.c.l.bf16 %v1754
    %v1789 = vunpack.c.l.bf16 %v1755
    %v1790 = vunpack.c.l.bf16 %v1756
    %v1791 = vunpack.c.l.bf16 %v1757
    %v1792 = vunpack.c.l.bf16 %v1758
    %v1793 = vunpack.c.l.bf16 %v1759
    %v1794 = vunpack.c.l.bf16 %v1761
    %v1795 = vlaneseq
    %v1796 = vshrl.u32 %v1795, 7
    %v1797 = vsub.s32 0, %v1796
    %v1798 = vrot.slane %v1794, %v1797
    %v1799 = vmul.f32 %v1531, %v1798
    %v1800 = vmul.f32 %v1532, %v1798
    %v1801 = vmul.f32 %v1762, %v1798
    %v1802 = vmul.f32 %v1533, %v1798
    %v1803 = vmul.f32 %v1534, %v1798
    %v1804 = vmul.f32 %v1763, %v1798
    %v1805 = vmul.f32 %v1535, %v1798
    %v1806 = vmul.f32 %v1536, %v1798
    %v1807 = vmul.f32 %v1764, %v1798
    %v1808 = vmul.f32 %v1537, %v1798
    %v1809 = vmul.f32 %v1538, %v1798
    %v1810 = vmul.f32 %v1765, %v1798
    %v1811 = vmul.f32 %v1539, %v1798
    %v1812 = vmul.f32 %v1540, %v1798
    %v1813 = vmul.f32 %v1766, %v1798
    %v1814 = vmul.f32 %v1541, %v1798
    %v1815 = vmul.f32 %v1542, %v1798
    %v1816 = vmul.f32 %v1767, %v1798
    %v1817 = vmul.f32 %v1543, %v1798
    %v1818 = vmul.f32 %v1544, %v1798
    %v1819 = vmul.f32 %v1768, %v1798
    %v1820 = vmul.f32 %v1545, %v1798
    %v1821 = vmul.f32 %v1546, %v1798
    %v1822 = vmul.f32 %v1769, %v1798
    %v1823 = vmul.f32 %v1547, %v1798
    %v1824 = vmul.f32 %v1548, %v1798
    %v1825 = vmul.f32 %v1770, %v1798
    %v1826 = vmul.f32 %v1549, %v1798
    %v1827 = vmul.f32 %v1550, %v1798
    %v1828 = vmul.f32 %v1771, %v1798
    %v1829 = vmul.f32 %v1551, %v1798
    %v1830 = vmul.f32 %v1552, %v1798
    %v1831 = vmul.f32 %v1772, %v1798
    %v1832 = vmul.f32 %v1553, %v1798
    %v1833 = vmul.f32 %v1554, %v1798
    %v1834 = vmul.f32 %v1773, %v1798
    %v1835 = vmul.f32 %v1555, %v1798
    %v1836 = vmul.f32 %v1556, %v1798
    %v1837 = vmul.f32 %v1774, %v1798
    %v1838 = vmul.f32 %v1557, %v1798
    %v1839 = vmul.f32 %v1558, %v1798
    %v1840 = vmul.f32 %v1775, %v1798
    %v1841 = vmul.f32 %v1559, %v1798
    %v1842 = vmul.f32 %v1560, %v1798
    %v1843 = vmul.f32 %v1776, %v1798
    %v1844 = vmul.f32 %v1561, %v1798
    %v1845 = vmul.f32 %v1562, %v1798
    %v1846 = vmul.f32 %v1777, %v1798
    %v1847 = vmul.f32 %v1563, %v1798
    %v1848 = vmul.f32 %v1564, %v1798
    %v1849 = vmul.f32 %v1778, %v1798
    %v1850 = vmul.f32 %v1565, %v1798
    %v1851 = vmul.f32 %v1566, %v1798
    %v1852 = vmul.f32 %v1779, %v1798
    %v1853 = vmul.f32 %v1567, %v1798
    %v1854 = vmul.f32 %v1568, %v1798
    %v1855 = vmul.f32 %v1780, %v1798
    %v1856 = vmul.f32 %v1569, %v1798
    %v1857 = vmul.f32 %v1570, %v1798
    %v1858 = vmul.f32 %v1781, %v1798
    %v1859 = vmul.f32 %v1571, %v1798
    %v1860 = vmul.f32 %v1572, %v1798
    %v1861 = vmul.f32 %v1782, %v1798
    %v1862 = vmul.f32 %v1573, %v1798
    %v1863 = vmul.f32 %v1574, %v1798
    %v1864 = vmul.f32 %v1783, %v1798
    %v1865 = vmul.f32 %v1575, %v1798
    %v1866 = vmul.f32 %v1576, %v1798
    %v1867 = vmul.f32 %v1784, %v1798
    %v1868 = vmul.f32 %v1577, %v1798
    %v1869 = vmul.f32 %v1578, %v1798
    %v1870 = vmul.f32 %v1785, %v1798
    %v1871 = vmul.f32 %v1579, %v1798
    %v1872 = vmul.f32 %v1580, %v1798
    %v1873 = vmul.f32 %v1786, %v1798
    %v1874 = vmul.f32 %v1581, %v1798
    %v1875 = vmul.f32 %v1582, %v1798
    %v1876 = vmul.f32 %v1787, %v1798
    %v1877 = vmul.f32 %v1583, %v1798
    %v1878 = vmul.f32 %v1584, %v1798
    %v1879 = vmul.f32 %v1788, %v1798
    %v1880 = vmul.f32 %v1585, %v1798
    %v1881 = vmul.f32 %v1586, %v1798
    %v1882 = vmul.f32 %v1789, %v1798
    %v1883 = vmul.f32 %v1587, %v1798
    %v1884 = vmul.f32 %v1588, %v1798
    %v1885 = vmul.f32 %v1790, %v1798
    %v1886 = vmul.f32 %v1589, %v1798
    %v1887 = vmul.f32 %v1590, %v1798
    %v1888 = vmul.f32 %v1791, %v1798
    %v1889 = vmul.f32 %v1591, %v1798
    %v1890 = vmul.f32 %v1592, %v1798
    %v1891 = vmul.f32 %v1792, %v1798
    %v1892 = vmul.f32 %v1593, %v1798
    %v1893 = vmul.f32 %v1594, %v1798
    %v1894 = vmul.f32 %v1793, %v1798
    %v1991 = vrot.slane %v1799, 1
    %v1992 = vrot.slane %v1800, 1
    %v1993 = vsel %vm620, %v1991, %v1992
    %v1994 = vrot.slane %v1801, 1
    %v1995 = vsel %vm620, %v1992, %v1994
    %v1996 = vrot.slane %v1802, 1
    %v1997 = vrot.slane %v1803, 1
    %v1998 = vsel %vm620, %v1996, %v1997
    %v1999 = vrot.slane %v1804, 1
    %v2000 = vsel %vm620, %v1997, %v1999
    %v2001 = vrot.slane %v1805, 1
    %v2002 = vrot.slane %v1806, 1
    %v2003 = vsel %vm620, %v2001, %v2002
    %v2004 = vrot.slane %v1807, 1
    %v2005 = vsel %vm620, %v2002, %v2004
    %v2006 = vrot.slane %v1808, 1
    %v2007 = vrot.slane %v1809, 1
    %v2008 = vsel %vm620, %v2006, %v2007
    %v2009 = vrot.slane %v1810, 1
    %v2010 = vsel %vm620, %v2007, %v2009
    %v2011 = vrot.slane %v1811, 1
    %v2012 = vrot.slane %v1812, 1
    %v2013 = vsel %vm620, %v2011, %v2012
    %v2014 = vrot.slane %v1813, 1
    %v2015 = vsel %vm620, %v2012, %v2014
    %v2016 = vrot.slane %v1814, 1
    %v2017 = vrot.slane %v1815, 1
    %v2018 = vsel %vm620, %v2016, %v2017
    %v2019 = vrot.slane %v1816, 1
    %v2020 = vsel %vm620, %v2017, %v2019
    %v2021 = vrot.slane %v1817, 1
    %v2022 = vrot.slane %v1818, 1
    %v2023 = vsel %vm620, %v2021, %v2022
    %v2024 = vrot.slane %v1819, 1
    %v2025 = vsel %vm620, %v2022, %v2024
    %v2026 = vrot.slane %v1820, 1
    %v2027 = vrot.slane %v1821, 1
    %v2028 = vsel %vm620, %v2026, %v2027
    %v2029 = vrot.slane %v1822, 1
    %v2030 = vsel %vm620, %v2027, %v2029
    %v2031 = vrot.slane %v1823, 1
    %v2032 = vrot.slane %v1824, 1
    %v2033 = vsel %vm620, %v2031, %v2032
    %v2034 = vrot.slane %v1825, 1
    %v2035 = vsel %vm620, %v2032, %v2034
    %v2036 = vrot.slane %v1826, 1
    %v2037 = vrot.slane %v1827, 1
    %v2038 = vsel %vm620, %v2036, %v2037
    %v2039 = vrot.slane %v1828, 1
    %v2040 = vsel %vm620, %v2037, %v2039
    %v2041 = vrot.slane %v1829, 1
    %v2042 = vrot.slane %v1830, 1
    %v2043 = vsel %vm620, %v2041, %v2042
    %v2044 = vrot.slane %v1831, 1
    %v2045 = vsel %vm620, %v2042, %v2044
    %v2046 = vrot.slane %v1832, 1
    %v2047 = vrot.slane %v1833, 1
    %v2048 = vsel %vm620, %v2046, %v2047
    %v2049 = vrot.slane %v1834, 1
    %v2050 = vsel %vm620, %v2047, %v2049
    %v2051 = vrot.slane %v1835, 1
    %v2052 = vrot.slane %v1836, 1
    %v2053 = vsel %vm620, %v2051, %v2052
    %v2054 = vrot.slane %v1837, 1
    %v2055 = vsel %vm620, %v2052, %v2054
    %v2056 = vrot.slane %v1838, 1
    %v2057 = vrot.slane %v1839, 1
    %v2058 = vsel %vm620, %v2056, %v2057
    %v2059 = vrot.slane %v1840, 1
    %v2060 = vsel %vm620, %v2057, %v2059
    %v2061 = vrot.slane %v1841, 1
    %v2062 = vrot.slane %v1842, 1
    %v2063 = vsel %vm620, %v2061, %v2062
    %v2064 = vrot.slane %v1843, 1
    %v2065 = vsel %vm620, %v2062, %v2064
    %v2066 = vrot.slane %v1844, 1
    %v2067 = vrot.slane %v1845, 1
    %v2068 = vsel %vm620, %v2066, %v2067
    %v2069 = vrot.slane %v1846, 1
    %v2070 = vsel %vm620, %v2067, %v2069
    %v2071 = vrot.slane %v1847, 1
    %v2072 = vrot.slane %v1848, 1
    %v2073 = vsel %vm620, %v2071, %v2072
    %v2074 = vrot.slane %v1849, 1
    %v2075 = vsel %vm620, %v2072, %v2074
    %v2076 = vrot.slane %v1850, 1
    %v2077 = vrot.slane %v1851, 1
    %v2078 = vsel %vm620, %v2076, %v2077
    %v2079 = vrot.slane %v1852, 1
    %v2080 = vsel %vm620, %v2077, %v2079
    %v2081 = vrot.slane %v1853, 1
    %v2082 = vrot.slane %v1854, 1
    %v2083 = vsel %vm620, %v2081, %v2082
    %v2084 = vrot.slane %v1855, 1
    %v2085 = vsel %vm620, %v2082, %v2084
    %v2086 = vrot.slane %v1856, 1
    %v2087 = vrot.slane %v1857, 1
    %v2088 = vsel %vm620, %v2086, %v2087
    %v2089 = vrot.slane %v1858, 1
    %v2090 = vsel %vm620, %v2087, %v2089
    %v2091 = vrot.slane %v1859, 1
    %v2092 = vrot.slane %v1860, 1
    %v2093 = vsel %vm620, %v2091, %v2092
    %v2094 = vrot.slane %v1861, 1
    %v2095 = vsel %vm620, %v2092, %v2094
    %v2096 = vrot.slane %v1862, 1
    %v2097 = vrot.slane %v1863, 1
    %v2098 = vsel %vm620, %v2096, %v2097
    %v2099 = vrot.slane %v1864, 1
    %v2100 = vsel %vm620, %v2097, %v2099
    %v2101 = vrot.slane %v1865, 1
    %v2102 = vrot.slane %v1866, 1
    %v2103 = vsel %vm620, %v2101, %v2102
    %v2104 = vrot.slane %v1867, 1
    %v2105 = vsel %vm620, %v2102, %v2104
    %v2106 = vrot.slane %v1868, 1
    %v2107 = vrot.slane %v1869, 1
    %v2108 = vsel %vm620, %v2106, %v2107
    %v2109 = vrot.slane %v1870, 1
    %v2110 = vsel %vm620, %v2107, %v2109
    %v2111 = vrot.slane %v1871, 1
    %v2112 = vrot.slane %v1872, 1
    %v2113 = vsel %vm620, %v2111, %v2112
    %v2114 = vrot.slane %v1873, 1
    %v2115 = vsel %vm620, %v2112, %v2114
    %v2116 = vrot.slane %v1874, 1
    %v2117 = vrot.slane %v1875, 1
    %v2118 = vsel %vm620, %v2116, %v2117
    %v2119 = vrot.slane %v1876, 1
    %v2120 = vsel %vm620, %v2117, %v2119
    %v2121 = vrot.slane %v1877, 1
    %v2122 = vrot.slane %v1878, 1
    %v2123 = vsel %vm620, %v2121, %v2122
    %v2124 = vrot.slane %v1879, 1
    %v2125 = vsel %vm620, %v2122, %v2124
    %v2126 = vrot.slane %v1880, 1
    %v2127 = vrot.slane %v1881, 1
    %v2128 = vsel %vm620, %v2126, %v2127
    %v2129 = vrot.slane %v1882, 1
    %v2130 = vsel %vm620, %v2127, %v2129
    %v2131 = vrot.slane %v1883, 1
    %v2132 = vrot.slane %v1884, 1
    %v2133 = vsel %vm620, %v2131, %v2132
    %v2134 = vrot.slane %v1885, 1
    %v2135 = vsel %vm620, %v2132, %v2134
    %v2136 = vrot.slane %v1886, 1
    %v2137 = vrot.slane %v1887, 1
    %v2138 = vsel %vm620, %v2136, %v2137
    %v2139 = vrot.slane %v1888, 1
    %v2140 = vsel %vm620, %v2137, %v2139
    %v2141 = vrot.slane %v1889, 1
    %v2142 = vrot.slane %v1890, 1
    %v2143 = vsel %vm620, %v2141, %v2142
    %v2144 = vrot.slane %v1891, 1
    %v2145 = vsel %vm620, %v2142, %v2144
    %v2146 = vrot.slane %v1892, 1
    %v2147 = vrot.slane %v1893, 1
    %v2148 = vsel %vm620, %v2146, %v2147
    %v2149 = vrot.slane %v1894, 1
    %v2150 = vsel %vm620, %v2147, %v2149
    %v2215 = vadd.f32 %v1664, %v1993
    %v2216 = vadd.f32 %v1665, %v1995
    %v2217 = vadd.f32 %v1666, %v1998
    %v2218 = vadd.f32 %v1667, %v2000
    %v2219 = vadd.f32 %v1668, %v2003
    %v2220 = vadd.f32 %v1669, %v2005
    %v2221 = vadd.f32 %v1670, %v2008
    %v2222 = vadd.f32 %v1671, %v2010
    %v2223 = vadd.f32 %v1672, %v2013
    %v2224 = vadd.f32 %v1673, %v2015
    %v2225 = vadd.f32 %v1674, %v2018
    %v2226 = vadd.f32 %v1675, %v2020
    %v2227 = vadd.f32 %v1676, %v2023
    %v2228 = vadd.f32 %v1677, %v2025
    %v2229 = vadd.f32 %v1678, %v2028
    %v2230 = vadd.f32 %v1679, %v2030
    %v2231 = vadd.f32 %v1680, %v2033
    %v2232 = vadd.f32 %v1681, %v2035
    %v2233 = vadd.f32 %v1682, %v2038
    %v2234 = vadd.f32 %v1683, %v2040
    %v2235 = vadd.f32 %v1684, %v2043
    %v2236 = vadd.f32 %v1685, %v2045
    %v2237 = vadd.f32 %v1686, %v2048
    %v2238 = vadd.f32 %v1687, %v2050
    %v2239 = vadd.f32 %v1688, %v2053
    %v2240 = vadd.f32 %v1689, %v2055
    %v2241 = vadd.f32 %v1690, %v2058
    %v2242 = vadd.f32 %v1691, %v2060
    %v2243 = vadd.f32 %v1692, %v2063
    %v2244 = vadd.f32 %v1693, %v2065
    %v2245 = vadd.f32 %v1694, %v2068
    %v2246 = vadd.f32 %v1695, %v2070
    %v2247 = vadd.f32 %v1696, %v2073
    %v2248 = vadd.f32 %v1697, %v2075
    %v2249 = vadd.f32 %v1698, %v2078
    %v2250 = vadd.f32 %v1699, %v2080
    %v2251 = vadd.f32 %v1700, %v2083
    %v2252 = vadd.f32 %v1701, %v2085
    %v2253 = vadd.f32 %v1702, %v2088
    %v2254 = vadd.f32 %v1703, %v2090
    %v2255 = vadd.f32 %v1704, %v2093
    %v2256 = vadd.f32 %v1705, %v2095
    %v2257 = vadd.f32 %v1706, %v2098
    %v2258 = vadd.f32 %v1707, %v2100
    %v2259 = vadd.f32 %v1708, %v2103
    %v2260 = vadd.f32 %v1709, %v2105
    %v2261 = vadd.f32 %v1710, %v2108
    %v2262 = vadd.f32 %v1711, %v2110
    %v2263 = vadd.f32 %v1712, %v2113
    %v2264 = vadd.f32 %v1713, %v2115
    %v2265 = vadd.f32 %v1714, %v2118
    %v2266 = vadd.f32 %v1715, %v2120
    %v2267 = vadd.f32 %v1716, %v2123
    %v2268 = vadd.f32 %v1717, %v2125
    %v2269 = vadd.f32 %v1718, %v2128
    %v2270 = vadd.f32 %v1719, %v2130
    %v2271 = vadd.f32 %v1720, %v2133
    %v2272 = vadd.f32 %v1721, %v2135
    %v2273 = vadd.f32 %v1722, %v2138
    %v2274 = vadd.f32 %v1723, %v2140
    %v2275 = vadd.f32 %v1724, %v2143
    %v2276 = vadd.f32 %v1725, %v2145
    %v2277 = vadd.f32 %v1726, %v2148
    %v2278 = vadd.f32 %v1727, %v2150
    %v2279 = vld [vmem:[%s1464] sm:$0xe]
    %v2280 = vld [vmem:[%s1464 + $0xc] sm:$0xe]
    %v2281 = vld [vmem:[%s1464 + $0x18] sm:$0xe]
    %v2282 = vld [vmem:[%s1464 + $0x24] sm:$0xe]
    %v2283 = vld [vmem:[%s1464 + $0x30] sm:$0xe]
    %v2284 = vld [vmem:[%s1464 + $0x3c] sm:$0xe]
    %v2285 = vld [vmem:[%s1464 + $0x48] sm:$0xe]
    %v2286 = vld [vmem:[%s1464 + $0x54] sm:$0xe]
    %v2287 = vld [vmem:[%s1464 + $0x60] sm:$0xe]
    %v2288 = vld [vmem:[%s1464 + $0x6c] sm:$0xe]
    %v2289 = vld [vmem:[%s1464 + $0x78] sm:$0xe]
    %v2290 = vld [vmem:[%s1464 + $0x84] sm:$0xe]
    %v2291 = vld [vmem:[%s1464 + $0x90] sm:$0xe]
    %v2292 = vld [vmem:[%s1464 + $0x9c] sm:$0xe]
    %v2293 = vld [vmem:[%s1464 + $0xa8] sm:$0xe]
    %v2294 = vld [vmem:[%s1464 + $0xb4] sm:$0xe]
    %v2295 = vld [vmem:[%s1464 + $0xd8] sm:$0xe]
    %v2296 = vld [vmem:[%s1464 + $0xe4] sm:$0xe]
    %v2297 = vld [vmem:[%s1464 + $0xf0] sm:$0xe]
    %v2298 = vld [vmem:[%s1464 + $0xfc] sm:$0xe]
    %v2299 = vld [vmem:[%s1464 + $0x108] sm:$0xe]
    %v2300 = vld [vmem:[%s1464 + $0x114] sm:$0xe]
    %v2301 = vld [vmem:[%s1464 + $0x120] sm:$0xe]
    %v2302 = vld [vmem:[%s1464 + $0x12c] sm:$0xe]
    %v2303 = vld [vmem:[%s1464 + $0x138] sm:$0xe]
    %v2304 = vld [vmem:[%s1464 + $0x144] sm:$0xe]
    %v2305 = vld [vmem:[%s1464 + $0x150] sm:$0xe]
    %v2306 = vld [vmem:[%s1464 + $0x15c] sm:$0xe]
    %v2307 = vld [vmem:[%s1464 + $0x168] sm:$0xe]
    %v2308 = vld [vmem:[%s1464 + $0x174] sm:$0xe]
    %v2309 = vld [vmem:[%s1464 + $0x180] sm:$0xe]
    %v2310 = vld [vmem:[%s1464 + $0x18c] sm:$0xe]
    %s2311 = scalar_lea.vmem [#allocation5], 5
    %v2312 = vld [vmem:[%s2311] sm:$0x1]
    %v2313 = vunpack.c.l.bf16 %v2279
    %v2314 = vunpack.c.l.bf16 %v2280
    %v2315 = vunpack.c.l.bf16 %v2281
    %v2316 = vunpack.c.l.bf16 %v2282
    %v2317 = vunpack.c.l.bf16 %v2283
    %v2318 = vunpack.c.l.bf16 %v2284
    %v2319 = vunpack.c.l.bf16 %v2285
    %v2320 = vunpack.c.l.bf16 %v2286
    %v2321 = vunpack.c.l.bf16 %v2287
    %v2322 = vunpack.c.l.bf16 %v2288
    %v2323 = vunpack.c.l.bf16 %v2289
    %v2324 = vunpack.c.l.bf16 %v2290
    %v2325 = vunpack.c.l.bf16 %v2291
    %v2326 = vunpack.c.l.bf16 %v2292
    %v2327 = vunpack.c.l.bf16 %v2293
    %v2328 = vunpack.c.l.bf16 %v2294
    %v2329 = vunpack.c.l.bf16 %v2295
    %v2330 = vunpack.c.l.bf16 %v2296
    %v2331 = vunpack.c.l.bf16 %v2297
    %v2332 = vunpack.c.l.bf16 %v2298
    %v2333 = vunpack.c.l.bf16 %v2299
    %v2334 = vunpack.c.l.bf16 %v2300
    %v2335 = vunpack.c.l.bf16 %v2301
    %v2336 = vunpack.c.l.bf16 %v2302
    %v2337 = vunpack.c.l.bf16 %v2303
    %v2338 = vunpack.c.l.bf16 %v2304
    %v2339 = vunpack.c.l.bf16 %v2305
    %v2340 = vunpack.c.l.bf16 %v2306
    %v2341 = vunpack.c.l.bf16 %v2307
    %v2342 = vunpack.c.l.bf16 %v2308
    %v2343 = vunpack.c.l.bf16 %v2309
    %v2344 = vunpack.c.l.bf16 %v2310
    %v2345 = vunpack.c.l.bf16 %v2312
    %v2346 = vlaneseq
    %v2347 = vshrl.u32 %v2346, 7
    %v2348 = vsub.s32 0, %v2347
    %v2349 = vrot.slane %v2345, %v2348
    %v2350 = vmul.f32 %v2313, %v2349
    %v2351 = vmul.f32 %v1532, %v2349
    %v2352 = vmul.f32 %v1762, %v2349
    %v2353 = vmul.f32 %v2314, %v2349
    %v2354 = vmul.f32 %v1534, %v2349
    %v2355 = vmul.f32 %v1763, %v2349
    %v2356 = vmul.f32 %v2315, %v2349
    %v2357 = vmul.f32 %v1536, %v2349
    %v2358 = vmul.f32 %v1764, %v2349
    %v2359 = vmul.f32 %v2316, %v2349
    %v2360 = vmul.f32 %v1538, %v2349
    %v2361 = vmul.f32 %v1765, %v2349
    %v2362 = vmul.f32 %v2317, %v2349
    %v2363 = vmul.f32 %v1540, %v2349
    %v2364 = vmul.f32 %v1766, %v2349
    %v2365 = vmul.f32 %v2318, %v2349
    %v2366 = vmul.f32 %v1542, %v2349
    %v2367 = vmul.f32 %v1767, %v2349
    %v2368 = vmul.f32 %v2319, %v2349
    %v2369 = vmul.f32 %v1544, %v2349
    %v2370 = vmul.f32 %v1768, %v2349
    %v2371 = vmul.f32 %v2320, %v2349
    %v2372 = vmul.f32 %v1546, %v2349
    %v2373 = vmul.f32 %v1769, %v2349
    %v2374 = vmul.f32 %v2321, %v2349
    %v2375 = vmul.f32 %v1548, %v2349
    %v2376 = vmul.f32 %v1770, %v2349
    %v2377 = vmul.f32 %v2322, %v2349
    %v2378 = vmul.f32 %v1550, %v2349
    %v2379 = vmul.f32 %v1771, %v2349
    %v2380 = vmul.f32 %v2323, %v2349
    %v2381 = vmul.f32 %v1552, %v2349
    %v2382 = vmul.f32 %v1772, %v2349
    %v2383 = vmul.f32 %v2324, %v2349
    %v2384 = vmul.f32 %v1554, %v2349
    %v2385 = vmul.f32 %v1773, %v2349
    %v2386 = vmul.f32 %v2325, %v2349
    %v2387 = vmul.f32 %v1556, %v2349
    %v2388 = vmul.f32 %v1774, %v2349
    %v2389 = vmul.f32 %v2326, %v2349
    %v2390 = vmul.f32 %v1558, %v2349
    %v2391 = vmul.f32 %v1775, %v2349
    %v2392 = vmul.f32 %v2327, %v2349
    %v2393 = vmul.f32 %v1560, %v2349
    %v2394 = vmul.f32 %v1776, %v2349
    %v2395 = vmul.f32 %v2328, %v2349
    %v2396 = vmul.f32 %v1562, %v2349
    %v2397 = vmul.f32 %v1777, %v2349
    %v2398 = vmul.f32 %v2329, %v2349
    %v2399 = vmul.f32 %v1564, %v2349
    %v2400 = vmul.f32 %v1778, %v2349
    %v2401 = vmul.f32 %v2330, %v2349
    %v2402 = vmul.f32 %v1566, %v2349
    %v2403 = vmul.f32 %v1779, %v2349
    %v2404 = vmul.f32 %v2331, %v2349
    %v2405 = vmul.f32 %v1568, %v2349
    %v2406 = vmul.f32 %v1780, %v2349
    %v2407 = vmul.f32 %v2332, %v2349
    %v2408 = vmul.f32 %v1570, %v2349
    %v2409 = vmul.f32 %v1781, %v2349
    %v2410 = vmul.f32 %v2333, %v2349
    %v2411 = vmul.f32 %v1572, %v2349
    %v2412 = vmul.f32 %v1782, %v2349
    %v2413 = vmul.f32 %v2334, %v2349
    %v2414 = vmul.f32 %v1574, %v2349
    %v2415 = vmul.f32 %v1783, %v2349
    %v2416 = vmul.f32 %v2335, %v2349
    %v2417 = vmul.f32 %v1576, %v2349
    %v2418 = vmul.f32 %v1784, %v2349
    %v2419 = vmul.f32 %v2336, %v2349
    %v2420 = vmul.f32 %v1578, %v2349
    %v2421 = vmul.f32 %v1785, %v2349
    %v2422 = vmul.f32 %v2337, %v2349
    %v2423 = vmul.f32 %v1580, %v2349
    %v2424 = vmul.f32 %v1786, %v2349
    %v2425 = vmul.f32 %v2338, %v2349
    %v2426 = vmul.f32 %v1582, %v2349
    %v2427 = vmul.f32 %v1787, %v2349
    %v2428 = vmul.f32 %v2339, %v2349
    %v2429 = vmul.f32 %v1584, %v2349
    %v2430 = vmul.f32 %v1788, %v2349
    %v2431 = vmul.f32 %v2340, %v2349
    %v2432 = vmul.f32 %v1586, %v2349
    %v2433 = vmul.f32 %v1789, %v2349
    %v2434 = vmul.f32 %v2341, %v2349
    %v2435 = vmul.f32 %v1588, %v2349
    %v2436 = vmul.f32 %v1790, %v2349
    %v2437 = vmul.f32 %v2342, %v2349
    %v2438 = vmul.f32 %v1590, %v2349
    %v2439 = vmul.f32 %v1791, %v2349
    %v2440 = vmul.f32 %v2343, %v2349
    %v2441 = vmul.f32 %v1592, %v2349
    %v2442 = vmul.f32 %v1792, %v2349
    %v2443 = vmul.f32 %v2344, %v2349
    %v2444 = vmul.f32 %v1594, %v2349
    %v2445 = vmul.f32 %v1793, %v2349
    %v2542 = vrot.slane %v2350, 2
    %v2543 = vrot.slane %v2351, 2
    %v2544 = vsel %vm1172, %v2542, %v2543
    %v2545 = vrot.slane %v2352, 2
    %v2546 = vsel %vm1172, %v2543, %v2545
    %v2547 = vrot.slane %v2353, 2
    %v2548 = vrot.slane %v2354, 2
    %v2549 = vsel %vm1172, %v2547, %v2548
    %v2550 = vrot.slane %v2355, 2
    %v2551 = vsel %vm1172, %v2548, %v2550
    %v2552 = vrot.slane %v2356, 2
    %v2553 = vrot.slane %v2357, 2
    %v2554 = vsel %vm1172, %v2552, %v2553
    %v2555 = vrot.slane %v2358, 2
    %v2556 = vsel %vm1172, %v2553, %v2555
    %v2557 = vrot.slane %v2359, 2
    %v2558 = vrot.slane %v2360, 2
    %v2559 = vsel %vm1172, %v2557, %v2558
    %v2560 = vrot.slane %v2361, 2
    %v2561 = vsel %vm1172, %v2558, %v2560
    %v2562 = vrot.slane %v2362, 2
    %v2563 = vrot.slane %v2363, 2
    %v2564 = vsel %vm1172, %v2562, %v2563
    %v2565 = vrot.slane %v2364, 2
    %v2566 = vsel %vm1172, %v2563, %v2565
    %v2567 = vrot.slane %v2365, 2
    %v2568 = vrot.slane %v2366, 2
    %v2569 = vsel %vm1172, %v2567, %v2568
    %v2570 = vrot.slane %v2367, 2
    %v2571 = vsel %vm1172, %v2568, %v2570
    %v2572 = vrot.slane %v2368, 2
    %v2573 = vrot.slane %v2369, 2
    %v2574 = vsel %vm1172, %v2572, %v2573
    %v2575 = vrot.slane %v2370, 2
    %v2576 = vsel %vm1172, %v2573, %v2575
    %v2577 = vrot.slane %v2371, 2
    %v2578 = vrot.slane %v2372, 2
    %v2579 = vsel %vm1172, %v2577, %v2578
    %v2580 = vrot.slane %v2373, 2
    %v2581 = vsel %vm1172, %v2578, %v2580
    %v2582 = vrot.slane %v2374, 2
    %v2583 = vrot.slane %v2375, 2
    %v2584 = vsel %vm1172, %v2582, %v2583
    %v2585 = vrot.slane %v2376, 2
    %v2586 = vsel %vm1172, %v2583, %v2585
    %v2587 = vrot.slane %v2377, 2
    %v2588 = vrot.slane %v2378, 2
    %v2589 = vsel %vm1172, %v2587, %v2588
    %v2590 = vrot.slane %v2379, 2
    %v2591 = vsel %vm1172, %v2588, %v2590
    %v2592 = vrot.slane %v2380, 2
    %v2593 = vrot.slane %v2381, 2
    %v2594 = vsel %vm1172, %v2592, %v2593
    %v2595 = vrot.slane %v2382, 2
    %v2596 = vsel %vm1172, %v2593, %v2595
    %v2597 = vrot.slane %v2383, 2
    %v2598 = vrot.slane %v2384, 2
    %v2599 = vsel %vm1172, %v2597, %v2598
    %v2600 = vrot.slane %v2385, 2
    %v2601 = vsel %vm1172, %v2598, %v2600
    %v2602 = vrot.slane %v2386, 2
    %v2603 = vrot.slane %v2387, 2
    %v2604 = vsel %vm1172, %v2602, %v2603
    %v2605 = vrot.slane %v2388, 2
    %v2606 = vsel %vm1172, %v2603, %v2605
    %v2607 = vrot.slane %v2389, 2
    %v2608 = vrot.slane %v2390, 2
    %v2609 = vsel %vm1172, %v2607, %v2608
    %v2610 = vrot.slane %v2391, 2
    %v2611 = vsel %vm1172, %v2608, %v2610
    %v2612 = vrot.slane %v2392, 2
    %v2613 = vrot.slane %v2393, 2
    %v2614 = vsel %vm1172, %v2612, %v2613
    %v2615 = vrot.slane %v2394, 2
    %v2616 = vsel %vm1172, %v2613, %v2615
    %v2617 = vrot.slane %v2395, 2
    %v2618 = vrot.slane %v2396, 2
    %v2619 = vsel %vm1172, %v2617, %v2618
    %v2620 = vrot.slane %v2397, 2
    %v2621 = vsel %vm1172, %v2618, %v2620
    %v2622 = vrot.slane %v2398, 2
    %v2623 = vrot.slane %v2399, 2
    %v2624 = vsel %vm1172, %v2622, %v2623
    %v2625 = vrot.slane %v2400, 2
    %v2626 = vsel %vm1172, %v2623, %v2625
    %v2627 = vrot.slane %v2401, 2
    %v2628 = vrot.slane %v2402, 2
    %v2629 = vsel %vm1172, %v2627, %v2628
    %v2630 = vrot.slane %v2403, 2
    %v2631 = vsel %vm1172, %v2628, %v2630
    %v2632 = vrot.slane %v2404, 2
    %v2633 = vrot.slane %v2405, 2
    %v2634 = vsel %vm1172, %v2632, %v2633
    %v2635 = vrot.slane %v2406, 2
    %v2636 = vsel %vm1172, %v2633, %v2635
    %v2637 = vrot.slane %v2407, 2
    %v2638 = vrot.slane %v2408, 2
    %v2639 = vsel %vm1172, %v2637, %v2638
    %v2640 = vrot.slane %v2409, 2
    %v2641 = vsel %vm1172, %v2638, %v2640
    %v2642 = vrot.slane %v2410, 2
    %v2643 = vrot.slane %v2411, 2
    %v2644 = vsel %vm1172, %v2642, %v2643
    %v2645 = vrot.slane %v2412, 2
    %v2646 = vsel %vm1172, %v2643, %v2645
    %v2647 = vrot.slane %v2413, 2
    %v2648 = vrot.slane %v2414, 2
    %v2649 = vsel %vm1172, %v2647, %v2648
    %v2650 = vrot.slane %v2415, 2
    %v2651 = vsel %vm1172, %v2648, %v2650
    %v2652 = vrot.slane %v2416, 2
    %v2653 = vrot.slane %v2417, 2
    %v2654 = vsel %vm1172, %v2652, %v2653
    %v2655 = vrot.slane %v2418, 2
    %v2656 = vsel %vm1172, %v2653, %v2655
    %v2657 = vrot.slane %v2419, 2
    %v2658 = vrot.slane %v2420, 2
    %v2659 = vsel %vm1172, %v2657, %v2658
    %v2660 = vrot.slane %v2421, 2
    %v2661 = vsel %vm1172, %v2658, %v2660
    %v2662 = vrot.slane %v2422, 2
    %v2663 = vrot.slane %v2423, 2
    %v2664 = vsel %vm1172, %v2662, %v2663
    %v2665 = vrot.slane %v2424, 2
    %v2666 = vsel %vm1172, %v2663, %v2665
    %v2667 = vrot.slane %v2425, 2
    %v2668 = vrot.slane %v2426, 2
    %v2669 = vsel %vm1172, %v2667, %v2668
    %v2670 = vrot.slane %v2427, 2
    %v2671 = vsel %vm1172, %v2668, %v2670
    %v2672 = vrot.slane %v2428, 2
    %v2673 = vrot.slane %v2429, 2
    %v2674 = vsel %vm1172, %v2672, %v2673
    %v2675 = vrot.slane %v2430, 2
    %v2676 = vsel %vm1172, %v2673, %v2675
    %v2677 = vrot.slane %v2431, 2
    %v2678 = vrot.slane %v2432, 2
    %v2679 = vsel %vm1172, %v2677, %v2678
    %v2680 = vrot.slane %v2433, 2
    %v2681 = vsel %vm1172, %v2678, %v2680
    %v2682 = vrot.slane %v2434, 2
    %v2683 = vrot.slane %v2435, 2
    %v2684 = vsel %vm1172, %v2682, %v2683
    %v2685 = vrot.slane %v2436, 2
    %v2686 = vsel %vm1172, %v2683, %v2685
    %v2687 = vrot.slane %v2437, 2
    %v2688 = vrot.slane %v2438, 2
    %v2689 = vsel %vm1172, %v2687, %v2688
    %v2690 = vrot.slane %v2439, 2
    %v2691 = vsel %vm1172, %v2688, %v2690
    %v2692 = vrot.slane %v2440, 2
    %v2693 = vrot.slane %v2441, 2
    %v2694 = vsel %vm1172, %v2692, %v2693
    %v2695 = vrot.slane %v2442, 2
    %v2696 = vsel %vm1172, %v2693, %v2695
    %v2697 = vrot.slane %v2443, 2
    %v2698 = vrot.slane %v2444, 2
    %v2699 = vsel %vm1172, %v2697, %v2698
    %v2700 = vrot.slane %v2445, 2
    %v2701 = vsel %vm1172, %v2698, %v2700
    %v2766 = vadd.f32 %v2215, %v2544
    %v2767 = vadd.f32 %v2216, %v2546
    %v2768 = vadd.f32 %v2217, %v2549
    %v2769 = vadd.f32 %v2218, %v2551
    %v2770 = vadd.f32 %v2219, %v2554
    %v2771 = vadd.f32 %v2220, %v2556
    %v2772 = vadd.f32 %v2221, %v2559
    %v2773 = vadd.f32 %v2222, %v2561
    %v2774 = vadd.f32 %v2223, %v2564
    %v2775 = vadd.f32 %v2224, %v2566
    %v2776 = vadd.f32 %v2225, %v2569
    %v2777 = vadd.f32 %v2226, %v2571
    %v2778 = vadd.f32 %v2227, %v2574
    %v2779 = vadd.f32 %v2228, %v2576
    %v2780 = vadd.f32 %v2229, %v2579
    %v2781 = vadd.f32 %v2230, %v2581
    %v2782 = vadd.f32 %v2231, %v2584
    %v2783 = vadd.f32 %v2232, %v2586
    %v2784 = vadd.f32 %v2233, %v2589
    %v2785 = vadd.f32 %v2234, %v2591
    %v2786 = vadd.f32 %v2235, %v2594
    %v2787 = vadd.f32 %v2236, %v2596
    %v2788 = vadd.f32 %v2237, %v2599
    %v2789 = vadd.f32 %v2238, %v2601
    %v2790 = vadd.f32 %v2239, %v2604
    %v2791 = vadd.f32 %v2240, %v2606
    %v2792 = vadd.f32 %v2241, %v2609
    %v2793 = vadd.f32 %v2242, %v2611
    %v2794 = vadd.f32 %v2243, %v2614
    %v2795 = vadd.f32 %v2244, %v2616
    %v2796 = vadd.f32 %v2245, %v2619
    %v2797 = vadd.f32 %v2246, %v2621
    %v2798 = vadd.f32 %v2247, %v2624
    %v2799 = vadd.f32 %v2248, %v2626
    %v2800 = vadd.f32 %v2249, %v2629
    %v2801 = vadd.f32 %v2250, %v2631
    %v2802 = vadd.f32 %v2251, %v2634
    %v2803 = vadd.f32 %v2252, %v2636
    %v2804 = vadd.f32 %v2253, %v2639
    %v2805 = vadd.f32 %v2254, %v2641
    %v2806 = vadd.f32 %v2255, %v2644
    %v2807 = vadd.f32 %v2256, %v2646
    %v2808 = vadd.f32 %v2257, %v2649
    %v2809 = vadd.f32 %v2258, %v2651
    %v2810 = vadd.f32 %v2259, %v2654
    %v2811 = vadd.f32 %v2260, %v2656
    %v2812 = vadd.f32 %v2261, %v2659
    %v2813 = vadd.f32 %v2262, %v2661
    %v2814 = vadd.f32 %v2263, %v2664
    %v2815 = vadd.f32 %v2264, %v2666
    %v2816 = vadd.f32 %v2265, %v2669
    %v2817 = vadd.f32 %v2266, %v2671
    %v2818 = vadd.f32 %v2267, %v2674
    %v2819 = vadd.f32 %v2268, %v2676
    %v2820 = vadd.f32 %v2269, %v2679
    %v2821 = vadd.f32 %v2270, %v2681
    %v2822 = vadd.f32 %v2271, %v2684
    %v2823 = vadd.f32 %v2272, %v2686
    %v2824 = vadd.f32 %v2273, %v2689
    %v2825 = vadd.f32 %v2274, %v2691
    %v2826 = vadd.f32 %v2275, %v2694
    %v2827 = vadd.f32 %v2276, %v2696
    %v2828 = vadd.f32 %v2277, %v2699
    %v2829 = vadd.f32 %v2278, %v2701
    %s2830 = sadd.s32 %s84, 2
    %s2831 = smul.u32 %s2830, 3
    %s2832 = smul.addr %s2831, 4
    %s2833 = scalar_lea.vmem [#allocation2], %s2832
    %v2834 = vld [vmem:[%s2833] sm:$0xf]
    %v2835 = vld [vmem:[%s2833 + $0x4] sm:$0xf]
    %v2836 = vld [vmem:[%s2833 + $0xc] sm:$0xf]
    %v2837 = vld [vmem:[%s2833 + $0x10] sm:$0xf]
    %v2838 = vld [vmem:[%s2833 + $0x18] sm:$0xf]
    %v2839 = vld [vmem:[%s2833 + $0x1c] sm:$0xf]
    %v2840 = vld [vmem:[%s2833 + $0x24] sm:$0xf]
    %v2841 = vld [vmem:[%s2833 + $0x28] sm:$0xf]
    %v2842 = vld [vmem:[%s2833 + $0x30] sm:$0xf]
    %v2843 = vld [vmem:[%s2833 + $0x34] sm:$0xf]
    %v2844 = vld [vmem:[%s2833 + $0x3c] sm:$0xf]
    %v2845 = vld [vmem:[%s2833 + $0x40] sm:$0xf]
    %v2846 = vld [vmem:[%s2833 + $0x48] sm:$0xf]
    %v2847 = vld [vmem:[%s2833 + $0x4c] sm:$0xf]
    %v2848 = vld [vmem:[%s2833 + $0x54] sm:$0xf]
    %v2849 = vld [vmem:[%s2833 + $0x58] sm:$0xf]
    %v2850 = vld [vmem:[%s2833 + $0x60] sm:$0xf]
    %v2851 = vld [vmem:[%s2833 + $0x64] sm:$0xf]
    %v2852 = vld [vmem:[%s2833 + $0x6c] sm:$0xf]
    %v2853 = vld [vmem:[%s2833 + $0x70] sm:$0xf]
    %v2854 = vld [vmem:[%s2833 + $0x78] sm:$0xf]
    %v2855 = vld [vmem:[%s2833 + $0x7c] sm:$0xf]
    %v2856 = vld [vmem:[%s2833 + $0x84] sm:$0xf]
    %v2857 = vld [vmem:[%s2833 + $0x88] sm:$0xf]
    %v2858 = vld [vmem:[%s2833 + $0x90] sm:$0xf]
    %v2859 = vld [vmem:[%s2833 + $0x94] sm:$0xf]
    %v2860 = vld [vmem:[%s2833 + $0x9c] sm:$0xf]
    %v2861 = vld [vmem:[%s2833 + $0xa0] sm:$0xf]
    %v2862 = vld [vmem:[%s2833 + $0xa8] sm:$0xf]
    %v2863 = vld [vmem:[%s2833 + $0xac] sm:$0xf]
    %v2864 = vld [vmem:[%s2833 + $0xb4] sm:$0xf]
    %v2865 = vld [vmem:[%s2833 + $0xb8] sm:$0xf]
    %v2866 = vld [vmem:[%s2833 + $0xd8] sm:$0xf]
    %v2867 = vld [vmem:[%s2833 + $0xdc] sm:$0xf]
    %v2868 = vld [vmem:[%s2833 + $0xe4] sm:$0xf]
    %v2869 = vld [vmem:[%s2833 + $0xe8] sm:$0xf]
    %v2870 = vld [vmem:[%s2833 + $0xf0] sm:$0xf]
    %v2871 = vld [vmem:[%s2833 + $0xf4] sm:$0xf]
    %v2872 = vld [vmem:[%s2833 + $0xfc] sm:$0xf]
    %v2873 = vld [vmem:[%s2833 + $0x100] sm:$0xf]
    %v2874 = vld [vmem:[%s2833 + $0x108] sm:$0xf]
    %v2875 = vld [vmem:[%s2833 + $0x10c] sm:$0xf]
    %v2876 = vld [vmem:[%s2833 + $0x114] sm:$0xf]
    %v2877 = vld [vmem:[%s2833 + $0x118] sm:$0xf]
    %v2878 = vld [vmem:[%s2833 + $0x120] sm:$0xf]
    %v2879 = vld [vmem:[%s2833 + $0x124] sm:$0xf]
    %v2880 = vld [vmem:[%s2833 + $0x12c] sm:$0xf]
    %v2881 = vld [vmem:[%s2833 + $0x130] sm:$0xf]
    %v2882 = vld [vmem:[%s2833 + $0x138] sm:$0xf]
    %v2883 = vld [vmem:[%s2833 + $0x13c] sm:$0xf]
    %v2884 = vld [vmem:[%s2833 + $0x144] sm:$0xf]
    %v2885 = vld [vmem:[%s2833 + $0x148] sm:$0xf]
    %v2886 = vld [vmem:[%s2833 + $0x150] sm:$0xf]
    %v2887 = vld [vmem:[%s2833 + $0x154] sm:$0xf]
    %v2888 = vld [vmem:[%s2833 + $0x15c] sm:$0xf]
    %v2889 = vld [vmem:[%s2833 + $0x160] sm:$0xf]
    %v2890 = vld [vmem:[%s2833 + $0x168] sm:$0xf]
    %v2891 = vld [vmem:[%s2833 + $0x16c] sm:$0xf]
    %v2892 = vld [vmem:[%s2833 + $0x174] sm:$0xf]
    %v2893 = vld [vmem:[%s2833 + $0x178] sm:$0xf]
    %v2894 = vld [vmem:[%s2833 + $0x180] sm:$0xf]
    %v2895 = vld [vmem:[%s2833 + $0x184] sm:$0xf]
    %v2896 = vld [vmem:[%s2833 + $0x18c] sm:$0xf]
    %v2897 = vld [vmem:[%s2833 + $0x190] sm:$0xf]
    %s2898 = scalar_lea.vmem [#allocation5], 6
    %v2899 = vld [vmem:[%s2898] sm:$0x1]
    %v2900 = vunpack.c.l.bf16 %v2834
    %v2901 = vunpack.c.l.bf16 %v2835
    %v2902 = vunpack.c.l.bf16 %v2836
    %v2903 = vunpack.c.l.bf16 %v2837
    %v2904 = vunpack.c.l.bf16 %v2838
    %v2905 = vunpack.c.l.bf16 %v2839
    %v2906 = vunpack.c.l.bf16 %v2840
    %v2907 = vunpack.c.l.bf16 %v2841
    %v2908 = vunpack.c.l.bf16 %v2842
    %v2909 = vunpack.c.l.bf16 %v2843
    %v2910 = vunpack.c.l.bf16 %v2844
    %v2911 = vunpack.c.l.bf16 %v2845
    %v2912 = vunpack.c.l.bf16 %v2846
    %v2913 = vunpack.c.l.bf16 %v2847
    %v2914 = vunpack.c.l.bf16 %v2848
    %v2915 = vunpack.c.l.bf16 %v2849
    %v2916 = vunpack.c.l.bf16 %v2850
    %v2917 = vunpack.c.l.bf16 %v2851
    %v2918 = vunpack.c.l.bf16 %v2852
    %v2919 = vunpack.c.l.bf16 %v2853
    %v2920 = vunpack.c.l.bf16 %v2854
    %v2921 = vunpack.c.l.bf16 %v2855
    %v2922 = vunpack.c.l.bf16 %v2856
    %v2923 = vunpack.c.l.bf16 %v2857
    %v2924 = vunpack.c.l.bf16 %v2858
    %v2925 = vunpack.c.l.bf16 %v2859
    %v2926 = vunpack.c.l.bf16 %v2860
    %v2927 = vunpack.c.l.bf16 %v2861
    %v2928 = vunpack.c.l.bf16 %v2862
    %v2929 = vunpack.c.l.bf16 %v2863
    %v2930 = vunpack.c.l.bf16 %v2864
    %v2931 = vunpack.c.l.bf16 %v2865
    %v2932 = vunpack.c.l.bf16 %v2866
    %v2933 = vunpack.c.l.bf16 %v2867
    %v2934 = vunpack.c.l.bf16 %v2868
    %v2935 = vunpack.c.l.bf16 %v2869
    %v2936 = vunpack.c.l.bf16 %v2870
    %v2937 = vunpack.c.l.bf16 %v2871
    %v2938 = vunpack.c.l.bf16 %v2872
    %v2939 = vunpack.c.l.bf16 %v2873
    %v2940 = vunpack.c.l.bf16 %v2874
    %v2941 = vunpack.c.l.bf16 %v2875
    %v2942 = vunpack.c.l.bf16 %v2876
    %v2943 = vunpack.c.l.bf16 %v2877
    %v2944 = vunpack.c.l.bf16 %v2878
    %v2945 = vunpack.c.l.bf16 %v2879
    %v2946 = vunpack.c.l.bf16 %v2880
    %v2947 = vunpack.c.l.bf16 %v2881
    %v2948 = vunpack.c.l.bf16 %v2882
    %v2949 = vunpack.c.l.bf16 %v2883
    %v2950 = vunpack.c.l.bf16 %v2884
    %v2951 = vunpack.c.l.bf16 %v2885
    %v2952 = vunpack.c.l.bf16 %v2886
    %v2953 = vunpack.c.l.bf16 %v2887
    %v2954 = vunpack.c.l.bf16 %v2888
    %v2955 = vunpack.c.l.bf16 %v2889
    %v2956 = vunpack.c.l.bf16 %v2890
    %v2957 = vunpack.c.l.bf16 %v2891
    %v2958 = vunpack.c.l.bf16 %v2892
    %v2959 = vunpack.c.l.bf16 %v2893
    %v2960 = vunpack.c.l.bf16 %v2894
    %v2961 = vunpack.c.l.bf16 %v2895
    %v2962 = vunpack.c.l.bf16 %v2896
    %v2963 = vunpack.c.l.bf16 %v2897
    %v2964 = vunpack.c.l.bf16 %v2899
    %v2965 = vlaneseq
    %v2966 = vshrl.u32 %v2965, 7
    %v2967 = vsub.s32 0, %v2966
    %v2968 = vrot.slane %v2964, %v2967
    %v2969 = vmul.f32 %v2900, %v2968
    %v2970 = vmul.f32 %v2901, %v2968
    %v2971 = vmul.f32 %v2902, %v2968
    %v2972 = vmul.f32 %v2903, %v2968
    %v2973 = vmul.f32 %v2904, %v2968
    %v2974 = vmul.f32 %v2905, %v2968
    %v2975 = vmul.f32 %v2906, %v2968
    %v2976 = vmul.f32 %v2907, %v2968
    %v2977 = vmul.f32 %v2908, %v2968
    %v2978 = vmul.f32 %v2909, %v2968
    %v2979 = vmul.f32 %v2910, %v2968
    %v2980 = vmul.f32 %v2911, %v2968
    %v2981 = vmul.f32 %v2912, %v2968
    %v2982 = vmul.f32 %v2913, %v2968
    %v2983 = vmul.f32 %v2914, %v2968
    %v2984 = vmul.f32 %v2915, %v2968
    %v2985 = vmul.f32 %v2916, %v2968
    %v2986 = vmul.f32 %v2917, %v2968
    %v2987 = vmul.f32 %v2918, %v2968
    %v2988 = vmul.f32 %v2919, %v2968
    %v2989 = vmul.f32 %v2920, %v2968
    %v2990 = vmul.f32 %v2921, %v2968
    %v2991 = vmul.f32 %v2922, %v2968
    %v2992 = vmul.f32 %v2923, %v2968
    %v2993 = vmul.f32 %v2924, %v2968
    %v2994 = vmul.f32 %v2925, %v2968
    %v2995 = vmul.f32 %v2926, %v2968
    %v2996 = vmul.f32 %v2927, %v2968
    %v2997 = vmul.f32 %v2928, %v2968
    %v2998 = vmul.f32 %v2929, %v2968
    %v2999 = vmul.f32 %v2930, %v2968
    %v3000 = vmul.f32 %v2931, %v2968
    %v3001 = vmul.f32 %v2932, %v2968
    %v3002 = vmul.f32 %v2933, %v2968
    %v3003 = vmul.f32 %v2934, %v2968
    %v3004 = vmul.f32 %v2935, %v2968
    %v3005 = vmul.f32 %v2936, %v2968
    %v3006 = vmul.f32 %v2937, %v2968
    %v3007 = vmul.f32 %v2938, %v2968
    %v3008 = vmul.f32 %v2939, %v2968
    %v3009 = vmul.f32 %v2940, %v2968
    %v3010 = vmul.f32 %v2941, %v2968
    %v3011 = vmul.f32 %v2942, %v2968
    %v3012 = vmul.f32 %v2943, %v2968
    %v3013 = vmul.f32 %v2944, %v2968
    %v3014 = vmul.f32 %v2945, %v2968
    %v3015 = vmul.f32 %v2946, %v2968
    %v3016 = vmul.f32 %v2947, %v2968
    %v3017 = vmul.f32 %v2948, %v2968
    %v3018 = vmul.f32 %v2949, %v2968
    %v3019 = vmul.f32 %v2950, %v2968
    %v3020 = vmul.f32 %v2951, %v2968
    %v3021 = vmul.f32 %v2952, %v2968
    %v3022 = vmul.f32 %v2953, %v2968
    %v3023 = vmul.f32 %v2954, %v2968
    %v3024 = vmul.f32 %v2955, %v2968
    %v3025 = vmul.f32 %v2956, %v2968
    %v3026 = vmul.f32 %v2957, %v2968
    %v3027 = vmul.f32 %v2958, %v2968
    %v3028 = vmul.f32 %v2959, %v2968
    %v3029 = vmul.f32 %v2960, %v2968
    %v3030 = vmul.f32 %v2961, %v2968
    %v3031 = vmul.f32 %v2962, %v2968
    %v3032 = vmul.f32 %v2963, %v2968
    %v3033 = vadd.f32 %v2766, %v2969
    %v3034 = vadd.f32 %v2767, %v2970
    %v3035 = vadd.f32 %v2768, %v2971
    %v3036 = vadd.f32 %v2769, %v2972
    %v3037 = vadd.f32 %v2770, %v2973
    %v3038 = vadd.f32 %v2771, %v2974
    %v3039 = vadd.f32 %v2772, %v2975
    %v3040 = vadd.f32 %v2773, %v2976
    %v3041 = vadd.f32 %v2774, %v2977
    %v3042 = vadd.f32 %v2775, %v2978
    %v3043 = vadd.f32 %v2776, %v2979
    %v3044 = vadd.f32 %v2777, %v2980
    %v3045 = vadd.f32 %v2778, %v2981
    %v3046 = vadd.f32 %v2779, %v2982
    %v3047 = vadd.f32 %v2780, %v2983
    %v3048 = vadd.f32 %v2781, %v2984
    %v3049 = vadd.f32 %v2782, %v2985
    %v3050 = vadd.f32 %v2783, %v2986
    %v3051 = vadd.f32 %v2784, %v2987
    %v3052 = vadd.f32 %v2785, %v2988
    %v3053 = vadd.f32 %v2786, %v2989
    %v3054 = vadd.f32 %v2787, %v2990
    %v3055 = vadd.f32 %v2788, %v2991
    %v3056 = vadd.f32 %v2789, %v2992
    %v3057 = vadd.f32 %v2790, %v2993
    %v3058 = vadd.f32 %v2791, %v2994
    %v3059 = vadd.f32 %v2792, %v2995
    %v3060 = vadd.f32 %v2793, %v2996
    %v3061 = vadd.f32 %v2794, %v2997
    %v3062 = vadd.f32 %v2795, %v2998
    %v3063 = vadd.f32 %v2796, %v2999
    %v3064 = vadd.f32 %v2797, %v3000
    %v3065 = vadd.f32 %v2798, %v3001
    %v3066 = vadd.f32 %v2799, %v3002
    %v3067 = vadd.f32 %v2800, %v3003
    %v3068 = vadd.f32 %v2801, %v3004
    %v3069 = vadd.f32 %v2802, %v3005
    %v3070 = vadd.f32 %v2803, %v3006
    %v3071 = vadd.f32 %v2804, %v3007
    %v3072 = vadd.f32 %v2805, %v3008
    %v3073 = vadd.f32 %v2806, %v3009
    %v3074 = vadd.f32 %v2807, %v3010
    %v3075 = vadd.f32 %v2808, %v3011
    %v3076 = vadd.f32 %v2809, %v3012
    %v3077 = vadd.f32 %v2810, %v3013
    %v3078 = vadd.f32 %v2811, %v3014
    %v3079 = vadd.f32 %v2812, %v3015
    %v3080 = vadd.f32 %v2813, %v3016
    %v3081 = vadd.f32 %v2814, %v3017
    %v3082 = vadd.f32 %v2815, %v3018
    %v3083 = vadd.f32 %v2816, %v3019
    %v3084 = vadd.f32 %v2817, %v3020
    %v3085 = vadd.f32 %v2818, %v3021
    %v3086 = vadd.f32 %v2819, %v3022
    %v3087 = vadd.f32 %v2820, %v3023
    %v3088 = vadd.f32 %v2821, %v3024
    %v3089 = vadd.f32 %v2822, %v3025
    %v3090 = vadd.f32 %v2823, %v3026
    %v3091 = vadd.f32 %v2824, %v3027
    %v3092 = vadd.f32 %v2825, %v3028
    %v3093 = vadd.f32 %v2826, %v3029
    %v3094 = vadd.f32 %v2827, %v3030
    %v3095 = vadd.f32 %v2828, %v3031
    %v3096 = vadd.f32 %v2829, %v3032
    %v3097 = vld [vmem:[%s2833 + $0x8] sm:$0x1]
    %v3098 = vld [vmem:[%s2833 + $0x14] sm:$0x1]
    %v3099 = vld [vmem:[%s2833 + $0x20] sm:$0x1]
    %v3100 = vld [vmem:[%s2833 + $0x2c] sm:$0x1]
    %v3101 = vld [vmem:[%s2833 + $0x38] sm:$0x1]
    %v3102 = vld [vmem:[%s2833 + $0x44] sm:$0x1]
    %v3103 = vld [vmem:[%s2833 + $0x50] sm:$0x1]
    %v3104 = vld [vmem:[%s2833 + $0x5c] sm:$0x1]
    %v3105 = vld [vmem:[%s2833 + $0x68] sm:$0x1]
    %v3106 = vld [vmem:[%s2833 + $0x74] sm:$0x1]
    %v3107 = vld [vmem:[%s2833 + $0x80] sm:$0x1]
    %v3108 = vld [vmem:[%s2833 + $0x8c] sm:$0x1]
    %v3109 = vld [vmem:[%s2833 + $0x98] sm:$0x1]
    %v3110 = vld [vmem:[%s2833 + $0xa4] sm:$0x1]
    %v3111 = vld [vmem:[%s2833 + $0xb0] sm:$0x1]
    %v3112 = vld [vmem:[%s2833 + $0xbc] sm:$0x1]
    %v3113 = vld [vmem:[%s2833 + $0xe0] sm:$0x1]
    %v3114 = vld [vmem:[%s2833 + $0xec] sm:$0x1]
    %v3115 = vld [vmem:[%s2833 + $0xf8] sm:$0x1]
    %v3116 = vld [vmem:[%s2833 + $0x104] sm:$0x1]
    %v3117 = vld [vmem:[%s2833 + $0x110] sm:$0x1]
    %v3118 = vld [vmem:[%s2833 + $0x11c] sm:$0x1]
    %v3119 = vld [vmem:[%s2833 + $0x128] sm:$0x1]
    %v3120 = vld [vmem:[%s2833 + $0x134] sm:$0x1]
    %v3121 = vld [vmem:[%s2833 + $0x140] sm:$0x1]
    %v3122 = vld [vmem:[%s2833 + $0x14c] sm:$0x1]
    %v3123 = vld [vmem:[%s2833 + $0x158] sm:$0x1]
    %v3124 = vld [vmem:[%s2833 + $0x164] sm:$0x1]
    %v3125 = vld [vmem:[%s2833 + $0x170] sm:$0x1]
    %v3126 = vld [vmem:[%s2833 + $0x17c] sm:$0x1]
    %v3127 = vld [vmem:[%s2833 + $0x188] sm:$0x1]
    %v3128 = vld [vmem:[%s2833 + $0x194] sm:$0x1]
    %s3129 = scalar_lea.vmem [#allocation5], 7
    %v3130 = vld [vmem:[%s3129] sm:$0x1]
    %v3131 = vunpack.c.l.bf16 %v3097
    %v3132 = vunpack.c.l.bf16 %v3098
    %v3133 = vunpack.c.l.bf16 %v3099
    %v3134 = vunpack.c.l.bf16 %v3100
    %v3135 = vunpack.c.l.bf16 %v3101
    %v3136 = vunpack.c.l.bf16 %v3102
    %v3137 = vunpack.c.l.bf16 %v3103
    %v3138 = vunpack.c.l.bf16 %v3104
    %v3139 = vunpack.c.l.bf16 %v3105
    %v3140 = vunpack.c.l.bf16 %v3106
    %v3141 = vunpack.c.l.bf16 %v3107
    %v3142 = vunpack.c.l.bf16 %v3108
    %v3143 = vunpack.c.l.bf16 %v3109
    %v3144 = vunpack.c.l.bf16 %v3110
    %v3145 = vunpack.c.l.bf16 %v3111
    %v3146 = vunpack.c.l.bf16 %v3112
    %v3147 = vunpack.c.l.bf16 %v3113
    %v3148 = vunpack.c.l.bf16 %v3114
    %v3149 = vunpack.c.l.bf16 %v3115
    %v3150 = vunpack.c.l.bf16 %v3116
    %v3151 = vunpack.c.l.bf16 %v3117
    %v3152 = vunpack.c.l.bf16 %v3118
    %v3153 = vunpack.c.l.bf16 %v3119
    %v3154 = vunpack.c.l.bf16 %v3120
    %v3155 = vunpack.c.l.bf16 %v3121
    %v3156 = vunpack.c.l.bf16 %v3122
    %v3157 = vunpack.c.l.bf16 %v3123
    %v3158 = vunpack.c.l.bf16 %v3124
    %v3159 = vunpack.c.l.bf16 %v3125
    %v3160 = vunpack.c.l.bf16 %v3126
    %v3161 = vunpack.c.l.bf16 %v3127
    %v3162 = vunpack.c.l.bf16 %v3128
    %v3163 = vunpack.c.l.bf16 %v3130
    %v3164 = vlaneseq
    %v3165 = vshrl.u32 %v3164, 7
    %v3166 = vsub.s32 0, %v3165
    %v3167 = vrot.slane %v3163, %v3166
    %v3168 = vmul.f32 %v2900, %v3167
    %v3169 = vmul.f32 %v2901, %v3167
    %v3170 = vmul.f32 %v3131, %v3167
    %v3171 = vmul.f32 %v2902, %v3167
    %v3172 = vmul.f32 %v2903, %v3167
    %v3173 = vmul.f32 %v3132, %v3167
    %v3174 = vmul.f32 %v2904, %v3167
    %v3175 = vmul.f32 %v2905, %v3167
    %v3176 = vmul.f32 %v3133, %v3167
    %v3177 = vmul.f32 %v2906, %v3167
    %v3178 = vmul.f32 %v2907, %v3167
    %v3179 = vmul.f32 %v3134, %v3167
    %v3180 = vmul.f32 %v2908, %v3167
    %v3181 = vmul.f32 %v2909, %v3167
    %v3182 = vmul.f32 %v3135, %v3167
    %v3183 = vmul.f32 %v2910, %v3167
    %v3184 = vmul.f32 %v2911, %v3167
    %v3185 = vmul.f32 %v3136, %v3167
    %v3186 = vmul.f32 %v2912, %v3167
    %v3187 = vmul.f32 %v2913, %v3167
    %v3188 = vmul.f32 %v3137, %v3167
    %v3189 = vmul.f32 %v2914, %v3167
    %v3190 = vmul.f32 %v2915, %v3167
    %v3191 = vmul.f32 %v3138, %v3167
    %v3192 = vmul.f32 %v2916, %v3167
    %v3193 = vmul.f32 %v2917, %v3167
    %v3194 = vmul.f32 %v3139, %v3167
    %v3195 = vmul.f32 %v2918, %v3167
    %v3196 = vmul.f32 %v2919, %v3167
    %v3197 = vmul.f32 %v3140, %v3167
    %v3198 = vmul.f32 %v2920, %v3167
    %v3199 = vmul.f32 %v2921, %v3167
    %v3200 = vmul.f32 %v3141, %v3167
    %v3201 = vmul.f32 %v2922, %v3167
    %v3202 = vmul.f32 %v2923, %v3167
    %v3203 = vmul.f32 %v3142, %v3167
    %v3204 = vmul.f32 %v2924, %v3167
    %v3205 = vmul.f32 %v2925, %v3167
    %v3206 = vmul.f32 %v3143, %v3167
    %v3207 = vmul.f32 %v2926, %v3167
    %v3208 = vmul.f32 %v2927, %v3167
    %v3209 = vmul.f32 %v3144, %v3167
    %v3210 = vmul.f32 %v2928, %v3167
    %v3211 = vmul.f32 %v2929, %v3167
    %v3212 = vmul.f32 %v3145, %v3167
    %v3213 = vmul.f32 %v2930, %v3167
    %v3214 = vmul.f32 %v2931, %v3167
    %v3215 = vmul.f32 %v3146, %v3167
    %v3216 = vmul.f32 %v2932, %v3167
    %v3217 = vmul.f32 %v2933, %v3167
    %v3218 = vmul.f32 %v3147, %v3167
    %v3219 = vmul.f32 %v2934, %v3167
    %v3220 = vmul.f32 %v2935, %v3167
    %v3221 = vmul.f32 %v3148, %v3167
    %v3222 = vmul.f32 %v2936, %v3167
    %v3223 = vmul.f32 %v2937, %v3167
    %v3224 = vmul.f32 %v3149, %v3167
    %v3225 = vmul.f32 %v2938, %v3167
    %v3226 = vmul.f32 %v2939, %v3167
    %v3227 = vmul.f32 %v3150, %v3167
    %v3228 = vmul.f32 %v2940, %v3167
    %v3229 = vmul.f32 %v2941, %v3167
    %v3230 = vmul.f32 %v3151, %v3167
    %v3231 = vmul.f32 %v2942, %v3167
    %v3232 = vmul.f32 %v2943, %v3167
    %v3233 = vmul.f32 %v3152, %v3167
    %v3234 = vmul.f32 %v2944, %v3167
    %v3235 = vmul.f32 %v2945, %v3167
    %v3236 = vmul.f32 %v3153, %v3167
    %v3237 = vmul.f32 %v2946, %v3167
    %v3238 = vmul.f32 %v2947, %v3167
    %v3239 = vmul.f32 %v3154, %v3167
    %v3240 = vmul.f32 %v2948, %v3167
    %v3241 = vmul.f32 %v2949, %v3167
    %v3242 = vmul.f32 %v3155, %v3167
    %v3243 = vmul.f32 %v2950, %v3167
    %v3244 = vmul.f32 %v2951, %v3167
    %v3245 = vmul.f32 %v3156, %v3167
    %v3246 = vmul.f32 %v2952, %v3167
    %v3247 = vmul.f32 %v2953, %v3167
    %v3248 = vmul.f32 %v3157, %v3167
    %v3249 = vmul.f32 %v2954, %v3167
    %v3250 = vmul.f32 %v2955, %v3167
    %v3251 = vmul.f32 %v3158, %v3167
    %v3252 = vmul.f32 %v2956, %v3167
    %v3253 = vmul.f32 %v2957, %v3167
    %v3254 = vmul.f32 %v3159, %v3167
    %v3255 = vmul.f32 %v2958, %v3167
    %v3256 = vmul.f32 %v2959, %v3167
    %v3257 = vmul.f32 %v3160, %v3167
    %v3258 = vmul.f32 %v2960, %v3167
    %v3259 = vmul.f32 %v2961, %v3167
    %v3260 = vmul.f32 %v3161, %v3167
    %v3261 = vmul.f32 %v2962, %v3167
    %v3262 = vmul.f32 %v2963, %v3167
    %v3263 = vmul.f32 %v3162, %v3167
    %v3360 = vrot.slane %v3168, 1
    %v3361 = vrot.slane %v3169, 1
    %v3362 = vsel %vm620, %v3360, %v3361
    %v3363 = vrot.slane %v3170, 1
    %v3364 = vsel %vm620, %v3361, %v3363
    %v3365 = vrot.slane %v3171, 1
    %v3366 = vrot.slane %v3172, 1
    %v3367 = vsel %vm620, %v3365, %v3366
    %v3368 = vrot.slane %v3173, 1
    %v3369 = vsel %vm620, %v3366, %v3368
    %v3370 = vrot.slane %v3174, 1
    %v3371 = vrot.slane %v3175, 1
    %v3372 = vsel %vm620, %v3370, %v3371
    %v3373 = vrot.slane %v3176, 1
    %v3374 = vsel %vm620, %v3371, %v3373
    %v3375 = vrot.slane %v3177, 1
    %v3376 = vrot.slane %v3178, 1
    %v3377 = vsel %vm620, %v3375, %v3376
    %v3378 = vrot.slane %v3179, 1
    %v3379 = vsel %vm620, %v3376, %v3378
    %v3380 = vrot.slane %v3180, 1
    %v3381 = vrot.slane %v3181, 1
    %v3382 = vsel %vm620, %v3380, %v3381
    %v3383 = vrot.slane %v3182, 1
    %v3384 = vsel %vm620, %v3381, %v3383
    %v3385 = vrot.slane %v3183, 1
    %v3386 = vrot.slane %v3184, 1
    %v3387 = vsel %vm620, %v3385, %v3386
    %v3388 = vrot.slane %v3185, 1
    %v3389 = vsel %vm620, %v3386, %v3388
    %v3390 = vrot.slane %v3186, 1
    %v3391 = vrot.slane %v3187, 1
    %v3392 = vsel %vm620, %v3390, %v3391
    %v3393 = vrot.slane %v3188, 1
    %v3394 = vsel %vm620, %v3391, %v3393
    %v3395 = vrot.slane %v3189, 1
    %v3396 = vrot.slane %v3190, 1
    %v3397 = vsel %vm620, %v3395, %v3396
    %v3398 = vrot.slane %v3191, 1
    %v3399 = vsel %vm620, %v3396, %v3398
    %v3400 = vrot.slane %v3192, 1
    %v3401 = vrot.slane %v3193, 1
    %v3402 = vsel %vm620, %v3400, %v3401
    %v3403 = vrot.slane %v3194, 1
    %v3404 = vsel %vm620, %v3401, %v3403
    %v3405 = vrot.slane %v3195, 1
    %v3406 = vrot.slane %v3196, 1
    %v3407 = vsel %vm620, %v3405, %v3406
    %v3408 = vrot.slane %v3197, 1
    %v3409 = vsel %vm620, %v3406, %v3408
    %v3410 = vrot.slane %v3198, 1
    %v3411 = vrot.slane %v3199, 1
    %v3412 = vsel %vm620, %v3410, %v3411
    %v3413 = vrot.slane %v3200, 1
    %v3414 = vsel %vm620, %v3411, %v3413
    %v3415 = vrot.slane %v3201, 1
    %v3416 = vrot.slane %v3202, 1
    %v3417 = vsel %vm620, %v3415, %v3416
    %v3418 = vrot.slane %v3203, 1
    %v3419 = vsel %vm620, %v3416, %v3418
    %v3420 = vrot.slane %v3204, 1
    %v3421 = vrot.slane %v3205, 1
    %v3422 = vsel %vm620, %v3420, %v3421
    %v3423 = vrot.slane %v3206, 1
    %v3424 = vsel %vm620, %v3421, %v3423
    %v3425 = vrot.slane %v3207, 1
    %v3426 = vrot.slane %v3208, 1
    %v3427 = vsel %vm620, %v3425, %v3426
    %v3428 = vrot.slane %v3209, 1
    %v3429 = vsel %vm620, %v3426, %v3428
    %v3430 = vrot.slane %v3210, 1
    %v3431 = vrot.slane %v3211, 1
    %v3432 = vsel %vm620, %v3430, %v3431
    %v3433 = vrot.slane %v3212, 1
    %v3434 = vsel %vm620, %v3431, %v3433
    %v3435 = vrot.slane %v3213, 1
    %v3436 = vrot.slane %v3214, 1
    %v3437 = vsel %vm620, %v3435, %v3436
    %v3438 = vrot.slane %v3215, 1
    %v3439 = vsel %vm620, %v3436, %v3438
    %v3440 = vrot.slane %v3216, 1
    %v3441 = vrot.slane %v3217, 1
    %v3442 = vsel %vm620, %v3440, %v3441
    %v3443 = vrot.slane %v3218, 1
    %v3444 = vsel %vm620, %v3441, %v3443
    %v3445 = vrot.slane %v3219, 1
    %v3446 = vrot.slane %v3220, 1
    %v3447 = vsel %vm620, %v3445, %v3446
    %v3448 = vrot.slane %v3221, 1
    %v3449 = vsel %vm620, %v3446, %v3448
    %v3450 = vrot.slane %v3222, 1
    %v3451 = vrot.slane %v3223, 1
    %v3452 = vsel %vm620, %v3450, %v3451
    %v3453 = vrot.slane %v3224, 1
    %v3454 = vsel %vm620, %v3451, %v3453
    %v3455 = vrot.slane %v3225, 1
    %v3456 = vrot.slane %v3226, 1
    %v3457 = vsel %vm620, %v3455, %v3456
    %v3458 = vrot.slane %v3227, 1
    %v3459 = vsel %vm620, %v3456, %v3458
    %v3460 = vrot.slane %v3228, 1
    %v3461 = vrot.slane %v3229, 1
    %v3462 = vsel %vm620, %v3460, %v3461
    %v3463 = vrot.slane %v3230, 1
    %v3464 = vsel %vm620, %v3461, %v3463
    %v3465 = vrot.slane %v3231, 1
    %v3466 = vrot.slane %v3232, 1
    %v3467 = vsel %vm620, %v3465, %v3466
    %v3468 = vrot.slane %v3233, 1
    %v3469 = vsel %vm620, %v3466, %v3468
    %v3470 = vrot.slane %v3234, 1
    %v3471 = vrot.slane %v3235, 1
    %v3472 = vsel %vm620, %v3470, %v3471
    %v3473 = vrot.slane %v3236, 1
    %v3474 = vsel %vm620, %v3471, %v3473
    %v3475 = vrot.slane %v3237, 1
    %v3476 = vrot.slane %v3238, 1
    %v3477 = vsel %vm620, %v3475, %v3476
    %v3478 = vrot.slane %v3239, 1
    %v3479 = vsel %vm620, %v3476, %v3478
    %v3480 = vrot.slane %v3240, 1
    %v3481 = vrot.slane %v3241, 1
    %v3482 = vsel %vm620, %v3480, %v3481
    %v3483 = vrot.slane %v3242, 1
    %v3484 = vsel %vm620, %v3481, %v3483
    %v3485 = vrot.slane %v3243, 1
    %v3486 = vrot.slane %v3244, 1
    %v3487 = vsel %vm620, %v3485, %v3486
    %v3488 = vrot.slane %v3245, 1
    %v3489 = vsel %vm620, %v3486, %v3488
    %v3490 = vrot.slane %v3246, 1
    %v3491 = vrot.slane %v3247, 1
    %v3492 = vsel %vm620, %v3490, %v3491
    %v3493 = vrot.slane %v3248, 1
    %v3494 = vsel %vm620, %v3491, %v3493
    %v3495 = vrot.slane %v3249, 1
    %v3496 = vrot.slane %v3250, 1
    %v3497 = vsel %vm620, %v3495, %v3496
    %v3498 = vrot.slane %v3251, 1
    %v3499 = vsel %vm620, %v3496, %v3498
    %v3500 = vrot.slane %v3252, 1
    %v3501 = vrot.slane %v3253, 1
    %v3502 = vsel %vm620, %v3500, %v3501
    %v3503 = vrot.slane %v3254, 1
    %v3504 = vsel %vm620, %v3501, %v3503
    %v3505 = vrot.slane %v3255, 1
    %v3506 = vrot.slane %v3256, 1
    %v3507 = vsel %vm620, %v3505, %v3506
    %v3508 = vrot.slane %v3257, 1
    %v3509 = vsel %vm620, %v3506, %v3508
    %v3510 = vrot.slane %v3258, 1
    %v3511 = vrot.slane %v3259, 1
    %v3512 = vsel %vm620, %v3510, %v3511
    %v3513 = vrot.slane %v3260, 1
    %v3514 = vsel %vm620, %v3511, %v3513
    %v3515 = vrot.slane %v3261, 1
    %v3516 = vrot.slane %v3262, 1
    %v3517 = vsel %vm620, %v3515, %v3516
    %v3518 = vrot.slane %v3263, 1
    %v3519 = vsel %vm620, %v3516, %v3518
    %v3584 = vadd.f32 %v3033, %v3362
    %v3585 = vadd.f32 %v3034, %v3364
    %v3586 = vadd.f32 %v3035, %v3367
    %v3587 = vadd.f32 %v3036, %v3369
    %v3588 = vadd.f32 %v3037, %v3372
    %v3589 = vadd.f32 %v3038, %v3374
    %v3590 = vadd.f32 %v3039, %v3377
    %v3591 = vadd.f32 %v3040, %v3379
    %v3592 = vadd.f32 %v3041, %v3382
    %v3593 = vadd.f32 %v3042, %v3384
    %v3594 = vadd.f32 %v3043, %v3387
    %v3595 = vadd.f32 %v3044, %v3389
    %v3596 = vadd.f32 %v3045, %v3392
    %v3597 = vadd.f32 %v3046, %v3394
    %v3598 = vadd.f32 %v3047, %v3397
    %v3599 = vadd.f32 %v3048, %v3399
    %v3600 = vadd.f32 %v3049, %v3402
    %v3601 = vadd.f32 %v3050, %v3404
    %v3602 = vadd.f32 %v3051, %v3407
    %v3603 = vadd.f32 %v3052, %v3409
    %v3604 = vadd.f32 %v3053, %v3412
    %v3605 = vadd.f32 %v3054, %v3414
    %v3606 = vadd.f32 %v3055, %v3417
    %v3607 = vadd.f32 %v3056, %v3419
    %v3608 = vadd.f32 %v3057, %v3422
    %v3609 = vadd.f32 %v3058, %v3424
    %v3610 = vadd.f32 %v3059, %v3427
    %v3611 = vadd.f32 %v3060, %v3429
    %v3612 = vadd.f32 %v3061, %v3432
    %v3613 = vadd.f32 %v3062, %v3434
    %v3614 = vadd.f32 %v3063, %v3437
    %v3615 = vadd.f32 %v3064, %v3439
    %v3616 = vadd.f32 %v3065, %v3442
    %v3617 = vadd.f32 %v3066, %v3444
    %v3618 = vadd.f32 %v3067, %v3447
    %v3619 = vadd.f32 %v3068, %v3449
    %v3620 = vadd.f32 %v3069, %v3452
    %v3621 = vadd.f32 %v3070, %v3454
    %v3622 = vadd.f32 %v3071, %v3457
    %v3623 = vadd.f32 %v3072, %v3459
    %v3624 = vadd.f32 %v3073, %v3462
    %v3625 = vadd.f32 %v3074, %v3464
    %v3626 = vadd.f32 %v3075, %v3467
    %v3627 = vadd.f32 %v3076, %v3469
    %v3628 = vadd.f32 %v3077, %v3472
    %v3629 = vadd.f32 %v3078, %v3474
    %v3630 = vadd.f32 %v3079, %v3477
    %v3631 = vadd.f32 %v3080, %v3479
    %v3632 = vadd.f32 %v3081, %v3482
    %v3633 = vadd.f32 %v3082, %v3484
    %v3634 = vadd.f32 %v3083, %v3487
    %v3635 = vadd.f32 %v3084, %v3489
    %v3636 = vadd.f32 %v3085, %v3492
    %v3637 = vadd.f32 %v3086, %v3494
    %v3638 = vadd.f32 %v3087, %v3497
    %v3639 = vadd.f32 %v3088, %v3499
    %v3640 = vadd.f32 %v3089, %v3502
    %v3641 = vadd.f32 %v3090, %v3504
    %v3642 = vadd.f32 %v3091, %v3507
    %v3643 = vadd.f32 %v3092, %v3509
    %v3644 = vadd.f32 %v3093, %v3512
    %v3645 = vadd.f32 %v3094, %v3514
    %v3646 = vadd.f32 %v3095, %v3517
    %v3647 = vadd.f32 %v3096, %v3519
    %v3648 = vld [vmem:[%s2833] sm:$0xe]
    %v3649 = vld [vmem:[%s2833 + $0xc] sm:$0xe]
    %v3650 = vld [vmem:[%s2833 + $0x18] sm:$0xe]
    %v3651 = vld [vmem:[%s2833 + $0x24] sm:$0xe]
    %v3652 = vld [vmem:[%s2833 + $0x30] sm:$0xe]
    %v3653 = vld [vmem:[%s2833 + $0x3c] sm:$0xe]
    %v3654 = vld [vmem:[%s2833 + $0x48] sm:$0xe]
    %v3655 = vld [vmem:[%s2833 + $0x54] sm:$0xe]
    %v3656 = vld [vmem:[%s2833 + $0x60] sm:$0xe]
    %v3657 = vld [vmem:[%s2833 + $0x6c] sm:$0xe]
    %v3658 = vld [vmem:[%s2833 + $0x78] sm:$0xe]
    %v3659 = vld [vmem:[%s2833 + $0x84] sm:$0xe]
    %v3660 = vld [vmem:[%s2833 + $0x90] sm:$0xe]
    %v3661 = vld [vmem:[%s2833 + $0x9c] sm:$0xe]
    %v3662 = vld [vmem:[%s2833 + $0xa8] sm:$0xe]
    %v3663 = vld [vmem:[%s2833 + $0xb4] sm:$0xe]
    %v3664 = vld [vmem:[%s2833 + $0xd8] sm:$0xe]
    %v3665 = vld [vmem:[%s2833 + $0xe4] sm:$0xe]
    %v3666 = vld [vmem:[%s2833 + $0xf0] sm:$0xe]
    %v3667 = vld [vmem:[%s2833 + $0xfc] sm:$0xe]
    %v3668 = vld [vmem:[%s2833 + $0x108] sm:$0xe]
    %v3669 = vld [vmem:[%s2833 + $0x114] sm:$0xe]
    %v3670 = vld [vmem:[%s2833 + $0x120] sm:$0xe]
    %v3671 = vld [vmem:[%s2833 + $0x12c] sm:$0xe]
    %v3672 = vld [vmem:[%s2833 + $0x138] sm:$0xe]
    %v3673 = vld [vmem:[%s2833 + $0x144] sm:$0xe]
    %v3674 = vld [vmem:[%s2833 + $0x150] sm:$0xe]
    %v3675 = vld [vmem:[%s2833 + $0x15c] sm:$0xe]
    %v3676 = vld [vmem:[%s2833 + $0x168] sm:$0xe]
    %v3677 = vld [vmem:[%s2833 + $0x174] sm:$0xe]
    %v3678 = vld [vmem:[%s2833 + $0x180] sm:$0xe]
    %v3679 = vld [vmem:[%s2833 + $0x18c] sm:$0xe]
    %s3680 = scalar_lea.vmem [#allocation5], 8
    %v3681 = vld [vmem:[%s3680] sm:$0x1]
    %v3682 = vunpack.c.l.bf16 %v3648
    %v3683 = vunpack.c.l.bf16 %v3649
    %v3684 = vunpack.c.l.bf16 %v3650
    %v3685 = vunpack.c.l.bf16 %v3651
    %v3686 = vunpack.c.l.bf16 %v3652
    %v3687 = vunpack.c.l.bf16 %v3653
    %v3688 = vunpack.c.l.bf16 %v3654
    %v3689 = vunpack.c.l.bf16 %v3655
    %v3690 = vunpack.c.l.bf16 %v3656
    %v3691 = vunpack.c.l.bf16 %v3657
    %v3692 = vunpack.c.l.bf16 %v3658
    %v3693 = vunpack.c.l.bf16 %v3659
    %v3694 = vunpack.c.l.bf16 %v3660
    %v3695 = vunpack.c.l.bf16 %v3661
    %v3696 = vunpack.c.l.bf16 %v3662
    %v3697 = vunpack.c.l.bf16 %v3663
    %v3698 = vunpack.c.l.bf16 %v3664
    %v3699 = vunpack.c.l.bf16 %v3665
    %v3700 = vunpack.c.l.bf16 %v3666
    %v3701 = vunpack.c.l.bf16 %v3667
    %v3702 = vunpack.c.l.bf16 %v3668
    %v3703 = vunpack.c.l.bf16 %v3669
    %v3704 = vunpack.c.l.bf16 %v3670
    %v3705 = vunpack.c.l.bf16 %v3671
    %v3706 = vunpack.c.l.bf16 %v3672
    %v3707 = vunpack.c.l.bf16 %v3673
    %v3708 = vunpack.c.l.bf16 %v3674
    %v3709 = vunpack.c.l.bf16 %v3675
    %v3710 = vunpack.c.l.bf16 %v3676
    %v3711 = vunpack.c.l.bf16 %v3677
    %v3712 = vunpack.c.l.bf16 %v3678
    %v3713 = vunpack.c.l.bf16 %v3679
    %v3714 = vunpack.c.l.bf16 %v3681
    %v3715 = vlaneseq
    %v3716 = vshrl.u32 %v3715, 7
    %v3717 = vsub.s32 0, %v3716
    %v3718 = vrot.slane %v3714, %v3717
    %v3719 = vmul.f32 %v3682, %v3718
    %v3720 = vmul.f32 %v2901, %v3718
    %v3721 = vmul.f32 %v3131, %v3718
    %v3722 = vmul.f32 %v3683, %v3718
    %v3723 = vmul.f32 %v2903, %v3718
    %v3724 = vmul.f32 %v3132, %v3718
    %v3725 = vmul.f32 %v3684, %v3718
    %v3726 = vmul.f32 %v2905, %v3718
    %v3727 = vmul.f32 %v3133, %v3718
    %v3728 = vmul.f32 %v3685, %v3718
    %v3729 = vmul.f32 %v2907, %v3718
    %v3730 = vmul.f32 %v3134, %v3718
    %v3731 = vmul.f32 %v3686, %v3718
    %v3732 = vmul.f32 %v2909, %v3718
    %v3733 = vmul.f32 %v3135, %v3718
    %v3734 = vmul.f32 %v3687, %v3718
    %v3735 = vmul.f32 %v2911, %v3718
    %v3736 = vmul.f32 %v3136, %v3718
    %v3737 = vmul.f32 %v3688, %v3718
    %v3738 = vmul.f32 %v2913, %v3718
    %v3739 = vmul.f32 %v3137, %v3718
    %v3740 = vmul.f32 %v3689, %v3718
    %v3741 = vmul.f32 %v2915, %v3718
    %v3742 = vmul.f32 %v3138, %v3718
    %v3743 = vmul.f32 %v3690, %v3718
    %v3744 = vmul.f32 %v2917, %v3718
    %v3745 = vmul.f32 %v3139, %v3718
    %v3746 = vmul.f32 %v3691, %v3718
    %v3747 = vmul.f32 %v2919, %v3718
    %v3748 = vmul.f32 %v3140, %v3718
    %v3749 = vmul.f32 %v3692, %v3718
    %v3750 = vmul.f32 %v2921, %v3718
    %v3751 = vmul.f32 %v3141, %v3718
    %v3752 = vmul.f32 %v3693, %v3718
    %v3753 = vmul.f32 %v2923, %v3718
    %v3754 = vmul.f32 %v3142, %v3718
    %v3755 = vmul.f32 %v3694, %v3718
    %v3756 = vmul.f32 %v2925, %v3718
    %v3757 = vmul.f32 %v3143, %v3718
    %v3758 = vmul.f32 %v3695, %v3718
    %v3759 = vmul.f32 %v2927, %v3718
    %v3760 = vmul.f32 %v3144, %v3718
    %v3761 = vmul.f32 %v3696, %v3718
    %v3762 = vmul.f32 %v2929, %v3718
    %v3763 = vmul.f32 %v3145, %v3718
    %v3764 = vmul.f32 %v3697, %v3718
    %v3765 = vmul.f32 %v2931, %v3718
    %v3766 = vmul.f32 %v3146, %v3718
    %v3767 = vmul.f32 %v3698, %v3718
    %v3768 = vmul.f32 %v2933, %v3718
    %v3769 = vmul.f32 %v3147, %v3718
    %v3770 = vmul.f32 %v3699, %v3718
    %v3771 = vmul.f32 %v2935, %v3718
    %v3772 = vmul.f32 %v3148, %v3718
    %v3773 = vmul.f32 %v3700, %v3718
    %v3774 = vmul.f32 %v2937, %v3718
    %v3775 = vmul.f32 %v3149, %v3718
    %v3776 = vmul.f32 %v3701, %v3718
    %v3777 = vmul.f32 %v2939, %v3718
    %v3778 = vmul.f32 %v3150, %v3718
    %v3779 = vmul.f32 %v3702, %v3718
    %v3780 = vmul.f32 %v2941, %v3718
    %v3781 = vmul.f32 %v3151, %v3718
    %v3782 = vmul.f32 %v3703, %v3718
    %v3783 = vmul.f32 %v2943, %v3718
    %v3784 = vmul.f32 %v3152, %v3718
    %v3785 = vmul.f32 %v3704, %v3718
    %v3786 = vmul.f32 %v2945, %v3718
    %v3787 = vmul.f32 %v3153, %v3718
    %v3788 = vmul.f32 %v3705, %v3718
    %v3789 = vmul.f32 %v2947, %v3718
    %v3790 = vmul.f32 %v3154, %v3718
    %v3791 = vmul.f32 %v3706, %v3718
    %v3792 = vmul.f32 %v2949, %v3718
    %v3793 = vmul.f32 %v3155, %v3718
    %v3794 = vmul.f32 %v3707, %v3718
    %v3795 = vmul.f32 %v2951, %v3718
    %v3796 = vmul.f32 %v3156, %v3718
    %v3797 = vmul.f32 %v3708, %v3718
    %v3798 = vmul.f32 %v2953, %v3718
    %v3799 = vmul.f32 %v3157, %v3718
    %v3800 = vmul.f32 %v3709, %v3718
    %v3801 = vmul.f32 %v2955, %v3718
    %v3802 = vmul.f32 %v3158, %v3718
    %v3803 = vmul.f32 %v3710, %v3718
    %v3804 = vmul.f32 %v2957, %v3718
    %v3805 = vmul.f32 %v3159, %v3718
    %v3806 = vmul.f32 %v3711, %v3718
    %v3807 = vmul.f32 %v2959, %v3718
    %v3808 = vmul.f32 %v3160, %v3718
    %v3809 = vmul.f32 %v3712, %v3718
    %v3810 = vmul.f32 %v2961, %v3718
    %v3811 = vmul.f32 %v3161, %v3718
    %v3812 = vmul.f32 %v3713, %v3718
    %v3813 = vmul.f32 %v2963, %v3718
    %v3814 = vmul.f32 %v3162, %v3718
    %v3911 = vrot.slane %v3719, 2
    %v3912 = vrot.slane %v3720, 2
    %v3913 = vsel %vm1172, %v3911, %v3912
    %v3914 = vrot.slane %v3721, 2
    %v3915 = vsel %vm1172, %v3912, %v3914
    %v3916 = vrot.slane %v3722, 2
    %v3917 = vrot.slane %v3723, 2
    %v3918 = vsel %vm1172, %v3916, %v3917
    %v3919 = vrot.slane %v3724, 2
    %v3920 = vsel %vm1172, %v3917, %v3919
    %v3921 = vrot.slane %v3725, 2
    %v3922 = vrot.slane %v3726, 2
    %v3923 = vsel %vm1172, %v3921, %v3922
    %v3924 = vrot.slane %v3727, 2
    %v3925 = vsel %vm1172, %v3922, %v3924
    %v3926 = vrot.slane %v3728, 2
    %v3927 = vrot.slane %v3729, 2
    %v3928 = vsel %vm1172, %v3926, %v3927
    %v3929 = vrot.slane %v3730, 2
    %v3930 = vsel %vm1172, %v3927, %v3929
    %v3931 = vrot.slane %v3731, 2
    %v3932 = vrot.slane %v3732, 2
    %v3933 = vsel %vm1172, %v3931, %v3932
    %v3934 = vrot.slane %v3733, 2
    %v3935 = vsel %vm1172, %v3932, %v3934
    %v3936 = vrot.slane %v3734, 2
    %v3937 = vrot.slane %v3735, 2
    %v3938 = vsel %vm1172, %v3936, %v3937
    %v3939 = vrot.slane %v3736, 2
    %v3940 = vsel %vm1172, %v3937, %v3939
    %v3941 = vrot.slane %v3737, 2
    %v3942 = vrot.slane %v3738, 2
    %v3943 = vsel %vm1172, %v3941, %v3942
    %v3944 = vrot.slane %v3739, 2
    %v3945 = vsel %vm1172, %v3942, %v3944
    %v3946 = vrot.slane %v3740, 2
    %v3947 = vrot.slane %v3741, 2
    %v3948 = vsel %vm1172, %v3946, %v3947
    %v3949 = vrot.slane %v3742, 2
    %v3950 = vsel %vm1172, %v3947, %v3949
    %v3951 = vrot.slane %v3743, 2
    %v3952 = vrot.slane %v3744, 2
    %v3953 = vsel %vm1172, %v3951, %v3952
    %v3954 = vrot.slane %v3745, 2
    %v3955 = vsel %vm1172, %v3952, %v3954
    %v3956 = vrot.slane %v3746, 2
    %v3957 = vrot.slane %v3747, 2
    %v3958 = vsel %vm1172, %v3956, %v3957
    %v3959 = vrot.slane %v3748, 2
    %v3960 = vsel %vm1172, %v3957, %v3959
    %v3961 = vrot.slane %v3749, 2
    %v3962 = vrot.slane %v3750, 2
    %v3963 = vsel %vm1172, %v3961, %v3962
    %v3964 = vrot.slane %v3751, 2
    %v3965 = vsel %vm1172, %v3962, %v3964
    %v3966 = vrot.slane %v3752, 2
    %v3967 = vrot.slane %v3753, 2
    %v3968 = vsel %vm1172, %v3966, %v3967
    %v3969 = vrot.slane %v3754, 2
    %v3970 = vsel %vm1172, %v3967, %v3969
    %v3971 = vrot.slane %v3755, 2
    %v3972 = vrot.slane %v3756, 2
    %v3973 = vsel %vm1172, %v3971, %v3972
    %v3974 = vrot.slane %v3757, 2
    %v3975 = vsel %vm1172, %v3972, %v3974
    %v3976 = vrot.slane %v3758, 2
    %v3977 = vrot.slane %v3759, 2
    %v3978 = vsel %vm1172, %v3976, %v3977
    %v3979 = vrot.slane %v3760, 2
    %v3980 = vsel %vm1172, %v3977, %v3979
    %v3981 = vrot.slane %v3761, 2
    %v3982 = vrot.slane %v3762, 2
    %v3983 = vsel %vm1172, %v3981, %v3982
    %v3984 = vrot.slane %v3763, 2
    %v3985 = vsel %vm1172, %v3982, %v3984
    %v3986 = vrot.slane %v3764, 2
    %v3987 = vrot.slane %v3765, 2
    %v3988 = vsel %vm1172, %v3986, %v3987
    %v3989 = vrot.slane %v3766, 2
    %v3990 = vsel %vm1172, %v3987, %v3989
    %v3991 = vrot.slane %v3767, 2
    %v3992 = vrot.slane %v3768, 2
    %v3993 = vsel %vm1172, %v3991, %v3992
    %v3994 = vrot.slane %v3769, 2
    %v3995 = vsel %vm1172, %v3992, %v3994
    %v3996 = vrot.slane %v3770, 2
    %v3997 = vrot.slane %v3771, 2
    %v3998 = vsel %vm1172, %v3996, %v3997
    %v3999 = vrot.slane %v3772, 2
    %v4000 = vsel %vm1172, %v3997, %v3999
    %v4001 = vrot.slane %v3773, 2
    %v4002 = vrot.slane %v3774, 2
    %v4003 = vsel %vm1172, %v4001, %v4002
    %v4004 = vrot.slane %v3775, 2
    %v4005 = vsel %vm1172, %v4002, %v4004
    %v4006 = vrot.slane %v3776, 2
    %v4007 = vrot.slane %v3777, 2
    %v4008 = vsel %vm1172, %v4006, %v4007
    %v4009 = vrot.slane %v3778, 2
    %v4010 = vsel %vm1172, %v4007, %v4009
    %v4011 = vrot.slane %v3779, 2
    %v4012 = vrot.slane %v3780, 2
    %v4013 = vsel %vm1172, %v4011, %v4012
    %v4014 = vrot.slane %v3781, 2
    %v4015 = vsel %vm1172, %v4012, %v4014
    %v4016 = vrot.slane %v3782, 2
    %v4017 = vrot.slane %v3783, 2
    %v4018 = vsel %vm1172, %v4016, %v4017
    %v4019 = vrot.slane %v3784, 2
    %v4020 = vsel %vm1172, %v4017, %v4019
    %v4021 = vrot.slane %v3785, 2
    %v4022 = vrot.slane %v3786, 2
    %v4023 = vsel %vm1172, %v4021, %v4022
    %v4024 = vrot.slane %v3787, 2
    %v4025 = vsel %vm1172, %v4022, %v4024
    %v4026 = vrot.slane %v3788, 2
    %v4027 = vrot.slane %v3789, 2
    %v4028 = vsel %vm1172, %v4026, %v4027
    %v4029 = vrot.slane %v3790, 2
    %v4030 = vsel %vm1172, %v4027, %v4029
    %v4031 = vrot.slane %v3791, 2
    %v4032 = vrot.slane %v3792, 2
    %v4033 = vsel %vm1172, %v4031, %v4032
    %v4034 = vrot.slane %v3793, 2
    %v4035 = vsel %vm1172, %v4032, %v4034
    %v4036 = vrot.slane %v3794, 2
    %v4037 = vrot.slane %v3795, 2
    %v4038 = vsel %vm1172, %v4036, %v4037
    %v4039 = vrot.slane %v3796, 2
    %v4040 = vsel %vm1172, %v4037, %v4039
    %v4041 = vrot.slane %v3797, 2
    %v4042 = vrot.slane %v3798, 2
    %v4043 = vsel %vm1172, %v4041, %v4042
    %v4044 = vrot.slane %v3799, 2
    %v4045 = vsel %vm1172, %v4042, %v4044
    %v4046 = vrot.slane %v3800, 2
    %v4047 = vrot.slane %v3801, 2
    %v4048 = vsel %vm1172, %v4046, %v4047
    %v4049 = vrot.slane %v3802, 2
    %v4050 = vsel %vm1172, %v4047, %v4049
    %v4051 = vrot.slane %v3803, 2
    %v4052 = vrot.slane %v3804, 2
    %v4053 = vsel %vm1172, %v4051, %v4052
    %v4054 = vrot.slane %v3805, 2
    %v4055 = vsel %vm1172, %v4052, %v4054
    %v4056 = vrot.slane %v3806, 2
    %v4057 = vrot.slane %v3807, 2
    %v4058 = vsel %vm1172, %v4056, %v4057
    %v4059 = vrot.slane %v3808, 2
    %v4060 = vsel %vm1172, %v4057, %v4059
    %v4061 = vrot.slane %v3809, 2
    %v4062 = vrot.slane %v3810, 2
    %v4063 = vsel %vm1172, %v4061, %v4062
    %v4064 = vrot.slane %v3811, 2
    %v4065 = vsel %vm1172, %v4062, %v4064
    %v4066 = vrot.slane %v3812, 2
    %v4067 = vrot.slane %v3813, 2
    %v4068 = vsel %vm1172, %v4066, %v4067
    %v4069 = vrot.slane %v3814, 2
    %v4070 = vsel %vm1172, %v4067, %v4069
    %v4135 = vadd.f32 %v3584, %v3913
    %v4136 = vadd.f32 %v3585, %v3915
    %v4137 = vadd.f32 %v3586, %v3918
    %v4138 = vadd.f32 %v3587, %v3920
    %v4139 = vadd.f32 %v3588, %v3923
    %v4140 = vadd.f32 %v3589, %v3925
    %v4141 = vadd.f32 %v3590, %v3928
    %v4142 = vadd.f32 %v3591, %v3930
    %v4143 = vadd.f32 %v3592, %v3933
    %v4144 = vadd.f32 %v3593, %v3935
    %v4145 = vadd.f32 %v3594, %v3938
    %v4146 = vadd.f32 %v3595, %v3940
    %v4147 = vadd.f32 %v3596, %v3943
    %v4148 = vadd.f32 %v3597, %v3945
    %v4149 = vadd.f32 %v3598, %v3948
    %v4150 = vadd.f32 %v3599, %v3950
    %v4151 = vadd.f32 %v3600, %v3953
    %v4152 = vadd.f32 %v3601, %v3955
    %v4153 = vadd.f32 %v3602, %v3958
    %v4154 = vadd.f32 %v3603, %v3960
    %v4155 = vadd.f32 %v3604, %v3963
    %v4156 = vadd.f32 %v3605, %v3965
    %v4157 = vadd.f32 %v3606, %v3968
    %v4158 = vadd.f32 %v3607, %v3970
    %v4159 = vadd.f32 %v3608, %v3973
    %v4160 = vadd.f32 %v3609, %v3975
    %v4161 = vadd.f32 %v3610, %v3978
    %v4162 = vadd.f32 %v3611, %v3980
    %v4163 = vadd.f32 %v3612, %v3983
    %v4164 = vadd.f32 %v3613, %v3985
    %v4165 = vadd.f32 %v3614, %v3988
    %v4166 = vadd.f32 %v3615, %v3990
    %v4167 = vadd.f32 %v3616, %v3993
    %v4168 = vadd.f32 %v3617, %v3995
    %v4169 = vadd.f32 %v3618, %v3998
    %v4170 = vadd.f32 %v3619, %v4000
    %v4171 = vadd.f32 %v3620, %v4003
    %v4172 = vadd.f32 %v3621, %v4005
    %v4173 = vadd.f32 %v3622, %v4008
    %v4174 = vadd.f32 %v3623, %v4010
    %v4175 = vadd.f32 %v3624, %v4013
    %v4176 = vadd.f32 %v3625, %v4015
    %v4177 = vadd.f32 %v3626, %v4018
    %v4178 = vadd.f32 %v3627, %v4020
    %v4179 = vadd.f32 %v3628, %v4023
    %v4180 = vadd.f32 %v3629, %v4025
    %v4181 = vadd.f32 %v3630, %v4028
    %v4182 = vadd.f32 %v3631, %v4030
    %v4183 = vadd.f32 %v3632, %v4033
    %v4184 = vadd.f32 %v3633, %v4035
    %v4185 = vadd.f32 %v3634, %v4038
    %v4186 = vadd.f32 %v3635, %v4040
    %v4187 = vadd.f32 %v3636, %v4043
    %v4188 = vadd.f32 %v3637, %v4045
    %v4189 = vadd.f32 %v3638, %v4048
    %v4190 = vadd.f32 %v3639, %v4050
    %v4191 = vadd.f32 %v3640, %v4053
    %v4192 = vadd.f32 %v3641, %v4055
    %v4193 = vadd.f32 %v3642, %v4058
    %v4194 = vadd.f32 %v3643, %v4060
    %v4195 = vadd.f32 %v3644, %v4063
    %v4196 = vadd.f32 %v3645, %v4065
    %v4197 = vadd.f32 %v3646, %v4068
    %v4198 = vadd.f32 %v3647, %v4070
    %v4199 = vmax.f32 %v4135, 0.0
    %v4200 = vmax.f32 %v4136, 0.0
    %v4201 = vmax.f32 %v4137, 0.0
    %v4202 = vmax.f32 %v4138, 0.0
    %v4203 = vmax.f32 %v4139, 0.0
    %v4204 = vmax.f32 %v4140, 0.0
    %v4205 = vmax.f32 %v4141, 0.0
    %v4206 = vmax.f32 %v4142, 0.0
    %v4207 = vmax.f32 %v4143, 0.0
    %v4208 = vmax.f32 %v4144, 0.0
    %v4209 = vmax.f32 %v4145, 0.0
    %v4210 = vmax.f32 %v4146, 0.0
    %v4211 = vmax.f32 %v4147, 0.0
    %v4212 = vmax.f32 %v4148, 0.0
    %v4213 = vmax.f32 %v4149, 0.0
    %v4214 = vmax.f32 %v4150, 0.0
    %v4215 = vmax.f32 %v4151, 0.0
    %v4216 = vmax.f32 %v4152, 0.0
    %v4217 = vmax.f32 %v4153, 0.0
    %v4218 = vmax.f32 %v4154, 0.0
    %v4219 = vmax.f32 %v4155, 0.0
    %v4220 = vmax.f32 %v4156, 0.0
    %v4221 = vmax.f32 %v4157, 0.0
    %v4222 = vmax.f32 %v4158, 0.0
    %v4223 = vmax.f32 %v4159, 0.0
    %v4224 = vmax.f32 %v4160, 0.0
    %v4225 = vmax.f32 %v4161, 0.0
    %v4226 = vmax.f32 %v4162, 0.0
    %v4227 = vmax.f32 %v4163, 0.0
    %v4228 = vmax.f32 %v4164, 0.0
    %v4229 = vmax.f32 %v4165, 0.0
    %v4230 = vmax.f32 %v4166, 0.0
    %v4231 = vmax.f32 %v4167, 0.0
    %v4232 = vmax.f32 %v4168, 0.0
    %v4233 = vmax.f32 %v4169, 0.0
    %v4234 = vmax.f32 %v4170, 0.0
    %v4235 = vmax.f32 %v4171, 0.0
    %v4236 = vmax.f32 %v4172, 0.0
    %v4237 = vmax.f32 %v4173, 0.0
    %v4238 = vmax.f32 %v4174, 0.0
    %v4239 = vmax.f32 %v4175, 0.0
    %v4240 = vmax.f32 %v4176, 0.0
    %v4241 = vmax.f32 %v4177, 0.0
    %v4242 = vmax.f32 %v4178, 0.0
    %v4243 = vmax.f32 %v4179, 0.0
    %v4244 = vmax.f32 %v4180, 0.0
    %v4245 = vmax.f32 %v4181, 0.0
    %v4246 = vmax.f32 %v4182, 0.0
    %v4247 = vmax.f32 %v4183, 0.0
    %v4248 = vmax.f32 %v4184, 0.0
    %v4249 = vmax.f32 %v4185, 0.0
    %v4250 = vmax.f32 %v4186, 0.0
    %v4251 = vmax.f32 %v4187, 0.0
    %v4252 = vmax.f32 %v4188, 0.0
    %v4253 = vmax.f32 %v4189, 0.0
    %v4254 = vmax.f32 %v4190, 0.0
    %v4255 = vmax.f32 %v4191, 0.0
    %v4256 = vmax.f32 %v4192, 0.0
    %v4257 = vmax.f32 %v4193, 0.0
    %v4258 = vmax.f32 %v4194, 0.0
    %v4259 = vmax.f32 %v4195, 0.0
    %v4260 = vmax.f32 %v4196, 0.0
    %v4261 = vmax.f32 %v4197, 0.0
    %v4262 = vmax.f32 %v4198, 0.0
    %v4263 = vmin.f32 %v4199, 6.0
    %v4264 = vmin.f32 %v4200, 6.0
    %v4265 = vmin.f32 %v4201, 6.0
    %v4266 = vmin.f32 %v4202, 6.0
    %v4267 = vmin.f32 %v4203, 6.0
    %v4268 = vmin.f32 %v4204, 6.0
    %v4269 = vmin.f32 %v4205, 6.0
    %v4270 = vmin.f32 %v4206, 6.0
    %v4271 = vmin.f32 %v4207, 6.0
    %v4272 = vmin.f32 %v4208, 6.0
    %v4273 = vmin.f32 %v4209, 6.0
    %v4274 = vmin.f32 %v4210, 6.0
    %v4275 = vmin.f32 %v4211, 6.0
    %v4276 = vmin.f32 %v4212, 6.0
    %v4277 = vmin.f32 %v4213, 6.0
    %v4278 = vmin.f32 %v4214, 6.0
    %v4279 = vmin.f32 %v4215, 6.0
    %v4280 = vmin.f32 %v4216, 6.0
    %v4281 = vmin.f32 %v4217, 6.0
    %v4282 = vmin.f32 %v4218, 6.0
    %v4283 = vmin.f32 %v4219, 6.0
    %v4284 = vmin.f32 %v4220, 6.0
    %v4285 = vmin.f32 %v4221, 6.0
    %v4286 = vmin.f32 %v4222, 6.0
    %v4287 = vmin.f32 %v4223, 6.0
    %v4288 = vmin.f32 %v4224, 6.0
    %v4289 = vmin.f32 %v4225, 6.0
    %v4290 = vmin.f32 %v4226, 6.0
    %v4291 = vmin.f32 %v4227, 6.0
    %v4292 = vmin.f32 %v4228, 6.0
    %v4293 = vmin.f32 %v4229, 6.0
    %v4294 = vmin.f32 %v4230, 6.0
    %v4295 = vmin.f32 %v4231, 6.0
    %v4296 = vmin.f32 %v4232, 6.0
    %v4297 = vmin.f32 %v4233, 6.0
    %v4298 = vmin.f32 %v4234, 6.0
    %v4299 = vmin.f32 %v4235, 6.0
    %v4300 = vmin.f32 %v4236, 6.0
    %v4301 = vmin.f32 %v4237, 6.0
    %v4302 = vmin.f32 %v4238, 6.0
    %v4303 = vmin.f32 %v4239, 6.0
    %v4304 = vmin.f32 %v4240, 6.0
    %v4305 = vmin.f32 %v4241, 6.0
    %v4306 = vmin.f32 %v4242, 6.0
    %v4307 = vmin.f32 %v4243, 6.0
    %v4308 = vmin.f32 %v4244, 6.0
    %v4309 = vmin.f32 %v4245, 6.0
    %v4310 = vmin.f32 %v4246, 6.0
    %v4311 = vmin.f32 %v4247, 6.0
    %v4312 = vmin.f32 %v4248, 6.0
    %v4313 = vmin.f32 %v4249, 6.0
    %v4314 = vmin.f32 %v4250, 6.0
    %v4315 = vmin.f32 %v4251, 6.0
    %v4316 = vmin.f32 %v4252, 6.0
    %v4317 = vmin.f32 %v4253, 6.0
    %v4318 = vmin.f32 %v4254, 6.0
    %v4319 = vmin.f32 %v4255, 6.0
    %v4320 = vmin.f32 %v4256, 6.0
    %v4321 = vmin.f32 %v4257, 6.0
    %v4322 = vmin.f32 %v4258, 6.0
    %v4323 = vmin.f32 %v4259, 6.0
    %v4324 = vmin.f32 %v4260, 6.0
    %v4325 = vmin.f32 %v4261, 6.0
    %v4326 = vmin.f32 %v4262, 6.0
    %v4327 = vpack.c.bf16 %v4264, %v4263
    %v4328 = vpack.c.bf16 %v4266, %v4265
    %v4329 = vpack.c.bf16 %v4268, %v4267
    %v4330 = vpack.c.bf16 %v4270, %v4269
    %v4331 = vpack.c.bf16 %v4272, %v4271
    %v4332 = vpack.c.bf16 %v4274, %v4273
    %v4333 = vpack.c.bf16 %v4276, %v4275
    %v4334 = vpack.c.bf16 %v4278, %v4277
    %v4335 = vpack.c.bf16 %v4280, %v4279
    %v4336 = vpack.c.bf16 %v4282, %v4281
    %v4337 = vpack.c.bf16 %v4284, %v4283
    %v4338 = vpack.c.bf16 %v4286, %v4285
    %v4339 = vpack.c.bf16 %v4288, %v4287
    %v4340 = vpack.c.bf16 %v4290, %v4289
    %v4341 = vpack.c.bf16 %v4292, %v4291
    %v4342 = vpack.c.bf16 %v4294, %v4293
    %v4343 = vpack.c.bf16 %v4296, %v4295
    %v4344 = vpack.c.bf16 %v4298, %v4297
    %v4345 = vpack.c.bf16 %v4300, %v4299
    %v4346 = vpack.c.bf16 %v4302, %v4301
    %v4347 = vpack.c.bf16 %v4304, %v4303
    %v4348 = vpack.c.bf16 %v4306, %v4305
    %v4349 = vpack.c.bf16 %v4308, %v4307
    %v4350 = vpack.c.bf16 %v4310, %v4309
    %v4351 = vpack.c.bf16 %v4312, %v4311
    %v4352 = vpack.c.bf16 %v4314, %v4313
    %v4353 = vpack.c.bf16 %v4316, %v4315
    %v4354 = vpack.c.bf16 %v4318, %v4317
    %v4355 = vpack.c.bf16 %v4320, %v4319
    %v4356 = vpack.c.bf16 %v4322, %v4321
    %v4357 = vpack.c.bf16 %v4324, %v4323
    %v4358 = vpack.c.bf16 %v4326, %v4325
    %v4359 = vld [vmem:[#allocation8] sm:$0x3]
    %v4360 = vld [vmem:[#allocation10] sm:$0x1]
    %v4362 = vlaneseq
    %v4363 = vshrl.u32 %v4362, 7
    %v4364 = vsub.s32 0, %v4363
    %v4365 = vrot.slane %v4360, %v4364
    %vm4367 = vcmask 31744
    %v4369 = vsel %vm4367, %v4327, 0
    %v4372 = vsel %vm4367, %v4328, 0
    %v4375 = vsel %vm4367, %v4329, 0
    %v4378 = vsel %vm4367, %v4330, 0
    %v4381 = vsel %vm4367, %v4331, 0
    %v4384 = vsel %vm4367, %v4332, 0
    %v4387 = vsel %vm4367, %v4333, 0
    %v4390 = vsel %vm4367, %v4334, 0
    %v4393 = vsel %vm4367, %v4335, 0
    %v4396 = vsel %vm4367, %v4336, 0
    %v4399 = vsel %vm4367, %v4337, 0
    %v4402 = vsel %vm4367, %v4338, 0
    %v4405 = vsel %vm4367, %v4339, 0
    %v4408 = vsel %vm4367, %v4340, 0
    %v4411 = vsel %vm4367, %v4341, 0
    %v4414 = vsel %vm4367, %v4342, 0
    %v4417 = vsel %vm4367, %v4343, 0
    %v4420 = vsel %vm4367, %v4344, 0
    %v4423 = vsel %vm4367, %v4345, 0
    %v4426 = vsel %vm4367, %v4346, 0
    %v4429 = vsel %vm4367, %v4347, 0
    %v4432 = vsel %vm4367, %v4348, 0
    %v4435 = vsel %vm4367, %v4349, 0
    %v4438 = vsel %vm4367, %v4350, 0
    %v4441 = vsel %vm4367, %v4351, 0
    %v4444 = vsel %vm4367, %v4352, 0
    %v4447 = vsel %vm4367, %v4353, 0
    %v4450 = vsel %vm4367, %v4354, 0
    %v4453 = vsel %vm4367, %v4355, 0
    %v4456 = vsel %vm4367, %v4356, 0
    %v4459 = vsel %vm4367, %v4357, 0
    %v4462 = vsel %vm4367, %v4358, 0
    %vm4464 = vcmask 1041408
    %v4466 = vsel %vm4464, %v4359, 0
    %4468 = vmatprep.subr.bf16.mxu0 0
    %4469 = vmatpush1.bf16.msra.mxu0 %v4466
    %4470 = vmatprep.subr.bf16.mxu0 0
    %4471 = vmatpush1.bf16.msra.mxu0 0
    %4472 = vmatprep.subr.bf16.mxu0 0
    %4473 = vmatpush1.bf16.msra.mxu0 0
    %4474 = vmatprep.subr.bf16.mxu0 0
    %4475 = vmatpush1.bf16.msra.mxu0 0
    %4476 = vmatprep.subr.bf16.mxu0 0
    %4477 = vmatpush1.bf16.msra.mxu0 0
    %4478 = vmatprep.subr.bf16.mxu0 0
    %4479 = vmatpush1.bf16.msra.mxu0 0
    %4480 = vmatprep.subr.bf16.mxu0 0
    %4481 = vmatpush1.bf16.msra.mxu0 0
    %4482 = vmatprep.subr.bf16.mxu0 0
    %4483 = vmatpush1.bf16.msra.mxu0 0
    %4484 = vmatprep.subr.bf16.mxu0 0
    %4485 = vmatpush1.bf16.msra.mxu0 0
    %4486 = vmatprep.subr.bf16.mxu0 0
    %4487 = vmatpush1.bf16.msra.mxu0 0
    %4488 = vmatprep.subr.bf16.mxu0 0
    %4489 = vmatpush1.bf16.msra.mxu0 0
    %4490 = vmatprep.subr.bf16.mxu0 0
    %4491 = vmatpush1.bf16.msra.mxu0 0
    %4492 = vmatprep.subr.bf16.mxu0 0
    %4493 = vmatpush1.bf16.msra.mxu0 0
    %4494 = vmatprep.subr.bf16.mxu0 0
    %4495 = vmatpush1.bf16.msra.mxu0 0
    %4496 = vmatprep.subr.bf16.mxu0 0
    %4497 = vmatpush1.bf16.msra.mxu0 0
    %4498 = vmatprep.subr.bf16.mxu0 0
    %4499 = vmatpush1.bf16.msra.mxu0 0
    %4500 = vmatprep.mubr.bf16.mxu0 0
    %4501 = vmatmul.mubr.bf16.gmra.mrb[0].mxu0 %v4369
    %v4502 = vpop.f32.mrb[0].mxu0
    %v4503 = vadd.f32 %v4365, %v4502
    %v4504 = vpop.f32.mrb[0].mxu0
    %v4505 = vpop.f32.mrb[0].mxu0
    %v4506 = vadd.f32 %v4365, %v4505
    %v4507 = vpop.f32.mrb[0].mxu0
    %4508 = vmatprep.mubr.bf16.mxu0 0
    %4509 = vmatmul.mubr.bf16.gmra.mrb[0].mxu0 %v4372
    %v4510 = vpop.f32.mrb[0].mxu0
    %v4511 = vadd.f32 %v4365, %v4510
    %v4512 = vpop.f32.mrb[0].mxu0
    %v4513 = vpop.f32.mrb[0].mxu0
    %v4514 = vadd.f32 %v4365, %v4513
    %v4515 = vpop.f32.mrb[0].mxu0
    %4516 = vmatprep.mubr.bf16.mxu0 0
    %4517 = vmatmul.mubr.bf16.gmra.mrb[0].mxu0 %v4375
    %v4518 = vpop.f32.mrb[0].mxu0
    %v4519 = vadd.f32 %v4365, %v4518
    %v4520 = vpop.f32.mrb[0].mxu0
    %v4521 = vpop.f32.mrb[0].mxu0
    %v4522 = vadd.f32 %v4365, %v4521
    %v4523 = vpop.f32.mrb[0].mxu0
    %4524 = vmatprep.mubr.bf16.mxu0 0
    %4525 = vmatmul.mubr.bf16.gmra.mrb[0].mxu0 %v4378
    %v4526 = vpop.f32.mrb[0].mxu0
    %v4527 = vadd.f32 %v4365, %v4526
    %v4528 = vpop.f32.mrb[0].mxu0
    %v4529 = vpop.f32.mrb[0].mxu0
    %v4530 = vadd.f32 %v4365, %v4529
    %v4531 = vpop.f32.mrb[0].mxu0
    %4532 = vmatprep.mubr.bf16.mxu0 0
    %4533 = vmatmul.mubr.bf16.gmra.mrb[0].mxu0 %v4381
    %v4534 = vpop.f32.mrb[0].mxu0
    %v4535 = vadd.f32 %v4365, %v4534
    %v4536 = vpop.f32.mrb[0].mxu0
    %v4537 = vpop.f32.mrb[0].mxu0
    %v4538 = vadd.f32 %v4365, %v4537
    %v4539 = vpop.f32.mrb[0].mxu0
    %4540 = vmatprep.mubr.bf16.mxu0 0
    %4541 = vmatmul.mubr.bf16.gmra.mrb[0].mxu0 %v4384
    %v4542 = vpop.f32.mrb[0].mxu0
    %v4543 = vadd.f32 %v4365, %v4542
    %v4544 = vpop.f32.mrb[0].mxu0
    %v4545 = vpop.f32.mrb[0].mxu0
    %v4546 = vadd.f32 %v4365, %v4545
    %v4547 = vpop.f32.mrb[0].mxu0
    %4548 = vmatprep.mubr.bf16.mxu0 0
    %4549 = vmatmul.mubr.bf16.gmra.mrb[0].mxu0 %v4387
    %v4550 = vpop.f32.mrb[0].mxu0
    %v4551 = vadd.f32 %v4365, %v4550
    %v4552 = vpop.f32.mrb[0].mxu0
    %v4553 = vpop.f32.mrb[0].mxu0
    %v4554 = vadd.f32 %v4365, %v4553
    %v4555 = vpop.f32.mrb[0].mxu0
    %4556 = vmatprep.mubr.bf16.mxu0 0
    %4557 = vmatmul.mubr.bf16.gmra.mrb[0].mxu0 %v4390
    %v4558 = vpop.f32.mrb[0].mxu0
    %v4559 = vadd.f32 %v4365, %v4558
    %v4560 = vpop.f32.mrb[0].mxu0
    %v4561 = vpop.f32.mrb[0].mxu0
    %v4562 = vadd.f32 %v4365, %v4561
    %v4563 = vpop.f32.mrb[0].mxu0
    %4564 = vmatprep.mubr.bf16.mxu0 0
    %4565 = vmatmul.mubr.bf16.gmra.mrb[0].mxu0 %v4393
    %v4566 = vpop.f32.mrb[0].mxu0
    %v4567 = vadd.f32 %v4365, %v4566
    %v4568 = vpop.f32.mrb[0].mxu0
    %v4569 = vpop.f32.mrb[0].mxu0
    %v4570 = vadd.f32 %v4365, %v4569
    %v4571 = vpop.f32.mrb[0].mxu0
    %4572 = vmatprep.mubr.bf16.mxu0 0
    %4573 = vmatmul.mubr.bf16.gmra.mrb[0].mxu0 %v4396
    %v4574 = vpop.f32.mrb[0].mxu0
    %v4575 = vadd.f32 %v4365, %v4574
    %v4576 = vpop.f32.mrb[0].mxu0
    %v4577 = vpop.f32.mrb[0].mxu0
    %v4578 = vadd.f32 %v4365, %v4577
    %v4579 = vpop.f32.mrb[0].mxu0
    %4580 = vmatprep.mubr.bf16.mxu0 0
    %4581 = vmatmul.mubr.bf16.gmra.mrb[0].mxu0 %v4399
    %v4582 = vpop.f32.mrb[0].mxu0
    %v4583 = vadd.f32 %v4365, %v4582
    %v4584 = vpop.f32.mrb[0].mxu0
    %v4585 = vpop.f32.mrb[0].mxu0
    %v4586 = vadd.f32 %v4365, %v4585
    %v4587 = vpop.f32.mrb[0].mxu0
    %4588 = vmatprep.mubr.bf16.mxu0 0
    %4589 = vmatmul.mubr.bf16.gmra.mrb[0].mxu0 %v4402
    %v4590 = vpop.f32.mrb[0].mxu0
    %v4591 = vadd.f32 %v4365, %v4590
    %v4592 = vpop.f32.mrb[0].mxu0
    %v4593 = vpop.f32.mrb[0].mxu0
    %v4594 = vadd.f32 %v4365, %v4593
    %v4595 = vpop.f32.mrb[0].mxu0
    %4596 = vmatprep.mubr.bf16.mxu0 0
    %4597 = vmatmul.mubr.bf16.gmra.mrb[0].mxu0 %v4405
    %v4598 = vpop.f32.mrb[0].mxu0
    %v4599 = vadd.f32 %v4365, %v4598
    %v4600 = vpop.f32.mrb[0].mxu0
    %v4601 = vpop.f32.mrb[0].mxu0
    %v4602 = vadd.f32 %v4365, %v4601
    %v4603 = vpop.f32.mrb[0].mxu0
    %4604 = vmatprep.mubr.bf16.mxu0 0
    %4605 = vmatmul.mubr.bf16.gmra.mrb[0].mxu0 %v4408
    %v4606 = vpop.f32.mrb[0].mxu0
    %v4607 = vadd.f32 %v4365, %v4606
    %v4608 = vpop.f32.mrb[0].mxu0
    %v4609 = vpop.f32.mrb[0].mxu0
    %v4610 = vadd.f32 %v4365, %v4609
    %v4611 = vpop.f32.mrb[0].mxu0
    %4612 = vmatprep.mubr.bf16.mxu0 0
    %4613 = vmatmul.mubr.bf16.gmra.mrb[0].mxu0 %v4411
    %v4614 = vpop.f32.mrb[0].mxu0
    %v4615 = vadd.f32 %v4365, %v4614
    %v4616 = vpop.f32.mrb[0].mxu0
    %v4617 = vpop.f32.mrb[0].mxu0
    %v4618 = vadd.f32 %v4365, %v4617
    %v4619 = vpop.f32.mrb[0].mxu0
    %4620 = vmatprep.mubr.bf16.mxu0 0
    %4621 = vmatmul.mubr.bf16.gmra.mrb[0].mxu0 %v4414
    %v4622 = vpop.f32.mrb[0].mxu0
    %v4623 = vadd.f32 %v4365, %v4622
    %v4624 = vpop.f32.mrb[0].mxu0
    %v4625 = vpop.f32.mrb[0].mxu0
    %v4626 = vadd.f32 %v4365, %v4625
    %v4627 = vpop.f32.mrb[0].mxu0
    %4628 = vmatprep.mubr.bf16.mxu0 0
    %4629 = vmatmul.mubr.bf16.gmra.mrb[0].mxu0 %v4417
    %v4630 = vpop.f32.mrb[0].mxu0
    %v4631 = vadd.f32 %v4365, %v4630
    %v4632 = vpop.f32.mrb[0].mxu0
    %v4633 = vpop.f32.mrb[0].mxu0
    %v4634 = vadd.f32 %v4365, %v4633
    %v4635 = vpop.f32.mrb[0].mxu0
    %4636 = vmatprep.mubr.bf16.mxu0 0
    %4637 = vmatmul.mubr.bf16.gmra.mrb[0].mxu0 %v4420
    %v4638 = vpop.f32.mrb[0].mxu0
    %v4639 = vadd.f32 %v4365, %v4638
    %v4640 = vpop.f32.mrb[0].mxu0
    %v4641 = vpop.f32.mrb[0].mxu0
    %v4642 = vadd.f32 %v4365, %v4641
    %v4643 = vpop.f32.mrb[0].mxu0
    %4644 = vmatprep.mubr.bf16.mxu0 0
    %4645 = vmatmul.mubr.bf16.gmra.mrb[0].mxu0 %v4423
    %v4646 = vpop.f32.mrb[0].mxu0
    %v4647 = vadd.f32 %v4365, %v4646
    %v4648 = vpop.f32.mrb[0].mxu0
    %v4649 = vpop.f32.mrb[0].mxu0
    %v4650 = vadd.f32 %v4365, %v4649
    %v4651 = vpop.f32.mrb[0].mxu0
    %4652 = vmatprep.mubr.bf16.mxu0 0
    %4653 = vmatmul.mubr.bf16.gmra.mrb[0].mxu0 %v4426
    %v4654 = vpop.f32.mrb[0].mxu0
    %v4655 = vadd.f32 %v4365, %v4654
    %v4656 = vpop.f32.mrb[0].mxu0
    %v4657 = vpop.f32.mrb[0].mxu0
    %v4658 = vadd.f32 %v4365, %v4657
    %v4659 = vpop.f32.mrb[0].mxu0
    %4660 = vmatprep.mubr.bf16.mxu0 0
    %4661 = vmatmul.mubr.bf16.gmra.mrb[0].mxu0 %v4429
    %v4662 = vpop.f32.mrb[0].mxu0
    %v4663 = vadd.f32 %v4365, %v4662
    %v4664 = vpop.f32.mrb[0].mxu0
    %v4665 = vpop.f32.mrb[0].mxu0
    %v4666 = vadd.f32 %v4365, %v4665
    %v4667 = vpop.f32.mrb[0].mxu0
    %4668 = vmatprep.mubr.bf16.mxu0 0
    %4669 = vmatmul.mubr.bf16.gmra.mrb[0].mxu0 %v4432
    %v4670 = vpop.f32.mrb[0].mxu0
    %v4671 = vadd.f32 %v4365, %v4670
    %v4672 = vpop.f32.mrb[0].mxu0
    %v4673 = vpop.f32.mrb[0].mxu0
    %v4674 = vadd.f32 %v4365, %v4673
    %v4675 = vpop.f32.mrb[0].mxu0
    %4676 = vmatprep.mubr.bf16.mxu0 0
    %4677 = vmatmul.mubr.bf16.gmra.mrb[0].mxu0 %v4435
    %v4678 = vpop.f32.mrb[0].mxu0
    %v4679 = vadd.f32 %v4365, %v4678
    %v4680 = vpop.f32.mrb[0].mxu0
    %v4681 = vpop.f32.mrb[0].mxu0
    %v4682 = vadd.f32 %v4365, %v4681
    %v4683 = vpop.f32.mrb[0].mxu0
    %4684 = vmatprep.mubr.bf16.mxu0 0
    %4685 = vmatmul.mubr.bf16.gmra.mrb[0].mxu0 %v4438
    %v4686 = vpop.f32.mrb[0].mxu0
    %v4687 = vadd.f32 %v4365, %v4686
    %v4688 = vpop.f32.mrb[0].mxu0
    %v4689 = vpop.f32.mrb[0].mxu0
    %v4690 = vadd.f32 %v4365, %v4689
    %v4691 = vpop.f32.mrb[0].mxu0
    %4692 = vmatprep.mubr.bf16.mxu0 0
    %4693 = vmatmul.mubr.bf16.gmra.mrb[0].mxu0 %v4441
    %v4694 = vpop.f32.mrb[0].mxu0
    %v4695 = vadd.f32 %v4365, %v4694
    %v4696 = vpop.f32.mrb[0].mxu0
    %v4697 = vpop.f32.mrb[0].mxu0
    %v4698 = vadd.f32 %v4365, %v4697
    %v4699 = vpop.f32.mrb[0].mxu0
    %4700 = vmatprep.mubr.bf16.mxu0 0
    %4701 = vmatmul.mubr.bf16.gmra.mrb[0].mxu0 %v4444
    %v4702 = vpop.f32.mrb[0].mxu0
    %v4703 = vadd.f32 %v4365, %v4702
    %v4704 = vpop.f32.mrb[0].mxu0
    %v4705 = vpop.f32.mrb[0].mxu0
    %v4706 = vadd.f32 %v4365, %v4705
    %v4707 = vpop.f32.mrb[0].mxu0
    %4708 = vmatprep.mubr.bf16.mxu0 0
    %4709 = vmatmul.mubr.bf16.gmra.mrb[0].mxu0 %v4447
    %v4710 = vpop.f32.mrb[0].mxu0
    %v4711 = vadd.f32 %v4365, %v4710
    %v4712 = vpop.f32.mrb[0].mxu0
    %v4713 = vpop.f32.mrb[0].mxu0
    %v4714 = vadd.f32 %v4365, %v4713
    %v4715 = vpop.f32.mrb[0].mxu0
    %4716 = vmatprep.mubr.bf16.mxu0 0
    %4717 = vmatmul.mubr.bf16.gmra.mrb[0].mxu0 %v4450
    %v4718 = vpop.f32.mrb[0].mxu0
    %v4719 = vadd.f32 %v4365, %v4718
    %v4720 = vpop.f32.mrb[0].mxu0
    %v4721 = vpop.f32.mrb[0].mxu0
    %v4722 = vadd.f32 %v4365, %v4721
    %v4723 = vpop.f32.mrb[0].mxu0
    %4724 = vmatprep.mubr.bf16.mxu0 0
    %4725 = vmatmul.mubr.bf16.gmra.mrb[0].mxu0 %v4453
    %v4726 = vpop.f32.mrb[0].mxu0
    %v4727 = vadd.f32 %v4365, %v4726
    %v4728 = vpop.f32.mrb[0].mxu0
    %v4729 = vpop.f32.mrb[0].mxu0
    %v4730 = vadd.f32 %v4365, %v4729
    %v4731 = vpop.f32.mrb[0].mxu0
    %4732 = vmatprep.mubr.bf16.mxu0 0
    %4733 = vmatmul.mubr.bf16.gmra.mrb[0].mxu0 %v4456
    %v4734 = vpop.f32.mrb[0].mxu0
    %v4735 = vadd.f32 %v4365, %v4734
    %v4736 = vpop.f32.mrb[0].mxu0
    %v4737 = vpop.f32.mrb[0].mxu0
    %v4738 = vadd.f32 %v4365, %v4737
    %v4739 = vpop.f32.mrb[0].mxu0
    %4740 = vmatprep.mubr.bf16.mxu0 0
    %4741 = vmatmul.mubr.bf16.gmra.mrb[0].mxu0 %v4459
    %v4742 = vpop.f32.mrb[0].mxu0
    %v4743 = vadd.f32 %v4365, %v4742
    %v4744 = vpop.f32.mrb[0].mxu0
    %v4745 = vpop.f32.mrb[0].mxu0
    %v4746 = vadd.f32 %v4365, %v4745
    %v4747 = vpop.f32.mrb[0].mxu0
    %4748 = vmatprep.mubr.bf16.mxu0 0
    %4749 = vmatmul.mubr.bf16.gmra.mrb[0].mxu0 %v4462
    %v4750 = vpop.f32.mrb[0].mxu0
    %v4751 = vadd.f32 %v4365, %v4750
    %v4752 = vpop.f32.mrb[0].mxu0
    %v4753 = vpop.f32.mrb[0].mxu0
    %v4754 = vadd.f32 %v4365, %v4753
    %v4755 = vpop.f32.mrb[0].mxu0
    %4756 = vdwg.mxu0
    %v4757 = vmax.f32 %v4503, 0.0
    %v4758 = vmax.f32 %v4506, 0.0
    %v4759 = vmax.f32 %v4511, 0.0
    %v4760 = vmax.f32 %v4514, 0.0
    %v4761 = vmax.f32 %v4519, 0.0
    %v4762 = vmax.f32 %v4522, 0.0
    %v4763 = vmax.f32 %v4527, 0.0
    %v4764 = vmax.f32 %v4530, 0.0
    %v4765 = vmax.f32 %v4535, 0.0
    %v4766 = vmax.f32 %v4538, 0.0
    %v4767 = vmax.f32 %v4543, 0.0
    %v4768 = vmax.f32 %v4546, 0.0
    %v4769 = vmax.f32 %v4551, 0.0
    %v4770 = vmax.f32 %v4554, 0.0
    %v4771 = vmax.f32 %v4559, 0.0
    %v4772 = vmax.f32 %v4562, 0.0
    %v4773 = vmax.f32 %v4567, 0.0
    %v4774 = vmax.f32 %v4570, 0.0
    %v4775 = vmax.f32 %v4575, 0.0
    %v4776 = vmax.f32 %v4578, 0.0
    %v4777 = vmax.f32 %v4583, 0.0
    %v4778 = vmax.f32 %v4586, 0.0
    %v4779 = vmax.f32 %v4591, 0.0
    %v4780 = vmax.f32 %v4594, 0.0
    %v4781 = vmax.f32 %v4599, 0.0
    %v4782 = vmax.f32 %v4602, 0.0
    %v4783 = vmax.f32 %v4607, 0.0
    %v4784 = vmax.f32 %v4610, 0.0
    %v4785 = vmax.f32 %v4615, 0.0
    %v4786 = vmax.f32 %v4618, 0.0
    %v4787 = vmax.f32 %v4623, 0.0
    %v4788 = vmax.f32 %v4626, 0.0
    %v4789 = vmax.f32 %v4631, 0.0
    %v4790 = vmax.f32 %v4634, 0.0
    %v4791 = vmax.f32 %v4639, 0.0
    %v4792 = vmax.f32 %v4642, 0.0
    %v4793 = vmax.f32 %v4647, 0.0
    %v4794 = vmax.f32 %v4650, 0.0
    %v4795 = vmax.f32 %v4655, 0.0
    %v4796 = vmax.f32 %v4658, 0.0
    %v4797 = vmax.f32 %v4663, 0.0
    %v4798 = vmax.f32 %v4666, 0.0
    %v4799 = vmax.f32 %v4671, 0.0
    %v4800 = vmax.f32 %v4674, 0.0
    %v4801 = vmax.f32 %v4679, 0.0
    %v4802 = vmax.f32 %v4682, 0.0
    %v4803 = vmax.f32 %v4687, 0.0
    %v4804 = vmax.f32 %v4690, 0.0
    %v4805 = vmax.f32 %v4695, 0.0
    %v4806 = vmax.f32 %v4698, 0.0
    %v4807 = vmax.f32 %v4703, 0.0
    %v4808 = vmax.f32 %v4706, 0.0
    %v4809 = vmax.f32 %v4711, 0.0
    %v4810 = vmax.f32 %v4714, 0.0
    %v4811 = vmax.f32 %v4719, 0.0
    %v4812 = vmax.f32 %v4722, 0.0
    %v4813 = vmax.f32 %v4727, 0.0
    %v4814 = vmax.f32 %v4730, 0.0
    %v4815 = vmax.f32 %v4735, 0.0
    %v4816 = vmax.f32 %v4738, 0.0
    %v4817 = vmax.f32 %v4743, 0.0
    %v4818 = vmax.f32 %v4746, 0.0
    %v4819 = vmax.f32 %v4751, 0.0
    %v4820 = vmax.f32 %v4754, 0.0
    %v4821 = vmin.f32 %v4757, 6.0
    %v4822 = vmin.f32 %v4758, 6.0
    %v4823 = vmin.f32 %v4759, 6.0
    %v4824 = vmin.f32 %v4760, 6.0
    %v4825 = vmin.f32 %v4761, 6.0
    %v4826 = vmin.f32 %v4762, 6.0
    %v4827 = vmin.f32 %v4763, 6.0
    %v4828 = vmin.f32 %v4764, 6.0
    %v4829 = vmin.f32 %v4765, 6.0
    %v4830 = vmin.f32 %v4766, 6.0
    %v4831 = vmin.f32 %v4767, 6.0
    %v4832 = vmin.f32 %v4768, 6.0
    %v4833 = vmin.f32 %v4769, 6.0
    %v4834 = vmin.f32 %v4770, 6.0
    %v4835 = vmin.f32 %v4771, 6.0
    %v4836 = vmin.f32 %v4772, 6.0
    %v4837 = vmin.f32 %v4773, 6.0
    %v4838 = vmin.f32 %v4774, 6.0
    %v4839 = vmin.f32 %v4775, 6.0
    %v4840 = vmin.f32 %v4776, 6.0
    %v4841 = vmin.f32 %v4777, 6.0
    %v4842 = vmin.f32 %v4778, 6.0
    %v4843 = vmin.f32 %v4779, 6.0
    %v4844 = vmin.f32 %v4780, 6.0
    %v4845 = vmin.f32 %v4781, 6.0
    %v4846 = vmin.f32 %v4782, 6.0
    %v4847 = vmin.f32 %v4783, 6.0
    %v4848 = vmin.f32 %v4784, 6.0
    %v4849 = vmin.f32 %v4785, 6.0
    %v4850 = vmin.f32 %v4786, 6.0
    %v4851 = vmin.f32 %v4787, 6.0
    %v4852 = vmin.f32 %v4788, 6.0
    %v4853 = vmin.f32 %v4789, 6.0
    %v4854 = vmin.f32 %v4790, 6.0
    %v4855 = vmin.f32 %v4791, 6.0
    %v4856 = vmin.f32 %v4792, 6.0
    %v4857 = vmin.f32 %v4793, 6.0
    %v4858 = vmin.f32 %v4794, 6.0
    %v4859 = vmin.f32 %v4795, 6.0
    %v4860 = vmin.f32 %v4796, 6.0
    %v4861 = vmin.f32 %v4797, 6.0
    %v4862 = vmin.f32 %v4798, 6.0
    %v4863 = vmin.f32 %v4799, 6.0
    %v4864 = vmin.f32 %v4800, 6.0
    %v4865 = vmin.f32 %v4801, 6.0
    %v4866 = vmin.f32 %v4802, 6.0
    %v4867 = vmin.f32 %v4803, 6.0
    %v4868 = vmin.f32 %v4804, 6.0
    %v4869 = vmin.f32 %v4805, 6.0
    %v4870 = vmin.f32 %v4806, 6.0
    %v4871 = vmin.f32 %v4807, 6.0
    %v4872 = vmin.f32 %v4808, 6.0
    %v4873 = vmin.f32 %v4809, 6.0
    %v4874 = vmin.f32 %v4810, 6.0
    %v4875 = vmin.f32 %v4811, 6.0
    %v4876 = vmin.f32 %v4812, 6.0
    %v4877 = vmin.f32 %v4813, 6.0
    %v4878 = vmin.f32 %v4814, 6.0
    %v4879 = vmin.f32 %v4815, 6.0
    %v4880 = vmin.f32 %v4816, 6.0
    %v4881 = vmin.f32 %v4817, 6.0
    %v4882 = vmin.f32 %v4818, 6.0
    %v4883 = vmin.f32 %v4819, 6.0
    %v4884 = vmin.f32 %v4820, 6.0
    %vm4885 = vcmask 64512
    %4886 = vst.msk [vmem:[#allocation11] sm:$0xff] %vm4885, %v4821
    %4887 = vst.msk [vmem:[#allocation11 + $0x8] sm:$0xff] %vm4885, %v4822
    %4888 = vst.msk [vmem:[#allocation11 + $0x10] sm:$0xff] %vm4885, %v4823
    %4889 = vst.msk [vmem:[#allocation11 + $0x18] sm:$0xff] %vm4885, %v4824
    %4890 = vst.msk [vmem:[#allocation11 + $0x20] sm:$0xff] %vm4885, %v4825
    %4891 = vst.msk [vmem:[#allocation11 + $0x28] sm:$0xff] %vm4885, %v4826
    %4892 = vst.msk [vmem:[#allocation11 + $0x30] sm:$0xff] %vm4885, %v4827
    %4893 = vst.msk [vmem:[#allocation11 + $0x38] sm:$0xff] %vm4885, %v4828
    %4894 = vst.msk [vmem:[#allocation11 + $0x40] sm:$0xff] %vm4885, %v4829
    %4895 = vst.msk [vmem:[#allocation11 + $0x48] sm:$0xff] %vm4885, %v4830
    %4896 = vst.msk [vmem:[#allocation11 + $0x50] sm:$0xff] %vm4885, %v4831
    %4897 = vst.msk [vmem:[#allocation11 + $0x58] sm:$0xff] %vm4885, %v4832
    %4898 = vst.msk [vmem:[#allocation11 + $0x60] sm:$0xff] %vm4885, %v4833
    %4899 = vst.msk [vmem:[#allocation11 + $0x68] sm:$0xff] %vm4885, %v4834
    %4900 = vst.msk [vmem:[#allocation11 + $0x70] sm:$0xff] %vm4885, %v4835
    %4901 = vst.msk [vmem:[#allocation11 + $0x78] sm:$0xff] %vm4885, %v4836
    %4902 = vst.msk [vmem:[#allocation11 + $0x80] sm:$0xff] %vm4885, %v4837
    %4903 = vst.msk [vmem:[#allocation11 + $0x88] sm:$0xff] %vm4885, %v4838
    %4904 = vst.msk [vmem:[#allocation11 + $0x90] sm:$0xff] %vm4885, %v4839
    %4905 = vst.msk [vmem:[#allocation11 + $0x98] sm:$0xff] %vm4885, %v4840
    %4906 = vst.msk [vmem:[#allocation11 + $0xa0] sm:$0xff] %vm4885, %v4841
    %4907 = vst.msk [vmem:[#allocation11 + $0xa8] sm:$0xff] %vm4885, %v4842
    %4908 = vst.msk [vmem:[#allocation11 + $0xb0] sm:$0xff] %vm4885, %v4843
    %4909 = vst.msk [vmem:[#allocation11 + $0xb8] sm:$0xff] %vm4885, %v4844
    %4910 = vst.msk [vmem:[#allocation11 + $0xc0] sm:$0xff] %vm4885, %v4845
    %4911 = vst.msk [vmem:[#allocation11 + $0xc8] sm:$0xff] %vm4885, %v4846
    %4912 = vst.msk [vmem:[#allocation11 + $0xd0] sm:$0xff] %vm4885, %v4847
    %4913 = vst.msk [vmem:[#allocation11 + $0xd8] sm:$0xff] %vm4885, %v4848
    %4914 = vst.msk [vmem:[#allocation11 + $0xe0] sm:$0xff] %vm4885, %v4849
    %4915 = vst.msk [vmem:[#allocation11 + $0xe8] sm:$0xff] %vm4885, %v4850
    %4916 = vst.msk [vmem:[#allocation11 + $0xf0] sm:$0xff] %vm4885, %v4851
    %4917 = vst.msk [vmem:[#allocation11 + $0xf8] sm:$0xff] %vm4885, %v4852
    %4918 = vst.msk [vmem:[#allocation11 + $0x100] sm:$0xff] %vm4885, %v4853
    %4919 = vst.msk [vmem:[#allocation11 + $0x108] sm:$0xff] %vm4885, %v4854
    %4920 = vst.msk [vmem:[#allocation11 + $0x110] sm:$0xff] %vm4885, %v4855
    %4921 = vst.msk [vmem:[#allocation11 + $0x118] sm:$0xff] %vm4885, %v4856
    %4922 = vst.msk [vmem:[#allocation11 + $0x120] sm:$0xff] %vm4885, %v4857
    %4923 = vst.msk [vmem:[#allocation11 + $0x128] sm:$0xff] %vm4885, %v4858
    %4924 = vst.msk [vmem:[#allocation11 + $0x130] sm:$0xff] %vm4885, %v4859
    %4925 = vst.msk [vmem:[#allocation11 + $0x138] sm:$0xff] %vm4885, %v4860
    %4926 = vst.msk [vmem:[#allocation11 + $0x140] sm:$0xff] %vm4885, %v4861
    %4927 = vst.msk [vmem:[#allocation11 + $0x148] sm:$0xff] %vm4885, %v4862
    %4928 = vst.msk [vmem:[#allocation11 + $0x150] sm:$0xff] %vm4885, %v4863
    %4929 = vst.msk [vmem:[#allocation11 + $0x158] sm:$0xff] %vm4885, %v4864
    %4930 = vst.msk [vmem:[#allocation11 + $0x160] sm:$0xff] %vm4885, %v4865
    %4931 = vst.msk [vmem:[#allocation11 + $0x168] sm:$0xff] %vm4885, %v4866
    %4932 = vst.msk [vmem:[#allocation11 + $0x170] sm:$0xff] %vm4885, %v4867
    %4933 = vst.msk [vmem:[#allocation11 + $0x178] sm:$0xff] %vm4885, %v4868
    %4934 = vst.msk [vmem:[#allocation11 + $0x180] sm:$0xff] %vm4885, %v4869
    %4935 = vst.msk [vmem:[#allocation11 + $0x188] sm:$0xff] %vm4885, %v4870
    %4936 = vst.msk [vmem:[#allocation11 + $0x190] sm:$0xff] %vm4885, %v4871
    %4937 = vst.msk [vmem:[#allocation11 + $0x198] sm:$0xff] %vm4885, %v4872
    %4938 = vst.msk [vmem:[#allocation11 + $0x1a0] sm:$0xff] %vm4885, %v4873
    %4939 = vst.msk [vmem:[#allocation11 + $0x1a8] sm:$0xff] %vm4885, %v4874
    %4940 = vst.msk [vmem:[#allocation11 + $0x1b0] sm:$0xff] %vm4885, %v4875
    %4941 = vst.msk [vmem:[#allocation11 + $0x1b8] sm:$0xff] %vm4885, %v4876
    %4942 = vst.msk [vmem:[#allocation11 + $0x1c0] sm:$0xff] %vm4885, %v4877
    %4943 = vst.msk [vmem:[#allocation11 + $0x1c8] sm:$0xff] %vm4885, %v4878
    %4944 = vst.msk [vmem:[#allocation11 + $0x1d0] sm:$0xff] %vm4885, %v4879
    %4945 = vst.msk [vmem:[#allocation11 + $0x1d8] sm:$0xff] %vm4885, %v4880
    %4946 = vst.msk [vmem:[#allocation11 + $0x1e0] sm:$0xff] %vm4885, %v4881
    %4947 = vst.msk [vmem:[#allocation11 + $0x1e8] sm:$0xff] %vm4885, %v4882
    %4948 = vst.msk [vmem:[#allocation11 + $0x1f0] sm:$0xff] %vm4885, %v4883
    %4949 = vst.msk [vmem:[#allocation11 + $0x1f8] sm:$0xff] %vm4885, %v4884
    // Predicated region
    $region42: #{tpu_custom_call.1} parent=1 // pred_check
      _
    $region43: #{tpu_custom_call.1} parent=1 // pred_check_branch
      %4951 = sbr.rel (0) target = $region45
    $region44: #{tpu_custom_call.1} parent=1 // pred_region
      %s4953 = ssub.s32 8192, 8192
      %4954 = vsyncadd [#allocation4], %s4953
      %s4955 = sshll.u32 [#allocation11], 4
      %s4956 = int_to_ptr.vmem [resolvable:$true] %s4955
      %4961 = dma.vmem_to_hbm [thread:$0]  %s4956, 8192, %s5, [#allocation4], 128, 128, 8
    $region45: #{tpu_custom_call.1} parent=1 // pred_fallthru
      _
    // Predicated region
    $region46: #{tpu_custom_call.1} parent=1 // pred_check
      _
    $region47: #{tpu_custom_call.1} parent=1 // pred_check_branch
      %4963 = sbr.rel (0) target = $region49
    $region48: #{tpu_custom_call.1} parent=1 // pred_region
      %4964 = dma.done [#allocation4], 8192
    $region49: #{tpu_custom_call.1} parent=1 // pred_fallthru
      _
    %4965 = vsyncpa [#allocation3], 1
    %4966 = vsyncpa [#allocation6], 1
    %4967 = vsyncpa [#allocation9], 1
    %4968 = vsyncpa [#allocation4], 1

</llo_original>
